<compile_context>
chip_gen: v6e
topology: v6e:2x2x1
jax: 0.10.0
libtpu: 0.0.40
codegen_flags: <defaults>
</compile_context>

<pallas_src>
import jax
import jax.numpy as jnp
from jax.experimental import pallas as pl
from jax.experimental.pallas import tpu as pltpu


def _tanhshrink(x):
    return x - jnp.tanh(x)


def egcl_kernel(
    # per-tile edge indices (packed)
    idx_ref,              # [TE, 2] int32: lane 0 = row (source/scatter), lane 1 = col (target)
    # resident node tables
    nodes_bf_ref,         # [N, F]   bf16 gather table
    node_coord_ref,       # [N, F+3] f32  ([nodes | coord]) for rij + finalize
    # parameters (matrices bf16 for MXU, row-vectors/biases f32)
    w1r_ref,              # [F, 2H] bf16  [we1s | wa1s]
    w1c_ref,              # [F, 2H] bf16  [we1t | wa1t]
    we1r_ref,             # [1, H] f32  radial column of EdgeMLP-1
    be1_ref, ba1_ref,     # [1, H] f32
    we2_ref, be2_ref,     # [H, H] bf16, [1, H] f32
    wa2_ref, ba2_ref,     # [1, H] f32 (row vector), [1, 1] f32
    wc1_ref, bc1_ref,     # [H, H] bf16, [1, H] f32
    wc2_ref, bc2_ref,     # [1, H] f32 (row vector), [1, 1] f32
    wn1n_ref, wn1e_ref,   # [F, H] bf16, [H, H] bf16
    bn1_ref,              # [1, H] f32
    wn2_ref, bn2_ref,     # [H, O] bf16, [1, O] f32
    # output
    out_ref,              # [N, O+3] f32  ([nodes_out | coord_out])
    # scratch
    acc_ref,              # [N, H+3] f32  accumulator: [edge_agg | coord_agg]
    cat_ref,              # [TE, H+3] bf16 scatter payload (no per-tile lane concat)
):
    f32 = jnp.float32
    bf16 = jnp.bfloat16

    n_nodes, fdim = nodes_bf_ref.shape
    hdim = we2_ref.shape[0]
    odim = wn2_ref.shape[1]
    te = idx_ref.shape[0]
    pid = pl.program_id(0)

    @pl.when(pid == 0)
    def _init():
        acc_ref[...] = jnp.zeros_like(acc_ref)

    # ---- one-hot edge->node maps (built once, reused for gather AND scatter).
    #      Padded tail edges carry index -1 and therefore match no node. ----
    iota_en = jax.lax.broadcasted_iota(jnp.int32, (te, n_nodes), 1)
    oh_row = (iota_en == idx_ref[:, 0:1]).astype(bf16)                   # [TE, N]
    oh_col = (iota_en == idx_ref[:, 1:2]).astype(bf16)                   # [TE, N]

    # ---- gathers nodes[row], nodes[col] on the MXU ----
    ntab = nodes_bf_ref[...]                                             # [N, F] bf16
    g_row = jnp.dot(oh_row, ntab, preferred_element_type=f32)            # [TE, F]
    g_col = jnp.dot(oh_col, ntab, preferred_element_type=f32)            # [TE, F]

    # ---- RadialOperation: exact-f32 rij = coord[row] - coord[col] ----
    coord_tab = node_coord_ref[:, fdim:]                                 # [N, 3] f32
    rij = jnp.dot((oh_row - oh_col).astype(f32), coord_tab,
                  preferred_element_type=f32)                            # [TE, 3]
    radial = jnp.sum(rij * rij, axis=1, keepdims=True)                   # [TE, 1]

    # ---- EdgeOperation: split fused first layer (no lane concat, no zero rows) ----
    pre = (jnp.dot(g_row.astype(bf16), w1r_ref[...], preferred_element_type=f32)
           + jnp.dot(g_col.astype(bf16), w1c_ref[...], preferred_element_type=f32))  # [TE, 2H]

    h = pre[:, :hdim] + radial * we1r_ref[...] + be1_ref[...]            # EdgeMLP-1 pre-act
    h = _tanhshrink(h)
    h = _tanhshrink(jnp.dot(h.astype(bf16), we2_ref[...],
                            preferred_element_type=f32) + be2_ref[...])  # [TE, H]

    a = _tanhshrink(pre[:, hdim:] + ba1_ref[...])                        # attention hidden
    a = jnp.sum(a * wa2_ref[...], axis=1, keepdims=True) + ba2_ref[...]  # [TE, 1] (VPU+XLU)
    edge_feat = h * jax.nn.sigmoid(a)                                    # [TE, H]

    # ---- CoordinateOperation (per-edge head) ----
    c = _tanhshrink(jnp.dot(edge_feat.astype(bf16), wc1_ref[...],
                            preferred_element_type=f32) + bc1_ref[...])  # [TE, H]
    c = jnp.sum(c * wc2_ref[...], axis=1, keepdims=True) + bc2_ref[...]  # [TE, 1] (VPU+XLU)
    trans = rij * c                                                      # [TE, 3]

    # ---- fused segment sums (scatter-add over row): reuse oh_row and contract
    #      its edge (sublane) axis -- no second one-hot build. ----
    cat_ref[:, :hdim] = edge_feat.astype(bf16)
    cat_ref[:, hdim:] = trans.astype(bf16)
    acc_ref[...] += jax.lax.dot_general(
        oh_row, cat_ref[...],
        dimension_numbers=(((0,), (0,)), ((), ())),                      # oh_row^T @ cat
        preferred_element_type=f32)                                      # [N, H+3]

    # ---- finalize (last tile): coord residual + NodeOperation ----
    @pl.when(pid == pl.num_programs(0) - 1)
    def _finalize():
        acc = acc_ref[...]
        edge_agg = acc[:, :hdim]                                         # [N, H]
        coord_agg = acc[:, hdim:]                                        # [N, 3]

        n1 = _tanhshrink(
            jnp.dot(nodes_bf_ref[...], wn1n_ref[...], preferred_element_type=f32)
            + jnp.dot(edge_agg.astype(bf16), wn1e_ref[...], preferred_element_type=f32)
            + bn1_ref[...])                                              # [N, H]
        n2 = jnp.dot(n1.astype(bf16), wn2_ref[...],
                     preferred_element_type=f32) + bn2_ref[...]          # [N, O]

        # residual assumes output_nf == input_nf (same as the torch module).
        out_ref[:, :odim] = node_coord_ref[:, :fdim] + n2
        out_ref[:, odim:] = node_coord_ref[:, fdim:] + coord_agg


def _vmem_limit_bytes(n, f, h, o, tile_e):
    """Chip-aware VMEM budget: ~2x the resident footprint, capped below physical."""
    resident = n * f * 2 + n * (f + 3) * 4                       # bf16 table + f32 [nodes|coord]
    weights = 2 * (2 * f * 2 * h + 2 * h * h + f * h + h * h + h * o) \
              + 4 * (8 * h + o + 4)                              # bf16 mats + f32 vectors
    idx_blocks = 2 * tile_e * 128 * 4                            # [TE,2] int32 pads to 128 lanes, x2 buffers
    acc_out = n * (h + 3) * 4 + n * (o + 3) * 4
    cat = tile_e * (h + 3) * 2
    inter = tile_e * (n * (2 + 2 + 4) + (2 * f + 8 * h + 16) * 4)  # one-hots + activations
    est = 2 * (resident + weights + idx_blocks + acc_out + cat + inter)

    try:
        cap = int(getattr(pltpu.get_tpu_info(), "vmem_capacity_bytes", 64 * 2**20))
    except Exception:
        cap = 64 * 2**20
    # leave headroom below physical (v7x: 64 MiB -> ~56 MiB); allow ~100 MiB on 128 MiB chips
    ceiling = max(16 * 2**20, min(cap - 8 * 2**20, 100 * 2**20))
    return int(min(max(est, 16 * 2**20), ceiling))


def egcl_forward(nodes, coord, row, col, params, *, tile_e=None):
    """Edge-tiled Pallas EGCL forward. Returns (nodes_out, coord_out)."""
    n_nodes, f = nodes.shape
    h = params["we2"].shape[0]
    o = params["wn2"].shape[1]
    e = int(row.shape[0])
    bf16 = jnp.bfloat16

    # Edge tile must be a multiple of 128 (lane/sublane tiling constraint).
    e128 = max(128, ((e + 127) // 128) * 128)
    if tile_e is None:
        tile_e = 1024                      # big tiles amortize per-grid-step overhead
    tile_e = max(128, (min(int(tile_e), e128) // 128) * 128)
    e_pad = ((e + tile_e - 1) // tile_e) * tile_e
    num_tiles = e_pad // tile_e
    pad = e_pad - e

    # Padded tail edges -> index -1 => all-zero one-hot columns (contribute 0).
    row_p = jnp.concatenate([row.astype(jnp.int32), jnp.full((pad,), -1, jnp.int32)])
    col_p = jnp.concatenate([col.astype(jnp.int32), jnp.full((pad,), -1, jnp.int32)])
    idx = jnp.stack([row_p, col_p], axis=1)                              # [E_pad, 2]

    # Resident node tables.
    nodes_bf = nodes.astype(bf16)                                        # [N, F] gather table
    node_coord = jnp.concatenate([nodes, coord], axis=1)                 # [N, F+3] f32

    # Split first-layer weights (per endpoint), fused EdgeMLP|EdgeAttention columns.
    w1r = jnp.concatenate([params["we1s"], params["wa1s"]], axis=1).astype(bf16)  # [F, 2H]
    w1c = jnp.concatenate([params["we1t"], params["wa1t"]], axis=1).astype(bf16)  # [F, 2H]

    kernel_inputs = (
        idx,
        nodes_bf, node_coord,
        w1r, w1c,
        params["we1r"], params["be1"], params["ba1"],
        params["we2"].astype(bf16), params["be2"],
        params["wa2"].reshape(1, -1), params["ba2"],                      # wa2 as [1, H] row
        params["wc1"].astype(bf16), params["bc1"],
        params["wc2"].reshape(1, -1), params["bc2"],                      # wc2 as [1, H] row
        params["wn1n"].astype(bf16), params["wn1e"].astype(bf16), params["bn1"],
        params["wn2"].astype(bf16), params["bn2"],
    )

    def resident_spec(a):
        return pl.BlockSpec(a.shape, lambda ei: (0, 0))

    in_specs = [pl.BlockSpec((tile_e, 2), lambda ei: (ei, 0))] \
        + [resident_spec(a) for a in kernel_inputs[1:]]

    out_spec = pl.BlockSpec((n_nodes, o + 3), lambda ei: (0, 0))

    grid_spec = pltpu.PrefetchScalarGridSpec(
        num_scalar_prefetch=0,
        grid=(num_tiles,),
        in_specs=in_specs,
        out_specs=out_spec,
        scratch_shapes=[
            pltpu.VMEM((n_nodes, h + 3), jnp.float32),   # [edge_agg | coord_agg] accumulator
            pltpu.VMEM((tile_e, h + 3), bf16),           # scatter payload buffer
        ],
    )

    out = pl.pallas_call(
        egcl_kernel,
        out_shape=jax.ShapeDtypeStruct((n_nodes, o + 3), jnp.float32),
        grid_spec=grid_spec,
        compiler_params=pltpu.CompilerParams(
            dimension_semantics=("arbitrary",),   # sequential: shared accumulator
            vmem_limit_bytes=_vmem_limit_bytes(n_nodes, f, h, o, tile_e),
        ),
    )(*kernel_inputs)
    return out[:, :o], out[:, o:]


def egcl_reference(nodes, coord, row, col, params):
    """Pure-JAX f32 reference matching the PyTorch forward (edge_attr/node_attr None)."""
    src, tgt = nodes[row], nodes[col]
    rij = coord[row] - coord[col]
    radial = jnp.sum(rij * rij, axis=1, keepdims=True)

    h = src @ params["we1s"] + tgt @ params["we1t"] + radial * params["we1r"] + params["be1"]
    h = _tanhshrink(h)
    h = _tanhshrink(h @ params["we2"] + params["be2"])

    a = _tanhshrink(src @ params["wa1s"] + tgt @ params["wa1t"] + params["ba1"])
    a = jax.nn.sigmoid(a @ params["wa2"] + params["ba2"])
    edge_feat = h * a

    c = _tanhshrink(edge_feat @ params["wc1"] + params["bc1"])
    c = c @ params["wc2"] + params["bc2"]
    trans = rij * c

    n_nodes = nodes.shape[0]
    coord_agg = jax.ops.segment_sum(trans, row, num_segments=n_nodes)
    edge_agg = jax.ops.segment_sum(edge_feat, row, num_segments=n_nodes)

    coord_out = coord + coord_agg
    n = _tanhshrink(nodes @ params["wn1n"] + edge_agg @ params["wn1e"] + params["bn1"])
    n = n @ params["wn2"] + params["bn2"]
    return nodes + n, coord_out


def _linear_init(key, fan_in, fan_out):
    kw, kb = jax.random.split(key)
    bound = 1.0 / jnp.sqrt(float(fan_in))
    w = jax.random.uniform(kw, (fan_in, fan_out), jnp.float32, -bound, bound)
    b = jax.random.uniform(kb, (1, fan_out), jnp.float32, -bound, bound)
    return w, b


def init_params(key, input_nf, output_nf, hidden_nf, radial_nf=1):
    F, H, O, R = input_nf, hidden_nf, output_nf, radial_nf
    ks = jax.random.split(key, 8)
    we1, be1 = _linear_init(ks[0], 2 * F + R, H)     # EdgeMLP layer 1
    we2, be2 = _linear_init(ks[1], H, H)             # EdgeMLP layer 2
    wa1, ba1 = _linear_init(ks[2], 2 * F, H)         # EdgeAttention layer 1
    wa2, ba2 = _linear_init(ks[3], H, 1)             # EdgeAttention layer 2
    wc1, bc1 = _linear_init(ks[4], H, H)             # CoordMLP layer 1
    wc2, bc2 = _linear_init(ks[5], H, 1)             # CoordMLP layer 2
    wn1, bn1 = _linear_init(ks[6], F + H, H)         # NodeMLP layer 1
    wn2, bn2 = _linear_init(ks[7], H, O)             # NodeMLP layer 2
    return dict(
        we1s=we1[:F], we1t=we1[F:2 * F], we1r=we1[2 * F:], be1=be1, we2=we2, be2=be2,
        wa1s=wa1[:F], wa1t=wa1[F:], ba1=ba1, wa2=wa2, ba2=ba2,
        wc1=wc1, bc1=bc1, wc2=wc2, bc2=bc2,
        wn1n=wn1[:F], wn1e=wn1[F:], bn1=bn1, wn2=wn2, bn2=bn2,
    )


if __name__ == "__main__":
    key = jax.random.PRNGKey(0)
    N, F, H, O = 16, 32, 32, 32          # nodes, input_nf, hidden_nf, output_nf (residual => O == F)

    k_nodes, k_coord, k_params = jax.random.split(key, 3)
    nodes = jax.random.normal(k_nodes, (N, F), jnp.float32)
    coord = jax.random.normal(k_coord, (N, 3), jnp.float32)

    # fully-connected graph without self loops (E = 240 -> one 256-edge tile)
    rows, cols = [], []
    for i in range(N):
        for j in range(N):
            if i != j:
                rows.append(i)
                cols.append(j)
    row = jnp.array(rows, dtype=jnp.int32)
    col = jnp.array(cols, dtype=jnp.int32)

    params = init_params(k_params, F, O, H)

    nodes_out, coord_out = egcl_forward(nodes, coord, row, col, params)
    jax.block_until_ready((nodes_out, coord_out))

    nodes_ref, coord_ref = egcl_reference(nodes, coord, row, col, params)

    def rel_err(a, b):
        return float(jnp.max(jnp.abs(a - b)) / (jnp.max(jnp.abs(b)) + 1e-6))

    err_n = rel_err(nodes_out, nodes_ref)
    err_c = rel_err(coord_out, coord_ref)
    # bf16 MXU operands with f32 accumulation -> compare at bf16-appropriate tolerance.
    assert err_n < 5e-2, f"nodes mismatch: rel err {err_n}"
    assert err_c < 5e-2, f"coord mismatch: rel err {err_c}"

    print("KERNEL_OK")
</pallas_src>

<mosaic_0001>
module attributes {stable_mosaic.version = 11 : i64} {
  func.func @egcl_kernel(%arg0: i32, %arg1: memref<256x2xi32, #tpu.memory_space<vmem>>, %arg2: memref<16x32xbf16, #tpu.memory_space<vmem>>, %arg3: memref<16x35xf32, #tpu.memory_space<vmem>>, %arg4: memref<32x64xbf16, #tpu.memory_space<vmem>>, %arg5: memref<32x64xbf16, #tpu.memory_space<vmem>>, %arg6: memref<1x32xf32, #tpu.memory_space<vmem>>, %arg7: memref<1x32xf32, #tpu.memory_space<vmem>>, %arg8: memref<1x32xf32, #tpu.memory_space<vmem>>, %arg9: memref<32x32xbf16, #tpu.memory_space<vmem>>, %arg10: memref<1x32xf32, #tpu.memory_space<vmem>>, %arg11: memref<1x32xf32, #tpu.memory_space<vmem>>, %arg12: memref<1x1xf32, #tpu.memory_space<vmem>>, %arg13: memref<32x32xbf16, #tpu.memory_space<vmem>>, %arg14: memref<1x32xf32, #tpu.memory_space<vmem>>, %arg15: memref<1x32xf32, #tpu.memory_space<vmem>>, %arg16: memref<1x1xf32, #tpu.memory_space<vmem>>, %arg17: memref<32x32xbf16, #tpu.memory_space<vmem>>, %arg18: memref<32x32xbf16, #tpu.memory_space<vmem>>, %arg19: memref<1x32xf32, #tpu.memory_space<vmem>>, %arg20: memref<32x32xbf16, #tpu.memory_space<vmem>>, %arg21: memref<1x32xf32, #tpu.memory_space<vmem>>, %arg22: memref<16x35xf32, #tpu.memory_space<vmem>>, %arg23: memref<16x35xf32, #tpu.memory_space<vmem>>, %arg24: memref<256x35xbf16, #tpu.memory_space<vmem>>) attributes {dimension_semantics = [#tpu.dimension_semantics<arbitrary>], iteration_bounds = array<i64: 1>, scalar_prefetch = 0 : i64, scratch_operands = 2 : i64, tpu.core_type = #tpu.core_type<tc>, window_params = [{transform_indices = @transform_0, window_bounds = array<i64: 256, 2>}, {pipeline_mode = #tpu.pipeline_mode<synchronous>, transform_indices = @transform_1, window_bounds = array<i64: 16, 32>}, {pipeline_mode = #tpu.pipeline_mode<synchronous>, transform_indices = @transform_2, window_bounds = array<i64: 16, 35>}, {pipeline_mode = #tpu.pipeline_mode<synchronous>, transform_indices = @transform_3, window_bounds = array<i64: 32, 64>}, {pipeline_mode = #tpu.pipeline_mode<synchronous>, transform_indices = @transform_4, window_bounds = array<i64: 32, 64>}, {pipeline_mode = #tpu.pipeline_mode<synchronous>, transform_indices = @transform_5, window_bounds = array<i64: 1, 32>}, {pipeline_mode = #tpu.pipeline_mode<synchronous>, transform_indices = @transform_6, window_bounds = array<i64: 1, 32>}, {pipeline_mode = #tpu.pipeline_mode<synchronous>, transform_indices = @transform_7, window_bounds = array<i64: 1, 32>}, {pipeline_mode = #tpu.pipeline_mode<synchronous>, transform_indices = @transform_8, window_bounds = array<i64: 32, 32>}, {pipeline_mode = #tpu.pipeline_mode<synchronous>, transform_indices = @transform_9, window_bounds = array<i64: 1, 32>}, {pipeline_mode = #tpu.pipeline_mode<synchronous>, transform_indices = @transform_10, window_bounds = array<i64: 1, 32>}, {pipeline_mode = #tpu.pipeline_mode<synchronous>, transform_indices = @transform_11, window_bounds = array<i64: 1, 1>}, {pipeline_mode = #tpu.pipeline_mode<synchronous>, transform_indices = @transform_12, window_bounds = array<i64: 32, 32>}, {pipeline_mode = #tpu.pipeline_mode<synchronous>, transform_indices = @transform_13, window_bounds = array<i64: 1, 32>}, {pipeline_mode = #tpu.pipeline_mode<synchronous>, transform_indices = @transform_14, window_bounds = array<i64: 1, 32>}, {pipeline_mode = #tpu.pipeline_mode<synchronous>, transform_indices = @transform_15, window_bounds = array<i64: 1, 1>}, {pipeline_mode = #tpu.pipeline_mode<synchronous>, transform_indices = @transform_16, window_bounds = array<i64: 32, 32>}, {pipeline_mode = #tpu.pipeline_mode<synchronous>, transform_indices = @transform_17, window_bounds = array<i64: 32, 32>}, {pipeline_mode = #tpu.pipeline_mode<synchronous>, transform_indices = @transform_18, window_bounds = array<i64: 1, 32>}, {pipeline_mode = #tpu.pipeline_mode<synchronous>, transform_indices = @transform_19, window_bounds = array<i64: 32, 32>}, {pipeline_mode = #tpu.pipeline_mode<synchronous>, transform_indices = @transform_20, window_bounds = array<i64: 1, 32>}, {pipeline_mode = #tpu.pipeline_mode<synchronous>, transform_indices = @transform_21, window_bounds = array<i64: 16, 35>}]} {
    %c0_i32 = arith.constant 0 : i32
    %0 = arith.cmpi eq, %arg0, %c0_i32 : i32
    %1 = arith.extui %0 : i1 to i32
    %c0_i32_0 = arith.constant 0 : i32
    %2 = arith.cmpi ne, %1, %c0_i32_0 : i32
    scf.if %2 {
      %cst_55 = arith.constant 0.000000e+00 : f32
      %103 = vector.broadcast %cst_55 : f32 to vector<16x35xf32>
      %c0_56 = arith.constant 0 : index
      %c0_57 = arith.constant 0 : index
      %104 = vector.load %arg23[%c0_56, %c0_57] : memref<16x35xf32, #tpu.memory_space<vmem>>, vector<16x35xf32>
      tpu.vector_store %arg23[%c0_56, %c0_57], %103 {strides = array<i32>} : memref<16x35xf32, #tpu.memory_space<vmem>>, vector<16x35xf32>,
    } else {
    }
    %3 = tpu.iota {dimensions = array<i32: 1>} : vector<256x16xi32>
    %c0 = arith.constant 0 : index
    %c0_1 = arith.constant 0 : index
    %4 = vector.load %arg1[%c0, %c0_1] : memref<256x2xi32, #tpu.memory_space<vmem>>, vector<256x1xi32>
    %5 = vector.broadcast %4 : vector<256x1xi32> to vector<256x16xi32>
    %6 = arith.cmpi eq, %3, %5 : vector<256x16xi32>
    %7 = arith.extui %6 : vector<256x16xi1> to vector<256x16xi32>
    %8 = arith.sitofp %7 : vector<256x16xi32> to vector<256x16xf32>
    %9 = arith.truncf %8 : vector<256x16xf32> to vector<256x16xbf16>
    %c0_2 = arith.constant 0 : index
    %c1 = arith.constant 1 : index
    %10 = vector.load %arg1[%c0_2, %c1] : memref<256x2xi32, #tpu.memory_space<vmem>>, vector<256x1xi32>
    %11 = vector.broadcast %10 : vector<256x1xi32> to vector<256x16xi32>
    %12 = arith.cmpi eq, %3, %11 : vector<256x16xi32>
    %13 = arith.extui %12 : vector<256x16xi1> to vector<256x16xi32>
    %14 = arith.sitofp %13 : vector<256x16xi32> to vector<256x16xf32>
    %15 = arith.truncf %14 : vector<256x16xf32> to vector<256x16xbf16>
    %c0_3 = arith.constant 0 : index
    %c0_4 = arith.constant 0 : index
    %16 = vector.load %arg2[%c0_3, %c0_4] : memref<16x32xbf16, #tpu.memory_space<vmem>>, vector<16x32xbf16>
    %cst = arith.constant dense<0.000000e+00> : vector<256x32xf32>
    %17 = tpu.matmul %9, %16, %cst {dimension_numbers = #tpu.dot_dimension_numbers<[1], [0], [0], [1], [0, 0, 1, 1], [], []>} : vector<256x16xbf16>, vector<16x32xbf16>, vector<256x32xf32> -> vector<256x32xf32>
    %cst_5 = arith.constant dense<0.000000e+00> : vector<256x32xf32>
    %18 = tpu.matmul %15, %16, %cst_5 {dimension_numbers = #tpu.dot_dimension_numbers<[1], [0], [0], [1], [0, 0, 1, 1], [], []>} : vector<256x16xbf16>, vector<16x32xbf16>, vector<256x32xf32> -> vector<256x32xf32>
    %c0_6 = arith.constant 0 : index
    %c32 = arith.constant 32 : index
    %19 = vector.load %arg3[%c0_6, %c32] : memref<16x35xf32, #tpu.memory_space<vmem>>, vector<16x3xf32>
    %20 = arith.subf %9, %15 : vector<256x16xbf16>
    %21 = arith.extf %20 : vector<256x16xbf16> to vector<256x16xf32>
    %cst_7 = arith.constant dense<0.000000e+00> : vector<256x3xf32>
    %22 = tpu.matmul %21, %19, %cst_7 {dimension_numbers = #tpu.dot_dimension_numbers<[1], [0], [0], [1], [0, 0, 1, 1], [], []>} : vector<256x16xf32>, vector<16x3xf32>, vector<256x3xf32> -> vector<256x3xf32>
    %23 = arith.mulf %22, %22 : vector<256x3xf32>
    %cst_8 = arith.constant dense<0.000000e+00> : vector<256xf32>
    %24 = vector.multi_reduction <add>, %23, %cst_8 [1] : vector<256x3xf32> to vector<256xf32>
    %25 = vector.shape_cast %24 : vector<256xf32> to vector<256x1xf32>
    %26 = arith.truncf %17 : vector<256x32xf32> to vector<256x32xbf16>
    %c0_9 = arith.constant 0 : index
    %c0_10 = arith.constant 0 : index
    %27 = vector.load %arg4[%c0_9, %c0_10] : memref<32x64xbf16, #tpu.memory_space<vmem>>, vector<32x64xbf16>
    %cst_11 = arith.constant dense<0.000000e+00> : vector<256x64xf32>
    %28 = tpu.matmul %26, %27, %cst_11 {dimension_numbers = #tpu.dot_dimension_numbers<[1], [0], [0], [1], [0, 0, 1, 1], [], []>} : vector<256x32xbf16>, vector<32x64xbf16>, vector<256x64xf32> -> vector<256x64xf32>
    %29 = arith.truncf %18 : vector<256x32xf32> to vector<256x32xbf16>
    %c0_12 = arith.constant 0 : index
    %c0_13 = arith.constant 0 : index
    %30 = vector.load %arg5[%c0_12, %c0_13] : memref<32x64xbf16, #tpu.memory_space<vmem>>, vector<32x64xbf16>
    %cst_14 = arith.constant dense<0.000000e+00> : vector<256x64xf32>
    %31 = tpu.matmul %29, %30, %cst_14 {dimension_numbers = #tpu.dot_dimension_numbers<[1], [0], [0], [1], [0, 0, 1, 1], [], []>} : vector<256x32xbf16>, vector<32x64xbf16>, vector<256x64xf32> -> vector<256x64xf32>
    %32 = arith.addf %28, %31 : vector<256x64xf32>
    %33 = vector.extract_strided_slice %32 {offsets = [0, 0], sizes = [256, 32], strides = [1, 1]} : vector<256x64xf32> to vector<256x32xf32>
    %c0_15 = arith.constant 0 : index
    %c0_16 = arith.constant 0 : index
    %34 = vector.load %arg6[%c0_15, %c0_16] : memref<1x32xf32, #tpu.memory_space<vmem>>, vector<1x32xf32>
    %35 = vector.broadcast %25 : vector<256x1xf32> to vector<256x32xf32>
    %36 = vector.broadcast %34 : vector<1x32xf32> to vector<256x32xf32>
    %37 = arith.mulf %35, %36 : vector<256x32xf32>
    %38 = arith.addf %33, %37 : vector<256x32xf32>
    %c0_17 = arith.constant 0 : index
    %c0_18 = arith.constant 0 : index
    %39 = vector.load %arg7[%c0_17, %c0_18] : memref<1x32xf32, #tpu.memory_space<vmem>>, vector<1x32xf32>
    %40 = vector.broadcast %39 : vector<1x32xf32> to vector<256x32xf32>
    %41 = arith.addf %38, %40 : vector<256x32xf32>
    %42 = math.tanh %41 : vector<256x32xf32>
    %43 = arith.subf %41, %42 : vector<256x32xf32>
    %44 = arith.truncf %43 : vector<256x32xf32> to vector<256x32xbf16>
    %c0_19 = arith.constant 0 : index
    %c0_20 = arith.constant 0 : index
    %45 = vector.load %arg9[%c0_19, %c0_20] : memref<32x32xbf16, #tpu.memory_space<vmem>>, vector<32x32xbf16>
    %cst_21 = arith.constant dense<0.000000e+00> : vector<256x32xf32>
    %46 = tpu.matmul %44, %45, %cst_21 {dimension_numbers = #tpu.dot_dimension_numbers<[1], [0], [0], [1], [0, 0, 1, 1], [], []>} : vector<256x32xbf16>, vector<32x32xbf16>, vector<256x32xf32> -> vector<256x32xf32>
    %c0_22 = arith.constant 0 : index
    %c0_23 = arith.constant 0 : index
    %47 = vector.load %arg10[%c0_22, %c0_23] : memref<1x32xf32, #tpu.memory_space<vmem>>, vector<1x32xf32>
    %48 = vector.broadcast %47 : vector<1x32xf32> to vector<256x32xf32>
    %49 = arith.addf %46, %48 : vector<256x32xf32>
    %50 = math.tanh %49 : vector<256x32xf32>
    %51 = arith.subf %49, %50 : vector<256x32xf32>
    %52 = vector.extract_strided_slice %32 {offsets = [0, 32], sizes = [256, 32], strides = [1, 1]} : vector<256x64xf32> to vector<256x32xf32>
    %c0_24 = arith.constant 0 : index
    %c0_25 = arith.constant 0 : index
    %53 = vector.load %arg8[%c0_24, %c0_25] : memref<1x32xf32, #tpu.memory_space<vmem>>, vector<1x32xf32>
    %54 = vector.broadcast %53 : vector<1x32xf32> to vector<256x32xf32>
    %55 = arith.addf %52, %54 : vector<256x32xf32>
    %56 = math.tanh %55 : vector<256x32xf32>
    %57 = arith.subf %55, %56 : vector<256x32xf32>
    %c0_26 = arith.constant 0 : index
    %c0_27 = arith.constant 0 : index
    %58 = vector.load %arg11[%c0_26, %c0_27] : memref<1x32xf32, #tpu.memory_space<vmem>>, vector<1x32xf32>
    %59 = vector.broadcast %58 : vector<1x32xf32> to vector<256x32xf32>
    %60 = arith.mulf %57, %59 : vector<256x32xf32>
    %cst_28 = arith.constant dense<0.000000e+00> : vector<256xf32>
    %61 = vector.multi_reduction <add>, %60, %cst_28 [1] : vector<256x32xf32> to vector<256xf32>
    %62 = vector.shape_cast %61 : vector<256xf32> to vector<256x1xf32>
    %c0_29 = arith.constant 0 : index
    %c0_30 = arith.constant 0 : index
    %63 = vector.load %arg12[%c0_29, %c0_30] : memref<1x1xf32, #tpu.memory_space<vmem>>, vector<1x1xf32>
    %64 = vector.broadcast %63 : vector<1x1xf32> to vector<256x1xf32>
    %65 = arith.addf %62, %64 : vector<256x1xf32>
    %66 = arith.negf %65 : vector<256x1xf32>
    %67 = math.exp %66 : vector<256x1xf32>
    %cst_31 = arith.constant 1.000000e+00 : f32
    %68 = vector.broadcast %cst_31 : f32 to vector<256x1xf32>
    %69 = arith.addf %68, %67 : vector<256x1xf32>
    %70 = arith.divf %68, %69 : vector<256x1xf32>
    %71 = vector.broadcast %70 : vector<256x1xf32> to vector<256x32xf32>
    %72 = arith.mulf %51, %71 : vector<256x32xf32>
    %73 = arith.truncf %72 : vector<256x32xf32> to vector<256x32xbf16>
    %c0_32 = arith.constant 0 : index
    %c0_33 = arith.constant 0 : index
    %74 = vector.load %arg13[%c0_32, %c0_33] : memref<32x32xbf16, #tpu.memory_space<vmem>>, vector<32x32xbf16>
    %cst_34 = arith.constant dense<0.000000e+00> : vector<256x32xf32>
    %75 = tpu.matmul %73, %74, %cst_34 {dimension_numbers = #tpu.dot_dimension_numbers<[1], [0], [0], [1], [0, 0, 1, 1], [], []>} : vector<256x32xbf16>, vector<32x32xbf16>, vector<256x32xf32> -> vector<256x32xf32>
    %c0_35 = arith.constant 0 : index
    %c0_36 = arith.constant 0 : index
    %76 = vector.load %arg14[%c0_35, %c0_36] : memref<1x32xf32, #tpu.memory_space<vmem>>, vector<1x32xf32>
    %77 = vector.broadcast %76 : vector<1x32xf32> to vector<256x32xf32>
    %78 = arith.addf %75, %77 : vector<256x32xf32>
    %79 = math.tanh %78 : vector<256x32xf32>
    %80 = arith.subf %78, %79 : vector<256x32xf32>
    %c0_37 = arith.constant 0 : index
    %c0_38 = arith.constant 0 : index
    %81 = vector.load %arg15[%c0_37, %c0_38] : memref<1x32xf32, #tpu.memory_space<vmem>>, vector<1x32xf32>
    %82 = vector.broadcast %81 : vector<1x32xf32> to vector<256x32xf32>
    %83 = arith.mulf %80, %82 : vector<256x32xf32>
    %cst_39 = arith.constant dense<0.000000e+00> : vector<256xf32>
    %84 = vector.multi_reduction <add>, %83, %cst_39 [1] : vector<256x32xf32> to vector<256xf32>
    %85 = vector.shape_cast %84 : vector<256xf32> to vector<256x1xf32>
    %c0_40 = arith.constant 0 : index
    %c0_41 = arith.constant 0 : index
    %86 = vector.load %arg16[%c0_40, %c0_41] : memref<1x1xf32, #tpu.memory_space<vmem>>, vector<1x1xf32>
    %87 = vector.broadcast %86 : vector<1x1xf32> to vector<256x1xf32>
    %88 = arith.addf %85, %87 : vector<256x1xf32>
    %89 = vector.broadcast %88 : vector<256x1xf32> to vector<256x3xf32>
    %90 = arith.mulf %22, %89 : vector<256x3xf32>
    %91 = arith.truncf %72 : vector<256x32xf32> to vector<256x32xbf16>
    %c0_42 = arith.constant 0 : index
    %c0_43 = arith.constant 0 : index
    %92 = vector.load %arg24[%c0_42, %c0_43] : memref<256x35xbf16, #tpu.memory_space<vmem>>, vector<256x32xbf16>
    tpu.vector_store %arg24[%c0_42, %c0_43], %91 {strides = array<i32>} : memref<256x35xbf16, #tpu.memory_space<vmem>>, vector<256x32xbf16>,
    %93 = arith.truncf %90 : vector<256x3xf32> to vector<256x3xbf16>
    %c0_44 = arith.constant 0 : index
    %c32_45 = arith.constant 32 : index
    %94 = vector.load %arg24[%c0_44, %c32_45] : memref<256x35xbf16, #tpu.memory_space<vmem>>, vector<256x3xbf16>
    tpu.vector_store %arg24[%c0_44, %c32_45], %93 {strides = array<i32>} : memref<256x35xbf16, #tpu.memory_space<vmem>>, vector<256x3xbf16>,
    %c0_46 = arith.constant 0 : index
    %c0_47 = arith.constant 0 : index
    %95 = vector.load %arg23[%c0_46, %c0_47] : memref<16x35xf32, #tpu.memory_space<vmem>>, vector<16x35xf32>
    %c0_48 = arith.constant 0 : index
    %c0_49 = arith.constant 0 : index
    %96 = vector.load %arg24[%c0_48, %c0_49] : memref<256x35xbf16, #tpu.memory_space<vmem>>, vector<256x35xbf16>
    %cst_50 = arith.constant dense<0.000000e+00> : vector<16x35xf32>
    %97 = tpu.matmul %9, %96, %cst_50 {dimension_numbers = #tpu.dot_dimension_numbers<[0], [0], [1], [1], [0, 1, 1, 1], [], []>} : vector<256x16xbf16>, vector<256x35xbf16>, vector<16x35xf32> -> vector<16x35xf32>
    %98 = arith.addf %95, %97 : vector<16x35xf32>
    %c0_51 = arith.constant 0 : index
    %c0_52 = arith.constant 0 : index
    %99 = vector.load %arg23[%c0_51, %c0_52] : memref<16x35xf32, #tpu.memory_space<vmem>>, vector<16x35xf32>
    tpu.vector_store %arg23[%c0_51, %c0_52], %98 {strides = array<i32>} : memref<16x35xf32, #tpu.memory_space<vmem>>, vector<16x35xf32>,
    %c0_i32_53 = arith.constant 0 : i32
    %100 = arith.cmpi eq, %arg0, %c0_i32_53 : i32
    %101 = arith.extui %100 : i1 to i32
    %c0_i32_54 = arith.constant 0 : i32
    %102 = arith.cmpi ne, %101, %c0_i32_54 : i32
    scf.if %102 {
      %c0_55 = arith.constant 0 : index
      %c0_56 = arith.constant 0 : index
      %103 = vector.load %arg23[%c0_55, %c0_56] : memref<16x35xf32, #tpu.memory_space<vmem>>, vector<16x35xf32>
      %104 = vector.extract_strided_slice %103 {offsets = [0, 0], sizes = [16, 32], strides = [1, 1]} : vector<16x35xf32> to vector<16x32xf32>
      %105 = vector.extract_strided_slice %103 {offsets = [0, 32], sizes = [16, 3], strides = [1, 1]} : vector<16x35xf32> to vector<16x3xf32>
      %c0_57 = arith.constant 0 : index
      %c0_58 = arith.constant 0 : index
      %106 = vector.load %arg2[%c0_57, %c0_58] : memref<16x32xbf16, #tpu.memory_space<vmem>>, vector<16x32xbf16>
      %c0_59 = arith.constant 0 : index
      %c0_60 = arith.constant 0 : index
      %107 = vector.load %arg17[%c0_59, %c0_60] : memref<32x32xbf16, #tpu.memory_space<vmem>>, vector<32x32xbf16>
      %cst_61 = arith.constant dense<0.000000e+00> : vector<16x32xf32>
      %108 = tpu.matmul %106, %107, %cst_61 {dimension_numbers = #tpu.dot_dimension_numbers<[1], [0], [0], [1], [0, 0, 1, 1], [], []>} : vector<16x32xbf16>, vector<32x32xbf16>, vector<16x32xf32> -> vector<16x32xf32>
      %109 = arith.truncf %104 : vector<16x32xf32> to vector<16x32xbf16>
      %c0_62 = arith.constant 0 : index
      %c0_63 = arith.constant 0 : index
      %110 = vector.load %arg18[%c0_62, %c0_63] : memref<32x32xbf16, #tpu.memory_space<vmem>>, vector<32x32xbf16>
      %cst_64 = arith.constant dense<0.000000e+00> : vector<16x32xf32>
      %111 = tpu.matmul %109, %110, %cst_64 {dimension_numbers = #tpu.dot_dimension_numbers<[1], [0], [0], [1], [0, 0, 1, 1], [], []>} : vector<16x32xbf16>, vector<32x32xbf16>, vector<16x32xf32> -> vector<16x32xf32>
      %112 = arith.addf %108, %111 : vector<16x32xf32>
      %c0_65 = arith.constant 0 : index
      %c0_66 = arith.constant 0 : index
      %113 = vector.load %arg19[%c0_65, %c0_66] : memref<1x32xf32, #tpu.memory_space<vmem>>, vector<1x32xf32>
      %114 = vector.broadcast %113 : vector<1x32xf32> to vector<16x32xf32>
      %115 = arith.addf %112, %114 : vector<16x32xf32>
      %116 = math.tanh %115 : vector<16x32xf32>
      %117 = arith.subf %115, %116 : vector<16x32xf32>
      %118 = arith.truncf %117 : vector<16x32xf32> to vector<16x32xbf16>
      %c0_67 = arith.constant 0 : index
      %c0_68 = arith.constant 0 : index
      %119 = vector.load %arg20[%c0_67, %c0_68] : memref<32x32xbf16, #tpu.memory_space<vmem>>, vector<32x32xbf16>
      %cst_69 = arith.constant dense<0.000000e+00> : vector<16x32xf32>
      %120 = tpu.matmul %118, %119, %cst_69 {dimension_numbers = #tpu.dot_dimension_numbers<[1], [0], [0], [1], [0, 0, 1, 1], [], []>} : vector<16x32xbf16>, vector<32x32xbf16>, vector<16x32xf32> -> vector<16x32xf32>
      %c0_70 = arith.constant 0 : index
      %c0_71 = arith.constant 0 : index
      %121 = vector.load %arg21[%c0_70, %c0_71] : memref<1x32xf32, #tpu.memory_space<vmem>>, vector<1x32xf32>
      %122 = vector.broadcast %121 : vector<1x32xf32> to vector<16x32xf32>
      %123 = arith.addf %120, %122 : vector<16x32xf32>
      %c0_72 = arith.constant 0 : index
      %c0_73 = arith.constant 0 : index
      %124 = vector.load %arg3[%c0_72, %c0_73] : memref<16x35xf32, #tpu.memory_space<vmem>>, vector<16x32xf32>
      %125 = arith.addf %124, %123 : vector<16x32xf32>
      %c0_74 = arith.constant 0 : index
      %c0_75 = arith.constant 0 : index
      %126 = vector.load %arg22[%c0_74, %c0_75] : memref<16x35xf32, #tpu.memory_space<vmem>>, vector<16x32xf32>
      tpu.vector_store %arg22[%c0_74, %c0_75], %125 {strides = array<i32>} : memref<16x35xf32, #tpu.memory_space<vmem>>, vector<16x32xf32>,
      %c0_76 = arith.constant 0 : index
      %c32_77 = arith.constant 32 : index
      %127 = vector.load %arg3[%c0_76, %c32_77] : memref<16x35xf32, #tpu.memory_space<vmem>>, vector<16x3xf32>
      %128 = arith.addf %127, %105 : vector<16x3xf32>
      %c0_78 = arith.constant 0 : index
      %c32_79 = arith.constant 32 : index
      %129 = vector.load %arg22[%c0_78, %c32_79] : memref<16x35xf32, #tpu.memory_space<vmem>>, vector<16x3xf32>
      tpu.vector_store %arg22[%c0_78, %c32_79], %128 {strides = array<i32>} : memref<16x35xf32, #tpu.memory_space<vmem>>, vector<16x3xf32>,
    } else {
    }
    return
  }
  func.func @transform_0(%arg0: i32) -> (i32, i32) {
    %c0_i32 = arith.constant 0 : i32
    %c0_i32_0 = arith.constant 0 : i32
    return %arg0, %c0_i32 : i32, i32
  }
  func.func @transform_1(%arg0: i32) -> (i32, i32) {
    %c0_i32 = arith.constant 0 : i32
    %c0_i32_0 = arith.constant 0 : i32
    %c0_i32_1 = arith.constant 0 : i32
    return %c0_i32, %c0_i32_0 : i32, i32
  }
  func.func @transform_2(%arg0: i32) -> (i32, i32) {
    %c0_i32 = arith.constant 0 : i32
    %c0_i32_0 = arith.constant 0 : i32
    %c0_i32_1 = arith.constant 0 : i32
    return %c0_i32, %c0_i32_0 : i32, i32
  }
  func.func @transform_3(%arg0: i32) -> (i32, i32) {
    %c0_i32 = arith.constant 0 : i32
    %c0_i32_0 = arith.constant 0 : i32
    %c0_i32_1 = arith.constant 0 : i32
    return %c0_i32, %c0_i32_0 : i32, i32
  }
  func.func @transform_4(%arg0: i32) -> (i32, i32) {
    %c0_i32 = arith.constant 0 : i32
    %c0_i32_0 = arith.constant 0 : i32
    %c0_i32_1 = arith.constant 0 : i32
    return %c0_i32, %c0_i32_0 : i32, i32
  }
  func.func @transform_5(%arg0: i32) -> (i32, i32) {
    %c0_i32 = arith.constant 0 : i32
    %c0_i32_0 = arith.constant 0 : i32
    %c0_i32_1 = arith.constant 0 : i32
    return %c0_i32, %c0_i32_0 : i32, i32
  }
  func.func @transform_6(%arg0: i32) -> (i32, i32) {
    %c0_i32 = arith.constant 0 : i32
    %c0_i32_0 = arith.constant 0 : i32
    %c0_i32_1 = arith.constant 0 : i32
    return %c0_i32, %c0_i32_0 : i32, i32
  }
  func.func @transform_7(%arg0: i32) -> (i32, i32) {
    %c0_i32 = arith.constant 0 : i32
    %c0_i32_0 = arith.constant 0 : i32
    %c0_i32_1 = arith.constant 0 : i32
    return %c0_i32, %c0_i32_0 : i32, i32
  }
  func.func @transform_8(%arg0: i32) -> (i32, i32) {
    %c0_i32 = arith.constant 0 : i32
    %c0_i32_0 = arith.constant 0 : i32
    %c0_i32_1 = arith.constant 0 : i32
    return %c0_i32, %c0_i32_0 : i32, i32
  }
  func.func @transform_9(%arg0: i32) -> (i32, i32) {
    %c0_i32 = arith.constant 0 : i32
    %c0_i32_0 = arith.constant 0 : i32
    %c0_i32_1 = arith.constant 0 : i32
    return %c0_i32, %c0_i32_0 : i32, i32
  }
  func.func @transform_10(%arg0: i32) -> (i32, i32) {
    %c0_i32 = arith.constant 0 : i32
    %c0_i32_0 = arith.constant 0 : i32
    %c0_i32_1 = arith.constant 0 : i32
    return %c0_i32, %c0_i32_0 : i32, i32
  }
  func.func @transform_11(%arg0: i32) -> (i32, i32) {
    %c0_i32 = arith.constant 0 : i32
    %c0_i32_0 = arith.constant 0 : i32
    %c0_i32_1 = arith.constant 0 : i32
    return %c0_i32, %c0_i32_0 : i32, i32
  }
  func.func @transform_12(%arg0: i32) -> (i32, i32) {
    %c0_i32 = arith.constant 0 : i32
    %c0_i32_0 = arith.constant 0 : i32
    %c0_i32_1 = arith.constant 0 : i32
    return %c0_i32, %c0_i32_0 : i32, i32
  }
  func.func @transform_13(%arg0: i32) -> (i32, i32) {
    %c0_i32 = arith.constant 0 : i32
    %c0_i32_0 = arith.constant 0 : i32
    %c0_i32_1 = arith.constant 0 : i32
    return %c0_i32, %c0_i32_0 : i32, i32
  }
  func.func @transform_14(%arg0: i32) -> (i32, i32) {
    %c0_i32 = arith.constant 0 : i32
    %c0_i32_0 = arith.constant 0 : i32
    %c0_i32_1 = arith.constant 0 : i32
    return %c0_i32, %c0_i32_0 : i32, i32
  }
  func.func @transform_15(%arg0: i32) -> (i32, i32) {
    %c0_i32 = arith.constant 0 : i32
    %c0_i32_0 = arith.constant 0 : i32
    %c0_i32_1 = arith.constant 0 : i32
    return %c0_i32, %c0_i32_0 : i32, i32
  }
  func.func @transform_16(%arg0: i32) -> (i32, i32) {
    %c0_i32 = arith.constant 0 : i32
    %c0_i32_0 = arith.constant 0 : i32
    %c0_i32_1 = arith.constant 0 : i32
    return %c0_i32, %c0_i32_0 : i32, i32
  }
  func.func @transform_17(%arg0: i32) -> (i32, i32) {
    %c0_i32 = arith.constant 0 : i32
    %c0_i32_0 = arith.constant 0 : i32
    %c0_i32_1 = arith.constant 0 : i32
    return %c0_i32, %c0_i32_0 : i32, i32
  }
  func.func @transform_18(%arg0: i32) -> (i32, i32) {
    %c0_i32 = arith.constant 0 : i32
    %c0_i32_0 = arith.constant 0 : i32
    %c0_i32_1 = arith.constant 0 : i32
    return %c0_i32, %c0_i32_0 : i32, i32
  }
  func.func @transform_19(%arg0: i32) -> (i32, i32) {
    %c0_i32 = arith.constant 0 : i32
    %c0_i32_0 = arith.constant 0 : i32
    %c0_i32_1 = arith.constant 0 : i32
    return %c0_i32, %c0_i32_0 : i32, i32
  }
  func.func @transform_20(%arg0: i32) -> (i32, i32) {
    %c0_i32 = arith.constant 0 : i32
    %c0_i32_0 = arith.constant 0 : i32
    %c0_i32_1 = arith.constant 0 : i32
    return %c0_i32, %c0_i32_0 : i32, i32
  }
  func.func @transform_21(%arg0: i32) -> (i32, i32) {
    %c0_i32 = arith.constant 0 : i32
    %c0_i32_0 = arith.constant 0 : i32
    %c0_i32_1 = arith.constant 0 : i32
    return %c0_i32, %c0_i32_0 : i32, i32
  }
}

</mosaic_0001>

<llo_original>
// kernel: tpu_custom_call.1
$region0: #{tpu_custom_call.1}
  #allocation0 [shape = 'u32[]', space=smem, size = 0x4, offset = 0x4, fixed_abs, tag = 'smem constant byte address 0x4 - core index']
  #allocation1 [shape = 'u32[144,128]{1,0:T(1,128)}', space=vmem, size = 0x12000, scoped, tag = 'internal scratch']
  #allocation2 [shape = 'f32[16,35]{1,0:T(8,128)}', space=vmem, size = 0x2000, scoped, tag = 'scratch operand']
  #allocation3 [shape = 'bf16[256,35]{1,0:T(8,128)(2,1)}', space=vmem, size = 0x10000, scoped, tag = 'scratch operand']
  #allocation4 [shape = 'f32[1,1]{1,0:T(1,128)S(1)}', space=vmem, size = 0x200, scoped, tag = 'scoped memory for tpu_custom_call.1']
  #allocation5 [shape = 'f32[1,1]{1,0:T(1,128)S(1)}', space=vmem, size = 0x200, scoped, tag = 'scoped memory for tpu_custom_call.1']
  %s0 = inlined_call_operand.vmem [shape: s32[256,2], index: 0, kind: input, shape index: {}]
  %s1 = inlined_call_operand.vmem [shape: bf16[16,32], index: 1, kind: input, shape index: {}]
  %s2 = inlined_call_operand.vmem [shape: f32[16,35], index: 2, kind: input, shape index: {}]
  %s3 = inlined_call_operand.vmem [shape: bf16[32,64], index: 3, kind: input, shape index: {}]
  %s4 = inlined_call_operand.vmem [shape: bf16[32,64], index: 4, kind: input, shape index: {}]
  %s5 = inlined_call_operand.vmem [shape: f32[1,32], index: 5, kind: input, shape index: {}]
  %s6 = inlined_call_operand.vmem [shape: f32[1,32], index: 6, kind: input, shape index: {}]
  %s7 = inlined_call_operand.vmem [shape: f32[1,32], index: 7, kind: input, shape index: {}]
  %s8 = inlined_call_operand.vmem [shape: bf16[32,32], index: 8, kind: input, shape index: {}]
  %s9 = inlined_call_operand.vmem [shape: f32[1,32], index: 9, kind: input, shape index: {}]
  %s10 = inlined_call_operand.vmem [shape: f32[1,32], index: 10, kind: input, shape index: {}]
  %s11 = inlined_call_operand.<no memory space> [shape: f32[1,1], index: 11, kind: input, shape index: {}]
  %s12 = inlined_call_operand.vmem [shape: bf16[32,32], index: 12, kind: input, shape index: {}]
  %s13 = inlined_call_operand.vmem [shape: f32[1,32], index: 13, kind: input, shape index: {}]
  %s14 = inlined_call_operand.vmem [shape: f32[1,32], index: 14, kind: input, shape index: {}]
  %s15 = inlined_call_operand.<no memory space> [shape: f32[1,1], index: 15, kind: input, shape index: {}]
  %s16 = inlined_call_operand.vmem [shape: bf16[32,32], index: 16, kind: input, shape index: {}]
  %s17 = inlined_call_operand.vmem [shape: bf16[32,32], index: 17, kind: input, shape index: {}]
  %s18 = inlined_call_operand.vmem [shape: f32[1,32], index: 18, kind: input, shape index: {}]
  %s19 = inlined_call_operand.vmem [shape: bf16[32,32], index: 19, kind: input, shape index: {}]
  %s20 = inlined_call_operand.vmem [shape: f32[1,32], index: 20, kind: input, shape index: {}]
  %s21 = inlined_call_operand.hbm [shape: f32[16,35], index: 21, kind: output, shape index: {}]
  %s22 = sld [smem:[#allocation0]]
  $region102: #{tpu_custom_call.1} parent=0
    _
  %s24 = ssub.s32 1, %s22
  %s25 = scalar_select 0, %s24, %s22
  %v26 = vstv %s11
  %27 = vst [vmem:[#allocation4] sm:$0x1] %v26
  %v28 = vstv %s15
  %29 = vst [vmem:[#allocation5] sm:$0x1] %v28
  $region1: #{tpu_custom_call.1} parent=0
    #allocation6 [shape = 'u8[8192]{0}', space=vmem, size = 0x2000, scoped, tag = 'output window, operand 0, single buffered']
    #allocation7 [shape = 's32[1]{0}', space=sflag, size = 0x4, scoped, tag = 'scoped memory for tpu_custom_call.1']
    %30 = vsyncpa [#allocation7], 0
    // Predicated region
    $region2: #{tpu_custom_call.1} parent=1 // pred_check
      _
    $region3: #{tpu_custom_call.1} parent=1 // pred_check_branch
      %32 = sbr.rel (0) target = $region5
    $region4: #{tpu_custom_call.1} parent=1 // pred_region
      _
    $region5: #{tpu_custom_call.1} parent=1 // pred_fallthru
      _
    // Predicated region
    $region6: #{tpu_custom_call.1} parent=1 // pred_check
      _
    $region7: #{tpu_custom_call.1} parent=1 // pred_check_branch
      %34 = sbr.rel (0) target = $region9
    $region8: #{tpu_custom_call.1} parent=1 // pred_region
      _
    $region9: #{tpu_custom_call.1} parent=1 // pred_fallthru
      _
    // Predicated region
    $region10: #{tpu_custom_call.1} parent=1 // pred_check
      _
    $region11: #{tpu_custom_call.1} parent=1 // pred_check_branch
      %36 = sbr.rel (0) target = $region13
    $region12: #{tpu_custom_call.1} parent=1 // pred_region
      _
    $region13: #{tpu_custom_call.1} parent=1 // pred_fallthru
      _
    // Predicated region
    $region14: #{tpu_custom_call.1} parent=1 // pred_check
      _
    $region15: #{tpu_custom_call.1} parent=1 // pred_check_branch
      %38 = sbr.rel (0) target = $region17
    $region16: #{tpu_custom_call.1} parent=1 // pred_region
      _
    $region17: #{tpu_custom_call.1} parent=1 // pred_fallthru
      _
    // Predicated region
    $region18: #{tpu_custom_call.1} parent=1 // pred_check
      _
    $region19: #{tpu_custom_call.1} parent=1 // pred_check_branch
      %40 = sbr.rel (0) target = $region21
    $region20: #{tpu_custom_call.1} parent=1 // pred_region
      _
    $region21: #{tpu_custom_call.1} parent=1 // pred_fallthru
      _
    // Predicated region
    $region22: #{tpu_custom_call.1} parent=1 // pred_check
      _
    $region23: #{tpu_custom_call.1} parent=1 // pred_check_branch
      %42 = sbr.rel (0) target = $region25
    $region24: #{tpu_custom_call.1} parent=1 // pred_region
      _
    $region25: #{tpu_custom_call.1} parent=1 // pred_fallthru
      _
    // Predicated region
    $region26: #{tpu_custom_call.1} parent=1 // pred_check
      _
    $region27: #{tpu_custom_call.1} parent=1 // pred_check_branch
      %44 = sbr.rel (0) target = $region29
    $region28: #{tpu_custom_call.1} parent=1 // pred_region
      _
    $region29: #{tpu_custom_call.1} parent=1 // pred_fallthru
      _
    // Predicated region
    $region30: #{tpu_custom_call.1} parent=1 // pred_check
      _
    $region31: #{tpu_custom_call.1} parent=1 // pred_check_branch
      %46 = sbr.rel (0) target = $region33
    $region32: #{tpu_custom_call.1} parent=1 // pred_region
      _
    $region33: #{tpu_custom_call.1} parent=1 // pred_fallthru
      _
    // Predicated region
    $region34: #{tpu_custom_call.1} parent=1 // pred_check
      _
    $region35: #{tpu_custom_call.1} parent=1 // pred_check_branch
      %48 = sbr.rel (0) target = $region37
    $region36: #{tpu_custom_call.1} parent=1 // pred_region
      _
    $region37: #{tpu_custom_call.1} parent=1 // pred_fallthru
      _
    // Predicated region
    $region38: #{tpu_custom_call.1} parent=1 // pred_check
      _
    $region39: #{tpu_custom_call.1} parent=1 // pred_check_branch
      %50 = sbr.rel (0) target = $region41
    $region40: #{tpu_custom_call.1} parent=1 // pred_region
      _
    $region41: #{tpu_custom_call.1} parent=1 // pred_fallthru
      _
    // Predicated region
    $region42: #{tpu_custom_call.1} parent=1 // pred_check
      _
    $region43: #{tpu_custom_call.1} parent=1 // pred_check_branch
      %52 = sbr.rel (0) target = $region45
    $region44: #{tpu_custom_call.1} parent=1 // pred_region
      _
    $region45: #{tpu_custom_call.1} parent=1 // pred_fallthru
      _
    // Predicated region
    $region46: #{tpu_custom_call.1} parent=1 // pred_check
      _
    $region47: #{tpu_custom_call.1} parent=1 // pred_check_branch
      %54 = sbr.rel (0) target = $region49
    $region48: #{tpu_custom_call.1} parent=1 // pred_region
      _
    $region49: #{tpu_custom_call.1} parent=1 // pred_fallthru
      _
    // Predicated region
    $region50: #{tpu_custom_call.1} parent=1 // pred_check
      _
    $region51: #{tpu_custom_call.1} parent=1 // pred_check_branch
      %56 = sbr.rel (0) target = $region53
    $region52: #{tpu_custom_call.1} parent=1 // pred_region
      _
    $region53: #{tpu_custom_call.1} parent=1 // pred_fallthru
      _
    // Predicated region
    $region54: #{tpu_custom_call.1} parent=1 // pred_check
      _
    $region55: #{tpu_custom_call.1} parent=1 // pred_check_branch
      %58 = sbr.rel (0) target = $region57
    $region56: #{tpu_custom_call.1} parent=1 // pred_region
      _
    $region57: #{tpu_custom_call.1} parent=1 // pred_fallthru
      _
    // Predicated region
    $region58: #{tpu_custom_call.1} parent=1 // pred_check
      _
    $region59: #{tpu_custom_call.1} parent=1 // pred_check_branch
      %60 = sbr.rel (0) target = $region61
    $region60: #{tpu_custom_call.1} parent=1 // pred_region
      _
    $region61: #{tpu_custom_call.1} parent=1 // pred_fallthru
      _
    // Predicated region
    $region62: #{tpu_custom_call.1} parent=1 // pred_check
      _
    $region63: #{tpu_custom_call.1} parent=1 // pred_check_branch
      %62 = sbr.rel (0) target = $region65
    $region64: #{tpu_custom_call.1} parent=1 // pred_region
      _
    $region65: #{tpu_custom_call.1} parent=1 // pred_fallthru
      _
    // Predicated region
    $region66: #{tpu_custom_call.1} parent=1 // pred_check
      _
    $region67: #{tpu_custom_call.1} parent=1 // pred_check_branch
      %64 = sbr.rel (0) target = $region69
    $region68: #{tpu_custom_call.1} parent=1 // pred_region
      _
    $region69: #{tpu_custom_call.1} parent=1 // pred_fallthru
      _
    // Predicated region
    $region70: #{tpu_custom_call.1} parent=1 // pred_check
      _
    $region71: #{tpu_custom_call.1} parent=1 // pred_check_branch
      %66 = sbr.rel (0) target = $region73
    $region72: #{tpu_custom_call.1} parent=1 // pred_region
      _
    $region73: #{tpu_custom_call.1} parent=1 // pred_fallthru
      _
    // Predicated region
    $region74: #{tpu_custom_call.1} parent=1 // pred_check
      _
    $region75: #{tpu_custom_call.1} parent=1 // pred_check_branch
      %68 = sbr.rel (0) target = $region77
    $region76: #{tpu_custom_call.1} parent=1 // pred_region
      _
    $region77: #{tpu_custom_call.1} parent=1 // pred_fallthru
      _
    // Predicated region
    $region78: #{tpu_custom_call.1} parent=1 // pred_check
      _
    $region79: #{tpu_custom_call.1} parent=1 // pred_check_branch
      %70 = sbr.rel (0) target = $region81
    $region80: #{tpu_custom_call.1} parent=1 // pred_region
      _
    $region81: #{tpu_custom_call.1} parent=1 // pred_fallthru
      _
    // Predicated region
    $region82: #{tpu_custom_call.1} parent=1 // pred_check
      _
    $region83: #{tpu_custom_call.1} parent=1 // pred_check_branch
      %72 = sbr.rel (0) target = $region85
    $region84: #{tpu_custom_call.1} parent=1 // pred_region
      _
    $region85: #{tpu_custom_call.1} parent=1 // pred_fallthru
      _
    %p74 = scmp.eq.s32.totalorder 0, 0
    // Predicated region
    $region86: #{tpu_custom_call.1} parent=1 // pred_check
      %p75 = pneg %p74
    $region87: #{tpu_custom_call.1} parent=1 // pred_check_branch
      %77 = sbr.rel (%p75) target = $region89
    $region88: #{tpu_custom_call.1} parent=1 // pred_region
      %vm78 = vcmask 285696
      %79 = vst.msk [vmem:[#allocation2] sm:$0xff] %vm78, 0.0
      %80 = vst.msk [vmem:[#allocation2 + $0x8] sm:$0xff] %vm78, 0.0
    $region89: #{tpu_custom_call.1} parent=1 // pred_fallthru
      _
    %v81 = vlaneseq
    %v82 = vand.u32 %v81, 127
    %v83 = vld [vmem:[%s0] sm:$0xff]
    %v84 = vld [vmem:[%s0 + $0x8] sm:$0xff]
    %v85 = vld [vmem:[%s0 + $0x10] sm:$0xff]
    %v86 = vld [vmem:[%s0 + $0x18] sm:$0xff]
    %v87 = vld [vmem:[%s0 + $0x20] sm:$0xff]
    %v88 = vld [vmem:[%s0 + $0x28] sm:$0xff]
    %v89 = vld [vmem:[%s0 + $0x30] sm:$0xff]
    %v90 = vld [vmem:[%s0 + $0x38] sm:$0xff]
    %v91 = vld [vmem:[%s0 + $0x40] sm:$0xff]
    %v92 = vld [vmem:[%s0 + $0x48] sm:$0xff]
    %v93 = vld [vmem:[%s0 + $0x50] sm:$0xff]
    %v94 = vld [vmem:[%s0 + $0x58] sm:$0xff]
    %v95 = vld [vmem:[%s0 + $0x60] sm:$0xff]
    %v96 = vld [vmem:[%s0 + $0x68] sm:$0xff]
    %v97 = vld [vmem:[%s0 + $0x70] sm:$0xff]
    %v98 = vld [vmem:[%s0 + $0x78] sm:$0xff]
    %v99 = vld [vmem:[%s0 + $0x80] sm:$0xff]
    %v100 = vld [vmem:[%s0 + $0x88] sm:$0xff]
    %v101 = vld [vmem:[%s0 + $0x90] sm:$0xff]
    %v102 = vld [vmem:[%s0 + $0x98] sm:$0xff]
    %v103 = vld [vmem:[%s0 + $0xa0] sm:$0xff]
    %v104 = vld [vmem:[%s0 + $0xa8] sm:$0xff]
    %v105 = vld [vmem:[%s0 + $0xb0] sm:$0xff]
    %v106 = vld [vmem:[%s0 + $0xb8] sm:$0xff]
    %v107 = vld [vmem:[%s0 + $0xc0] sm:$0xff]
    %v108 = vld [vmem:[%s0 + $0xc8] sm:$0xff]
    %v109 = vld [vmem:[%s0 + $0xd0] sm:$0xff]
    %v110 = vld [vmem:[%s0 + $0xd8] sm:$0xff]
    %v111 = vld [vmem:[%s0 + $0xe0] sm:$0xff]
    %v112 = vld [vmem:[%s0 + $0xe8] sm:$0xff]
    %v113 = vld [vmem:[%s0 + $0xf0] sm:$0xff]
    %v114 = vld [vmem:[%s0 + $0xf8] sm:$0xff]
    %115 = vset.pattern.permute.xlu0 0
    %116 = vperm.xlu0 %115, %v83
    %v117 = vpop.permute.xlu0 %116
    %118 = vset.pattern.permute.xlu0 0
    %119 = vperm.xlu0 %118, %v84
    %v120 = vpop.permute.xlu0 %119
    %121 = vset.pattern.permute.xlu0 0
    %122 = vperm.xlu0 %121, %v85
    %v123 = vpop.permute.xlu0 %122
    %124 = vset.pattern.permute.xlu0 0
    %125 = vperm.xlu0 %124, %v86
    %v126 = vpop.permute.xlu0 %125
    %127 = vset.pattern.permute.xlu0 0
    %128 = vperm.xlu0 %127, %v87
    %v129 = vpop.permute.xlu0 %128
    %130 = vset.pattern.permute.xlu0 0
    %131 = vperm.xlu0 %130, %v88
    %v132 = vpop.permute.xlu0 %131
    %133 = vset.pattern.permute.xlu0 0
    %134 = vperm.xlu0 %133, %v89
    %v135 = vpop.permute.xlu0 %134
    %136 = vset.pattern.permute.xlu0 0
    %137 = vperm.xlu0 %136, %v90
    %v138 = vpop.permute.xlu0 %137
    %139 = vset.pattern.permute.xlu0 0
    %140 = vperm.xlu0 %139, %v91
    %v141 = vpop.permute.xlu0 %140
    %142 = vset.pattern.permute.xlu0 0
    %143 = vperm.xlu0 %142, %v92
    %v144 = vpop.permute.xlu0 %143
    %145 = vset.pattern.permute.xlu0 0
    %146 = vperm.xlu0 %145, %v93
    %v147 = vpop.permute.xlu0 %146
    %148 = vset.pattern.permute.xlu0 0
    %149 = vperm.xlu0 %148, %v94
    %v150 = vpop.permute.xlu0 %149
    %151 = vset.pattern.permute.xlu0 0
    %152 = vperm.xlu0 %151, %v95
    %v153 = vpop.permute.xlu0 %152
    %154 = vset.pattern.permute.xlu0 0
    %155 = vperm.xlu0 %154, %v96
    %v156 = vpop.permute.xlu0 %155
    %157 = vset.pattern.permute.xlu0 0
    %158 = vperm.xlu0 %157, %v97
    %v159 = vpop.permute.xlu0 %158
    %160 = vset.pattern.permute.xlu0 0
    %161 = vperm.xlu0 %160, %v98
    %v162 = vpop.permute.xlu0 %161
    %163 = vset.pattern.permute.xlu0 0
    %164 = vperm.xlu0 %163, %v99
    %v165 = vpop.permute.xlu0 %164
    %166 = vset.pattern.permute.xlu0 0
    %167 = vperm.xlu0 %166, %v100
    %v168 = vpop.permute.xlu0 %167
    %169 = vset.pattern.permute.xlu0 0
    %170 = vperm.xlu0 %169, %v101
    %v171 = vpop.permute.xlu0 %170
    %172 = vset.pattern.permute.xlu0 0
    %173 = vperm.xlu0 %172, %v102
    %v174 = vpop.permute.xlu0 %173
    %175 = vset.pattern.permute.xlu0 0
    %176 = vperm.xlu0 %175, %v103
    %v177 = vpop.permute.xlu0 %176
    %178 = vset.pattern.permute.xlu0 0
    %179 = vperm.xlu0 %178, %v104
    %v180 = vpop.permute.xlu0 %179
    %181 = vset.pattern.permute.xlu0 0
    %182 = vperm.xlu0 %181, %v105
    %v183 = vpop.permute.xlu0 %182
    %184 = vset.pattern.permute.xlu0 0
    %185 = vperm.xlu0 %184, %v106
    %v186 = vpop.permute.xlu0 %185
    %187 = vset.pattern.permute.xlu0 0
    %188 = vperm.xlu0 %187, %v107
    %v189 = vpop.permute.xlu0 %188
    %190 = vset.pattern.permute.xlu0 0
    %191 = vperm.xlu0 %190, %v108
    %v192 = vpop.permute.xlu0 %191
    %193 = vset.pattern.permute.xlu0 0
    %194 = vperm.xlu0 %193, %v109
    %v195 = vpop.permute.xlu0 %194
    %196 = vset.pattern.permute.xlu0 0
    %197 = vperm.xlu0 %196, %v110
    %v198 = vpop.permute.xlu0 %197
    %199 = vset.pattern.permute.xlu0 0
    %200 = vperm.xlu0 %199, %v111
    %v201 = vpop.permute.xlu0 %200
    %202 = vset.pattern.permute.xlu0 0
    %203 = vperm.xlu0 %202, %v112
    %v204 = vpop.permute.xlu0 %203
    %205 = vset.pattern.permute.xlu0 0
    %206 = vperm.xlu0 %205, %v113
    %v207 = vpop.permute.xlu0 %206
    %208 = vset.pattern.permute.xlu0 0
    %209 = vperm.xlu0 %208, %v114
    %v210 = vpop.permute.xlu0 %209
    %vm211 = vcmp.eq.s32.totalorder %v82, %v117
    %vm212 = vcmp.eq.s32.totalorder %v82, %v120
    %vm213 = vcmp.eq.s32.totalorder %v82, %v123
    %vm214 = vcmp.eq.s32.totalorder %v82, %v126
    %vm215 = vcmp.eq.s32.totalorder %v82, %v129
    %vm216 = vcmp.eq.s32.totalorder %v82, %v132
    %vm217 = vcmp.eq.s32.totalorder %v82, %v135
    %vm218 = vcmp.eq.s32.totalorder %v82, %v138
    %vm219 = vcmp.eq.s32.totalorder %v82, %v141
    %vm220 = vcmp.eq.s32.totalorder %v82, %v144
    %vm221 = vcmp.eq.s32.totalorder %v82, %v147
    %vm222 = vcmp.eq.s32.totalorder %v82, %v150
    %vm223 = vcmp.eq.s32.totalorder %v82, %v153
    %vm224 = vcmp.eq.s32.totalorder %v82, %v156
    %vm225 = vcmp.eq.s32.totalorder %v82, %v159
    %vm226 = vcmp.eq.s32.totalorder %v82, %v162
    %vm227 = vcmp.eq.s32.totalorder %v82, %v165
    %vm228 = vcmp.eq.s32.totalorder %v82, %v168
    %vm229 = vcmp.eq.s32.totalorder %v82, %v171
    %vm230 = vcmp.eq.s32.totalorder %v82, %v174
    %vm231 = vcmp.eq.s32.totalorder %v82, %v177
    %vm232 = vcmp.eq.s32.totalorder %v82, %v180
    %vm233 = vcmp.eq.s32.totalorder %v82, %v183
    %vm234 = vcmp.eq.s32.totalorder %v82, %v186
    %vm235 = vcmp.eq.s32.totalorder %v82, %v189
    %vm236 = vcmp.eq.s32.totalorder %v82, %v192
    %vm237 = vcmp.eq.s32.totalorder %v82, %v195
    %vm238 = vcmp.eq.s32.totalorder %v82, %v198
    %vm239 = vcmp.eq.s32.totalorder %v82, %v201
    %vm240 = vcmp.eq.s32.totalorder %v82, %v204
    %vm241 = vcmp.eq.s32.totalorder %v82, %v207
    %vm242 = vcmp.eq.s32.totalorder %v82, %v210
    %v243 = vsel %vm211, 1, 0
    %v244 = vsel %vm212, 1, 0
    %v245 = vsel %vm213, 1, 0
    %v246 = vsel %vm214, 1, 0
    %v247 = vsel %vm215, 1, 0
    %v248 = vsel %vm216, 1, 0
    %v249 = vsel %vm217, 1, 0
    %v250 = vsel %vm218, 1, 0
    %v251 = vsel %vm219, 1, 0
    %v252 = vsel %vm220, 1, 0
    %v253 = vsel %vm221, 1, 0
    %v254 = vsel %vm222, 1, 0
    %v255 = vsel %vm223, 1, 0
    %v256 = vsel %vm224, 1, 0
    %v257 = vsel %vm225, 1, 0
    %v258 = vsel %vm226, 1, 0
    %v259 = vsel %vm227, 1, 0
    %v260 = vsel %vm228, 1, 0
    %v261 = vsel %vm229, 1, 0
    %v262 = vsel %vm230, 1, 0
    %v263 = vsel %vm231, 1, 0
    %v264 = vsel %vm232, 1, 0
    %v265 = vsel %vm233, 1, 0
    %v266 = vsel %vm234, 1, 0
    %v267 = vsel %vm235, 1, 0
    %v268 = vsel %vm236, 1, 0
    %v269 = vsel %vm237, 1, 0
    %v270 = vsel %vm238, 1, 0
    %v271 = vsel %vm239, 1, 0
    %v272 = vsel %vm240, 1, 0
    %v273 = vsel %vm241, 1, 0
    %v274 = vsel %vm242, 1, 0
    %v275 = vcvt.s32.f32 %v243
    %v276 = vcvt.s32.f32 %v244
    %v277 = vcvt.s32.f32 %v245
    %v278 = vcvt.s32.f32 %v246
    %v279 = vcvt.s32.f32 %v247
    %v280 = vcvt.s32.f32 %v248
    %v281 = vcvt.s32.f32 %v249
    %v282 = vcvt.s32.f32 %v250
    %v283 = vcvt.s32.f32 %v251
    %v284 = vcvt.s32.f32 %v252
    %v285 = vcvt.s32.f32 %v253
    %v286 = vcvt.s32.f32 %v254
    %v287 = vcvt.s32.f32 %v255
    %v288 = vcvt.s32.f32 %v256
    %v289 = vcvt.s32.f32 %v257
    %v290 = vcvt.s32.f32 %v258
    %v291 = vcvt.s32.f32 %v259
    %v292 = vcvt.s32.f32 %v260
    %v293 = vcvt.s32.f32 %v261
    %v294 = vcvt.s32.f32 %v262
    %v295 = vcvt.s32.f32 %v263
    %v296 = vcvt.s32.f32 %v264
    %v297 = vcvt.s32.f32 %v265
    %v298 = vcvt.s32.f32 %v266
    %v299 = vcvt.s32.f32 %v267
    %v300 = vcvt.s32.f32 %v268
    %v301 = vcvt.s32.f32 %v269
    %v302 = vcvt.s32.f32 %v270
    %v303 = vcvt.s32.f32 %v271
    %v304 = vcvt.s32.f32 %v272
    %v305 = vcvt.s32.f32 %v273
    %v306 = vcvt.s32.f32 %v274
    %v307 = vpack.c.bf16 %v276, %v275
    %v308 = vpack.c.bf16 %v278, %v277
    %v309 = vpack.c.bf16 %v280, %v279
    %v310 = vpack.c.bf16 %v282, %v281
    %v311 = vpack.c.bf16 %v284, %v283
    %v312 = vpack.c.bf16 %v286, %v285
    %v313 = vpack.c.bf16 %v288, %v287
    %v314 = vpack.c.bf16 %v290, %v289
    %v315 = vpack.c.bf16 %v292, %v291
    %v316 = vpack.c.bf16 %v294, %v293
    %v317 = vpack.c.bf16 %v296, %v295
    %v318 = vpack.c.bf16 %v298, %v297
    %v319 = vpack.c.bf16 %v300, %v299
    %v320 = vpack.c.bf16 %v302, %v301
    %v321 = vpack.c.bf16 %v304, %v303
    %v322 = vpack.c.bf16 %v306, %v305
    %323 = vset.pattern.permute.xlu0 1
    %324 = vperm.xlu0 %323, %v83
    %v325 = vpop.permute.xlu0 %324
    %326 = vset.pattern.permute.xlu0 1
    %327 = vperm.xlu0 %326, %v84
    %v328 = vpop.permute.xlu0 %327
    %329 = vset.pattern.permute.xlu0 1
    %330 = vperm.xlu0 %329, %v85
    %v331 = vpop.permute.xlu0 %330
    %332 = vset.pattern.permute.xlu0 1
    %333 = vperm.xlu0 %332, %v86
    %v334 = vpop.permute.xlu0 %333
    %335 = vset.pattern.permute.xlu0 1
    %336 = vperm.xlu0 %335, %v87
    %v337 = vpop.permute.xlu0 %336
    %338 = vset.pattern.permute.xlu0 1
    %339 = vperm.xlu0 %338, %v88
    %v340 = vpop.permute.xlu0 %339
    %341 = vset.pattern.permute.xlu0 1
    %342 = vperm.xlu0 %341, %v89
    %v343 = vpop.permute.xlu0 %342
    %344 = vset.pattern.permute.xlu0 1
    %345 = vperm.xlu0 %344, %v90
    %v346 = vpop.permute.xlu0 %345
    %347 = vset.pattern.permute.xlu0 1
    %348 = vperm.xlu0 %347, %v91
    %v349 = vpop.permute.xlu0 %348
    %350 = vset.pattern.permute.xlu0 1
    %351 = vperm.xlu0 %350, %v92
    %v352 = vpop.permute.xlu0 %351
    %353 = vset.pattern.permute.xlu0 1
    %354 = vperm.xlu0 %353, %v93
    %v355 = vpop.permute.xlu0 %354
    %356 = vset.pattern.permute.xlu0 1
    %357 = vperm.xlu0 %356, %v94
    %v358 = vpop.permute.xlu0 %357
    %359 = vset.pattern.permute.xlu0 1
    %360 = vperm.xlu0 %359, %v95
    %v361 = vpop.permute.xlu0 %360
    %362 = vset.pattern.permute.xlu0 1
    %363 = vperm.xlu0 %362, %v96
    %v364 = vpop.permute.xlu0 %363
    %365 = vset.pattern.permute.xlu0 1
    %366 = vperm.xlu0 %365, %v97
    %v367 = vpop.permute.xlu0 %366
    %368 = vset.pattern.permute.xlu0 1
    %369 = vperm.xlu0 %368, %v98
    %v370 = vpop.permute.xlu0 %369
    %371 = vset.pattern.permute.xlu0 1
    %372 = vperm.xlu0 %371, %v99
    %v373 = vpop.permute.xlu0 %372
    %374 = vset.pattern.permute.xlu0 1
    %375 = vperm.xlu0 %374, %v100
    %v376 = vpop.permute.xlu0 %375
    %377 = vset.pattern.permute.xlu0 1
    %378 = vperm.xlu0 %377, %v101
    %v379 = vpop.permute.xlu0 %378
    %380 = vset.pattern.permute.xlu0 1
    %381 = vperm.xlu0 %380, %v102
    %v382 = vpop.permute.xlu0 %381
    %383 = vset.pattern.permute.xlu0 1
    %384 = vperm.xlu0 %383, %v103
    %v385 = vpop.permute.xlu0 %384
    %386 = vset.pattern.permute.xlu0 1
    %387 = vperm.xlu0 %386, %v104
    %v388 = vpop.permute.xlu0 %387
    %389 = vset.pattern.permute.xlu0 1
    %390 = vperm.xlu0 %389, %v105
    %v391 = vpop.permute.xlu0 %390
    %392 = vset.pattern.permute.xlu0 1
    %393 = vperm.xlu0 %392, %v106
    %v394 = vpop.permute.xlu0 %393
    %395 = vset.pattern.permute.xlu0 1
    %396 = vperm.xlu0 %395, %v107
    %v397 = vpop.permute.xlu0 %396
    %398 = vset.pattern.permute.xlu0 1
    %399 = vperm.xlu0 %398, %v108
    %v400 = vpop.permute.xlu0 %399
    %401 = vset.pattern.permute.xlu0 1
    %402 = vperm.xlu0 %401, %v109
    %v403 = vpop.permute.xlu0 %402
    %404 = vset.pattern.permute.xlu0 1
    %405 = vperm.xlu0 %404, %v110
    %v406 = vpop.permute.xlu0 %405
    %407 = vset.pattern.permute.xlu0 1
    %408 = vperm.xlu0 %407, %v111
    %v409 = vpop.permute.xlu0 %408
    %410 = vset.pattern.permute.xlu0 1
    %411 = vperm.xlu0 %410, %v112
    %v412 = vpop.permute.xlu0 %411
    %413 = vset.pattern.permute.xlu0 1
    %414 = vperm.xlu0 %413, %v113
    %v415 = vpop.permute.xlu0 %414
    %416 = vset.pattern.permute.xlu0 1
    %417 = vperm.xlu0 %416, %v114
    %v418 = vpop.permute.xlu0 %417
    %vm419 = vcmp.eq.s32.totalorder %v82, %v325
    %vm420 = vcmp.eq.s32.totalorder %v82, %v328
    %vm421 = vcmp.eq.s32.totalorder %v82, %v331
    %vm422 = vcmp.eq.s32.totalorder %v82, %v334
    %vm423 = vcmp.eq.s32.totalorder %v82, %v337
    %vm424 = vcmp.eq.s32.totalorder %v82, %v340
    %vm425 = vcmp.eq.s32.totalorder %v82, %v343
    %vm426 = vcmp.eq.s32.totalorder %v82, %v346
    %vm427 = vcmp.eq.s32.totalorder %v82, %v349
    %vm428 = vcmp.eq.s32.totalorder %v82, %v352
    %vm429 = vcmp.eq.s32.totalorder %v82, %v355
    %vm430 = vcmp.eq.s32.totalorder %v82, %v358
    %vm431 = vcmp.eq.s32.totalorder %v82, %v361
    %vm432 = vcmp.eq.s32.totalorder %v82, %v364
    %vm433 = vcmp.eq.s32.totalorder %v82, %v367
    %vm434 = vcmp.eq.s32.totalorder %v82, %v370
    %vm435 = vcmp.eq.s32.totalorder %v82, %v373
    %vm436 = vcmp.eq.s32.totalorder %v82, %v376
    %vm437 = vcmp.eq.s32.totalorder %v82, %v379
    %vm438 = vcmp.eq.s32.totalorder %v82, %v382
    %vm439 = vcmp.eq.s32.totalorder %v82, %v385
    %vm440 = vcmp.eq.s32.totalorder %v82, %v388
    %vm441 = vcmp.eq.s32.totalorder %v82, %v391
    %vm442 = vcmp.eq.s32.totalorder %v82, %v394
    %vm443 = vcmp.eq.s32.totalorder %v82, %v397
    %vm444 = vcmp.eq.s32.totalorder %v82, %v400
    %vm445 = vcmp.eq.s32.totalorder %v82, %v403
    %vm446 = vcmp.eq.s32.totalorder %v82, %v406
    %vm447 = vcmp.eq.s32.totalorder %v82, %v409
    %vm448 = vcmp.eq.s32.totalorder %v82, %v412
    %vm449 = vcmp.eq.s32.totalorder %v82, %v415
    %vm450 = vcmp.eq.s32.totalorder %v82, %v418
    %v451 = vsel %vm419, 1, 0
    %v452 = vsel %vm420, 1, 0
    %v453 = vsel %vm421, 1, 0
    %v454 = vsel %vm422, 1, 0
    %v455 = vsel %vm423, 1, 0
    %v456 = vsel %vm424, 1, 0
    %v457 = vsel %vm425, 1, 0
    %v458 = vsel %vm426, 1, 0
    %v459 = vsel %vm427, 1, 0
    %v460 = vsel %vm428, 1, 0
    %v461 = vsel %vm429, 1, 0
    %v462 = vsel %vm430, 1, 0
    %v463 = vsel %vm431, 1, 0
    %v464 = vsel %vm432, 1, 0
    %v465 = vsel %vm433, 1, 0
    %v466 = vsel %vm434, 1, 0
    %v467 = vsel %vm435, 1, 0
    %v468 = vsel %vm436, 1, 0
    %v469 = vsel %vm437, 1, 0
    %v470 = vsel %vm438, 1, 0
    %v471 = vsel %vm439, 1, 0
    %v472 = vsel %vm440, 1, 0
    %v473 = vsel %vm441, 1, 0
    %v474 = vsel %vm442, 1, 0
    %v475 = vsel %vm443, 1, 0
    %v476 = vsel %vm444, 1, 0
    %v477 = vsel %vm445, 1, 0
    %v478 = vsel %vm446, 1, 0
    %v479 = vsel %vm447, 1, 0
    %v480 = vsel %vm448, 1, 0
    %v481 = vsel %vm449, 1, 0
    %v482 = vsel %vm450, 1, 0
    %v483 = vcvt.s32.f32 %v451
    %v484 = vcvt.s32.f32 %v452
    %v485 = vcvt.s32.f32 %v453
    %v486 = vcvt.s32.f32 %v454
    %v487 = vcvt.s32.f32 %v455
    %v488 = vcvt.s32.f32 %v456
    %v489 = vcvt.s32.f32 %v457
    %v490 = vcvt.s32.f32 %v458
    %v491 = vcvt.s32.f32 %v459
    %v492 = vcvt.s32.f32 %v460
    %v493 = vcvt.s32.f32 %v461
    %v494 = vcvt.s32.f32 %v462
    %v495 = vcvt.s32.f32 %v463
    %v496 = vcvt.s32.f32 %v464
    %v497 = vcvt.s32.f32 %v465
    %v498 = vcvt.s32.f32 %v466
    %v499 = vcvt.s32.f32 %v467
    %v500 = vcvt.s32.f32 %v468
    %v501 = vcvt.s32.f32 %v469
    %v502 = vcvt.s32.f32 %v470
    %v503 = vcvt.s32.f32 %v471
    %v504 = vcvt.s32.f32 %v472
    %v505 = vcvt.s32.f32 %v473
    %v506 = vcvt.s32.f32 %v474
    %v507 = vcvt.s32.f32 %v475
    %v508 = vcvt.s32.f32 %v476
    %v509 = vcvt.s32.f32 %v477
    %v510 = vcvt.s32.f32 %v478
    %v511 = vcvt.s32.f32 %v479
    %v512 = vcvt.s32.f32 %v480
    %v513 = vcvt.s32.f32 %v481
    %v514 = vcvt.s32.f32 %v482
    %v515 = vpack.c.bf16 %v484, %v483
    %v516 = vpack.c.bf16 %v486, %v485
    %v517 = vpack.c.bf16 %v488, %v487
    %v518 = vpack.c.bf16 %v490, %v489
    %v519 = vpack.c.bf16 %v492, %v491
    %v520 = vpack.c.bf16 %v494, %v493
    %v521 = vpack.c.bf16 %v496, %v495
    %v522 = vpack.c.bf16 %v498, %v497
    %v523 = vpack.c.bf16 %v500, %v499
    %v524 = vpack.c.bf16 %v502, %v501
    %v525 = vpack.c.bf16 %v504, %v503
    %v526 = vpack.c.bf16 %v506, %v505
    %v527 = vpack.c.bf16 %v508, %v507
    %v528 = vpack.c.bf16 %v510, %v509
    %v529 = vpack.c.bf16 %v512, %v511
    %v530 = vpack.c.bf16 %v514, %v513
    %v531 = vld [vmem:[%s1] sm:$0xf]
    %v532 = vld [vmem:[%s1 + $0x4] sm:$0xf]
    %v535 = vunpack.c.l.b16 %v531
    %v536 = vunpack.c.l.b16 %v532
    %v537 = vpack.c.b16 %v536, %v535
    %vm539 = vcmask 130048
    %v541 = vsel %vm539, %v307, 0
    %v544 = vsel %vm539, %v308, 0
    %v547 = vsel %vm539, %v309, 0
    %v550 = vsel %vm539, %v310, 0
    %v553 = vsel %vm539, %v311, 0
    %v556 = vsel %vm539, %v312, 0
    %v559 = vsel %vm539, %v313, 0
    %v562 = vsel %vm539, %v314, 0
    %v565 = vsel %vm539, %v315, 0
    %v568 = vsel %vm539, %v316, 0
    %v571 = vsel %vm539, %v317, 0
    %v574 = vsel %vm539, %v318, 0
    %v577 = vsel %vm539, %v319, 0
    %v580 = vsel %vm539, %v320, 0
    %v583 = vsel %vm539, %v321, 0
    %v586 = vsel %vm539, %v322, 0
    %588 = vmatprep.subr.bf16.mxu0 0
    %589 = vmatpush1.bf16.msra.mxu0 0
    %590 = vmatprep.subr.bf16.mxu0 0
    %591 = vmatpush1.bf16.msra.mxu0 0
    %592 = vmatprep.subr.bf16.mxu0 0
    %593 = vmatpush1.bf16.msra.mxu0 0
    %594 = vmatprep.subr.bf16.mxu0 0
    %595 = vmatpush1.bf16.msra.mxu0 0
    %596 = vmatprep.subr.bf16.mxu0 0
    %597 = vmatpush1.bf16.msra.mxu0 0
    %598 = vmatprep.subr.bf16.mxu0 0
    %599 = vmatpush1.bf16.msra.mxu0 0
    %600 = vmatprep.subr.bf16.mxu0 0
    %601 = vmatpush1.bf16.msra.mxu0 0
    %602 = vmatprep.subr.bf16.mxu0 0
    %603 = vmatpush1.bf16.msra.mxu0 %v537
    %604 = vmatprep.subr.bf16.mxu0 0
    %605 = vmatpush2.bf16.msra.mxu0 0
    %606 = vmatprep.subr.bf16.mxu0 0
    %607 = vmatpush2.bf16.msra.mxu0 0
    %608 = vmatprep.subr.bf16.mxu0 0
    %609 = vmatpush2.bf16.msra.mxu0 0
    %610 = vmatprep.subr.bf16.mxu0 0
    %611 = vmatpush2.bf16.msra.mxu0 0
    %612 = vmatprep.subr.bf16.mxu0 0
    %613 = vmatpush2.bf16.msra.mxu0 0
    %614 = vmatprep.subr.bf16.mxu0 0
    %615 = vmatpush2.bf16.msra.mxu0 0
    %616 = vmatprep.subr.bf16.mxu0 0
    %617 = vmatpush2.bf16.msra.mxu0 0
    %618 = vmatprep.subr.bf16.mxu0 0
    %619 = vmatpush2.bf16.msra.mxu0 0
    %620 = vmatprep.mubr.bf16.mxu0 0
    %621 = vmatmul.mubr.bf16.gmra.mxu0 %v541
    %v622 = vpop.f32.mrf.mxu0
    %v623 = vadd.f32 0.0, %v622
    %v624 = vpop.f32.mrf.mxu0
    %v625 = vpop.f32.mrf.mxu0
    %v626 = vadd.f32 0.0, %v625
    %v627 = vpop.f32.mrf.mxu0
    %628 = vmatprep.mubr.bf16.mxu0 0
    %629 = vmatmul.mubr.bf16.gmra.mxu0 %v544
    %v630 = vpop.f32.mrf.mxu0
    %v631 = vadd.f32 0.0, %v630
    %v632 = vpop.f32.mrf.mxu0
    %v633 = vpop.f32.mrf.mxu0
    %v634 = vadd.f32 0.0, %v633
    %v635 = vpop.f32.mrf.mxu0
    %636 = vmatprep.mubr.bf16.mxu0 0
    %637 = vmatmul.mubr.bf16.gmra.mxu0 %v547
    %v638 = vpop.f32.mrf.mxu0
    %v639 = vadd.f32 0.0, %v638
    %v640 = vpop.f32.mrf.mxu0
    %v641 = vpop.f32.mrf.mxu0
    %v642 = vadd.f32 0.0, %v641
    %v643 = vpop.f32.mrf.mxu0
    %644 = vmatprep.mubr.bf16.mxu0 0
    %645 = vmatmul.mubr.bf16.gmra.mxu0 %v550
    %v646 = vpop.f32.mrf.mxu0
    %v647 = vadd.f32 0.0, %v646
    %v648 = vpop.f32.mrf.mxu0
    %v649 = vpop.f32.mrf.mxu0
    %v650 = vadd.f32 0.0, %v649
    %v651 = vpop.f32.mrf.mxu0
    %652 = vmatprep.mubr.bf16.mxu0 0
    %653 = vmatmul.mubr.bf16.gmra.mxu0 %v553
    %v654 = vpop.f32.mrf.mxu0
    %v655 = vadd.f32 0.0, %v654
    %v656 = vpop.f32.mrf.mxu0
    %v657 = vpop.f32.mrf.mxu0
    %v658 = vadd.f32 0.0, %v657
    %v659 = vpop.f32.mrf.mxu0
    %660 = vmatprep.mubr.bf16.mxu0 0
    %661 = vmatmul.mubr.bf16.gmra.mxu0 %v556
    %v662 = vpop.f32.mrf.mxu0
    %v663 = vadd.f32 0.0, %v662
    %v664 = vpop.f32.mrf.mxu0
    %v665 = vpop.f32.mrf.mxu0
    %v666 = vadd.f32 0.0, %v665
    %v667 = vpop.f32.mrf.mxu0
    %668 = vmatprep.mubr.bf16.mxu0 0
    %669 = vmatmul.mubr.bf16.gmra.mxu0 %v559
    %v670 = vpop.f32.mrf.mxu0
    %v671 = vadd.f32 0.0, %v670
    %v672 = vpop.f32.mrf.mxu0
    %v673 = vpop.f32.mrf.mxu0
    %v674 = vadd.f32 0.0, %v673
    %v675 = vpop.f32.mrf.mxu0
    %676 = vmatprep.mubr.bf16.mxu0 0
    %677 = vmatmul.mubr.bf16.gmra.mxu0 %v562
    %v678 = vpop.f32.mrf.mxu0
    %v679 = vadd.f32 0.0, %v678
    %v680 = vpop.f32.mrf.mxu0
    %v681 = vpop.f32.mrf.mxu0
    %v682 = vadd.f32 0.0, %v681
    %v683 = vpop.f32.mrf.mxu0
    %684 = vmatprep.mubr.bf16.mxu0 0
    %685 = vmatmul.mubr.bf16.gmra.mxu0 %v565
    %v686 = vpop.f32.mrf.mxu0
    %v687 = vadd.f32 0.0, %v686
    %v688 = vpop.f32.mrf.mxu0
    %v689 = vpop.f32.mrf.mxu0
    %v690 = vadd.f32 0.0, %v689
    %v691 = vpop.f32.mrf.mxu0
    %692 = vmatprep.mubr.bf16.mxu0 0
    %693 = vmatmul.mubr.bf16.gmra.mxu0 %v568
    %v694 = vpop.f32.mrf.mxu0
    %v695 = vadd.f32 0.0, %v694
    %v696 = vpop.f32.mrf.mxu0
    %v697 = vpop.f32.mrf.mxu0
    %v698 = vadd.f32 0.0, %v697
    %v699 = vpop.f32.mrf.mxu0
    %700 = vmatprep.mubr.bf16.mxu0 0
    %701 = vmatmul.mubr.bf16.gmra.mxu0 %v571
    %v702 = vpop.f32.mrf.mxu0
    %v703 = vadd.f32 0.0, %v702
    %v704 = vpop.f32.mrf.mxu0
    %v705 = vpop.f32.mrf.mxu0
    %v706 = vadd.f32 0.0, %v705
    %v707 = vpop.f32.mrf.mxu0
    %708 = vmatprep.mubr.bf16.mxu0 0
    %709 = vmatmul.mubr.bf16.gmra.mxu0 %v574
    %v710 = vpop.f32.mrf.mxu0
    %v711 = vadd.f32 0.0, %v710
    %v712 = vpop.f32.mrf.mxu0
    %v713 = vpop.f32.mrf.mxu0
    %v714 = vadd.f32 0.0, %v713
    %v715 = vpop.f32.mrf.mxu0
    %716 = vmatprep.mubr.bf16.mxu0 0
    %717 = vmatmul.mubr.bf16.gmra.mxu0 %v577
    %v718 = vpop.f32.mrf.mxu0
    %v719 = vadd.f32 0.0, %v718
    %v720 = vpop.f32.mrf.mxu0
    %v721 = vpop.f32.mrf.mxu0
    %v722 = vadd.f32 0.0, %v721
    %v723 = vpop.f32.mrf.mxu0
    %724 = vmatprep.mubr.bf16.mxu0 0
    %725 = vmatmul.mubr.bf16.gmra.mxu0 %v580
    %v726 = vpop.f32.mrf.mxu0
    %v727 = vadd.f32 0.0, %v726
    %v728 = vpop.f32.mrf.mxu0
    %v729 = vpop.f32.mrf.mxu0
    %v730 = vadd.f32 0.0, %v729
    %v731 = vpop.f32.mrf.mxu0
    %732 = vmatprep.mubr.bf16.mxu0 0
    %733 = vmatmul.mubr.bf16.gmra.mxu0 %v583
    %v734 = vpop.f32.mrf.mxu0
    %v735 = vadd.f32 0.0, %v734
    %v736 = vpop.f32.mrf.mxu0
    %v737 = vpop.f32.mrf.mxu0
    %v738 = vadd.f32 0.0, %v737
    %v739 = vpop.f32.mrf.mxu0
    %740 = vmatprep.mubr.bf16.mxu0 0
    %741 = vmatmul.mubr.bf16.gmra.mxu0 %v586
    %v742 = vpop.f32.mrf.mxu0
    %v743 = vadd.f32 0.0, %v742
    %v744 = vpop.f32.mrf.mxu0
    %v745 = vpop.f32.mrf.mxu0
    %v746 = vadd.f32 0.0, %v745
    %v747 = vpop.f32.mrf.mxu0
    %748 = vdwg.mxu0
    %v750 = vsel %vm539, %v515, 0
    %v753 = vsel %vm539, %v516, 0
    %v756 = vsel %vm539, %v517, 0
    %v759 = vsel %vm539, %v518, 0
    %v762 = vsel %vm539, %v519, 0
    %v765 = vsel %vm539, %v520, 0
    %v768 = vsel %vm539, %v521, 0
    %v771 = vsel %vm539, %v522, 0
    %v774 = vsel %vm539, %v523, 0
    %v777 = vsel %vm539, %v524, 0
    %v780 = vsel %vm539, %v525, 0
    %v783 = vsel %vm539, %v526, 0
    %v786 = vsel %vm539, %v527, 0
    %v789 = vsel %vm539, %v528, 0
    %v792 = vsel %vm539, %v529, 0
    %v795 = vsel %vm539, %v530, 0
    %797 = vmatprep.subr.bf16.mxu0 0
    %798 = vmatpush1.bf16.msra.mxu0 0
    %799 = vmatprep.subr.bf16.mxu0 0
    %800 = vmatpush1.bf16.msra.mxu0 0
    %801 = vmatprep.subr.bf16.mxu0 0
    %802 = vmatpush1.bf16.msra.mxu0 0
    %803 = vmatprep.subr.bf16.mxu0 0
    %804 = vmatpush1.bf16.msra.mxu0 0
    %805 = vmatprep.subr.bf16.mxu0 0
    %806 = vmatpush1.bf16.msra.mxu0 0
    %807 = vmatprep.subr.bf16.mxu0 0
    %808 = vmatpush1.bf16.msra.mxu0 0
    %809 = vmatprep.subr.bf16.mxu0 0
    %810 = vmatpush1.bf16.msra.mxu0 0
    %811 = vmatprep.subr.bf16.mxu0 0
    %812 = vmatpush1.bf16.msra.mxu0 %v537
    %813 = vmatprep.subr.bf16.mxu0 0
    %814 = vmatpush2.bf16.msra.mxu0 0
    %815 = vmatprep.subr.bf16.mxu0 0
    %816 = vmatpush2.bf16.msra.mxu0 0
    %817 = vmatprep.subr.bf16.mxu0 0
    %818 = vmatpush2.bf16.msra.mxu0 0
    %819 = vmatprep.subr.bf16.mxu0 0
    %820 = vmatpush2.bf16.msra.mxu0 0
    %821 = vmatprep.subr.bf16.mxu0 0
    %822 = vmatpush2.bf16.msra.mxu0 0
    %823 = vmatprep.subr.bf16.mxu0 0
    %824 = vmatpush2.bf16.msra.mxu0 0
    %825 = vmatprep.subr.bf16.mxu0 0
    %826 = vmatpush2.bf16.msra.mxu0 0
    %827 = vmatprep.subr.bf16.mxu0 0
    %828 = vmatpush2.bf16.msra.mxu0 0
    %829 = vmatprep.mubr.bf16.mxu0 0
    %830 = vmatmul.mubr.bf16.gmra.mxu0 %v750
    %v831 = vpop.f32.mrf.mxu0
    %v832 = vadd.f32 0.0, %v831
    %v833 = vpop.f32.mrf.mxu0
    %v834 = vpop.f32.mrf.mxu0
    %v835 = vadd.f32 0.0, %v834
    %v836 = vpop.f32.mrf.mxu0
    %837 = vmatprep.mubr.bf16.mxu0 0
    %838 = vmatmul.mubr.bf16.gmra.mxu0 %v753
    %v839 = vpop.f32.mrf.mxu0
    %v840 = vadd.f32 0.0, %v839
    %v841 = vpop.f32.mrf.mxu0
    %v842 = vpop.f32.mrf.mxu0
    %v843 = vadd.f32 0.0, %v842
    %v844 = vpop.f32.mrf.mxu0
    %845 = vmatprep.mubr.bf16.mxu0 0
    %846 = vmatmul.mubr.bf16.gmra.mxu0 %v756
    %v847 = vpop.f32.mrf.mxu0
    %v848 = vadd.f32 0.0, %v847
    %v849 = vpop.f32.mrf.mxu0
    %v850 = vpop.f32.mrf.mxu0
    %v851 = vadd.f32 0.0, %v850
    %v852 = vpop.f32.mrf.mxu0
    %853 = vmatprep.mubr.bf16.mxu0 0
    %854 = vmatmul.mubr.bf16.gmra.mxu0 %v759
    %v855 = vpop.f32.mrf.mxu0
    %v856 = vadd.f32 0.0, %v855
    %v857 = vpop.f32.mrf.mxu0
    %v858 = vpop.f32.mrf.mxu0
    %v859 = vadd.f32 0.0, %v858
    %v860 = vpop.f32.mrf.mxu0
    %861 = vmatprep.mubr.bf16.mxu0 0
    %862 = vmatmul.mubr.bf16.gmra.mxu0 %v762
    %v863 = vpop.f32.mrf.mxu0
    %v864 = vadd.f32 0.0, %v863
    %v865 = vpop.f32.mrf.mxu0
    %v866 = vpop.f32.mrf.mxu0
    %v867 = vadd.f32 0.0, %v866
    %v868 = vpop.f32.mrf.mxu0
    %869 = vmatprep.mubr.bf16.mxu0 0
    %870 = vmatmul.mubr.bf16.gmra.mxu0 %v765
    %v871 = vpop.f32.mrf.mxu0
    %v872 = vadd.f32 0.0, %v871
    %v873 = vpop.f32.mrf.mxu0
    %v874 = vpop.f32.mrf.mxu0
    %v875 = vadd.f32 0.0, %v874
    %v876 = vpop.f32.mrf.mxu0
    %877 = vmatprep.mubr.bf16.mxu0 0
    %878 = vmatmul.mubr.bf16.gmra.mxu0 %v768
    %v879 = vpop.f32.mrf.mxu0
    %v880 = vadd.f32 0.0, %v879
    %v881 = vpop.f32.mrf.mxu0
    %v882 = vpop.f32.mrf.mxu0
    %v883 = vadd.f32 0.0, %v882
    %v884 = vpop.f32.mrf.mxu0
    %885 = vmatprep.mubr.bf16.mxu0 0
    %886 = vmatmul.mubr.bf16.gmra.mxu0 %v771
    %v887 = vpop.f32.mrf.mxu0
    %v888 = vadd.f32 0.0, %v887
    %v889 = vpop.f32.mrf.mxu0
    %v890 = vpop.f32.mrf.mxu0
    %v891 = vadd.f32 0.0, %v890
    %v892 = vpop.f32.mrf.mxu0
    %893 = vmatprep.mubr.bf16.mxu0 0
    %894 = vmatmul.mubr.bf16.gmra.mxu0 %v774
    %v895 = vpop.f32.mrf.mxu0
    %v896 = vadd.f32 0.0, %v895
    %v897 = vpop.f32.mrf.mxu0
    %v898 = vpop.f32.mrf.mxu0
    %v899 = vadd.f32 0.0, %v898
    %v900 = vpop.f32.mrf.mxu0
    %901 = vmatprep.mubr.bf16.mxu0 0
    %902 = vmatmul.mubr.bf16.gmra.mxu0 %v777
    %v903 = vpop.f32.mrf.mxu0
    %v904 = vadd.f32 0.0, %v903
    %v905 = vpop.f32.mrf.mxu0
    %v906 = vpop.f32.mrf.mxu0
    %v907 = vadd.f32 0.0, %v906
    %v908 = vpop.f32.mrf.mxu0
    %909 = vmatprep.mubr.bf16.mxu0 0
    %910 = vmatmul.mubr.bf16.gmra.mxu0 %v780
    %v911 = vpop.f32.mrf.mxu0
    %v912 = vadd.f32 0.0, %v911
    %v913 = vpop.f32.mrf.mxu0
    %v914 = vpop.f32.mrf.mxu0
    %v915 = vadd.f32 0.0, %v914
    %v916 = vpop.f32.mrf.mxu0
    %917 = vmatprep.mubr.bf16.mxu0 0
    %918 = vmatmul.mubr.bf16.gmra.mxu0 %v783
    %v919 = vpop.f32.mrf.mxu0
    %v920 = vadd.f32 0.0, %v919
    %v921 = vpop.f32.mrf.mxu0
    %v922 = vpop.f32.mrf.mxu0
    %v923 = vadd.f32 0.0, %v922
    %v924 = vpop.f32.mrf.mxu0
    %925 = vmatprep.mubr.bf16.mxu0 0
    %926 = vmatmul.mubr.bf16.gmra.mxu0 %v786
    %v927 = vpop.f32.mrf.mxu0
    %v928 = vadd.f32 0.0, %v927
    %v929 = vpop.f32.mrf.mxu0
    %v930 = vpop.f32.mrf.mxu0
    %v931 = vadd.f32 0.0, %v930
    %v932 = vpop.f32.mrf.mxu0
    %933 = vmatprep.mubr.bf16.mxu0 0
    %934 = vmatmul.mubr.bf16.gmra.mxu0 %v789
    %v935 = vpop.f32.mrf.mxu0
    %v936 = vadd.f32 0.0, %v935
    %v937 = vpop.f32.mrf.mxu0
    %v938 = vpop.f32.mrf.mxu0
    %v939 = vadd.f32 0.0, %v938
    %v940 = vpop.f32.mrf.mxu0
    %941 = vmatprep.mubr.bf16.mxu0 0
    %942 = vmatmul.mubr.bf16.gmra.mxu0 %v792
    %v943 = vpop.f32.mrf.mxu0
    %v944 = vadd.f32 0.0, %v943
    %v945 = vpop.f32.mrf.mxu0
    %v946 = vpop.f32.mrf.mxu0
    %v947 = vadd.f32 0.0, %v946
    %v948 = vpop.f32.mrf.mxu0
    %949 = vmatprep.mubr.bf16.mxu0 0
    %950 = vmatmul.mubr.bf16.gmra.mxu0 %v795
    %v951 = vpop.f32.mrf.mxu0
    %v952 = vadd.f32 0.0, %v951
    %v953 = vpop.f32.mrf.mxu0
    %v954 = vpop.f32.mrf.mxu0
    %v955 = vadd.f32 0.0, %v954
    %v956 = vpop.f32.mrf.mxu0
    %957 = vdwg.mxu0
    %v958 = vld [vmem:[%s2] sm:$0xff]
    %v959 = vld [vmem:[%s2 + $0x8] sm:$0xff]
    %v960 = vsub.bf16 %v307, %v515
    %v961 = vsub.bf16 %v308, %v516
    %v962 = vsub.bf16 %v309, %v517
    %v963 = vsub.bf16 %v310, %v518
    %v964 = vsub.bf16 %v311, %v519
    %v965 = vsub.bf16 %v312, %v520
    %v966 = vsub.bf16 %v313, %v521
    %v967 = vsub.bf16 %v314, %v522
    %v968 = vsub.bf16 %v315, %v523
    %v969 = vsub.bf16 %v316, %v524
    %v970 = vsub.bf16 %v317, %v525
    %v971 = vsub.bf16 %v318, %v526
    %v972 = vsub.bf16 %v319, %v527
    %v973 = vsub.bf16 %v320, %v528
    %v974 = vsub.bf16 %v321, %v529
    %v975 = vsub.bf16 %v322, %v530
    %v976 = vunpack.c.l.bf16 %v960
    %v977 = vunpack.c.h.bf16 %v960
    %v978 = vunpack.c.l.bf16 %v961
    %v979 = vunpack.c.h.bf16 %v961
    %v980 = vunpack.c.l.bf16 %v962
    %v981 = vunpack.c.h.bf16 %v962
    %v982 = vunpack.c.l.bf16 %v963
    %v983 = vunpack.c.h.bf16 %v963
    %v984 = vunpack.c.l.bf16 %v964
    %v985 = vunpack.c.h.bf16 %v964
    %v986 = vunpack.c.l.bf16 %v965
    %v987 = vunpack.c.h.bf16 %v965
    %v988 = vunpack.c.l.bf16 %v966
    %v989 = vunpack.c.h.bf16 %v966
    %v990 = vunpack.c.l.bf16 %v967
    %v991 = vunpack.c.h.bf16 %v967
    %v992 = vunpack.c.l.bf16 %v968
    %v993 = vunpack.c.h.bf16 %v968
    %v994 = vunpack.c.l.bf16 %v969
    %v995 = vunpack.c.h.bf16 %v969
    %v996 = vunpack.c.l.bf16 %v970
    %v997 = vunpack.c.h.bf16 %v970
    %v998 = vunpack.c.l.bf16 %v971
    %v999 = vunpack.c.h.bf16 %v971
    %v1000 = vunpack.c.l.bf16 %v972
    %v1001 = vunpack.c.h.bf16 %v972
    %v1002 = vunpack.c.l.bf16 %v973
    %v1003 = vunpack.c.h.bf16 %v973
    %v1004 = vunpack.c.l.bf16 %v974
    %v1005 = vunpack.c.h.bf16 %v974
    %v1006 = vunpack.c.l.bf16 %v975
    %v1007 = vunpack.c.h.bf16 %v975
    %1010 = vrot.lane.b32.xlu0 %v958, 96
    %v1011 = vpop.permute.xlu0 %1010
    %1012 = vrot.lane.b32.xlu0 %v959, 96
    %v1013 = vpop.permute.xlu0 %1012
    %v1017 = vsel %vm539, %v976, 0
    %v1020 = vsel %vm539, %v977, 0
    %v1023 = vsel %vm539, %v978, 0
    %v1026 = vsel %vm539, %v979, 0
    %v1029 = vsel %vm539, %v980, 0
    %v1032 = vsel %vm539, %v981, 0
    %v1035 = vsel %vm539, %v982, 0
    %v1038 = vsel %vm539, %v983, 0
    %v1041 = vsel %vm539, %v984, 0
    %v1044 = vsel %vm539, %v985, 0
    %v1047 = vsel %vm539, %v986, 0
    %v1050 = vsel %vm539, %v987, 0
    %v1053 = vsel %vm539, %v988, 0
    %v1056 = vsel %vm539, %v989, 0
    %v1059 = vsel %vm539, %v990, 0
    %v1062 = vsel %vm539, %v991, 0
    %v1065 = vsel %vm539, %v992, 0
    %v1068 = vsel %vm539, %v993, 0
    %v1071 = vsel %vm539, %v994, 0
    %v1074 = vsel %vm539, %v995, 0
    %v1077 = vsel %vm539, %v996, 0
    %v1080 = vsel %vm539, %v997, 0
    %v1083 = vsel %vm539, %v998, 0
    %v1086 = vsel %vm539, %v999, 0
    %v1089 = vsel %vm539, %v1000, 0
    %v1092 = vsel %vm539, %v1001, 0
    %v1095 = vsel %vm539, %v1002, 0
    %v1098 = vsel %vm539, %v1003, 0
    %v1101 = vsel %vm539, %v1004, 0
    %v1104 = vsel %vm539, %v1005, 0
    %v1107 = vsel %vm539, %v1006, 0
    %v1110 = vsel %vm539, %v1007, 0
    %1112 = vmatprep.subr.mxu0 0.0
    %1113 = vmatpush1.msra.mxu0 0.0
    %1114 = vmatprep.subr.mxu0 0.0
    %1115 = vmatpush1.msra.mxu0 0.0
    %1116 = vmatprep.subr.mxu0 0.0
    %1117 = vmatpush1.msra.mxu0 0.0
    %1118 = vmatprep.subr.mxu0 0.0
    %1119 = vmatpush1.msra.mxu0 0.0
    %1120 = vmatprep.subr.mxu0 0.0
    %1121 = vmatpush1.msra.mxu0 0.0
    %1122 = vmatprep.subr.mxu0 0.0
    %1123 = vmatpush1.msra.mxu0 0.0
    %1124 = vmatprep.subr.mxu0 0.0
    %1125 = vmatpush1.msra.mxu0 0.0
    %1126 = vmatprep.subr.mxu0 0.0
    %1127 = vmatpush1.msra.mxu0 0.0
    %1128 = vmatprep.subr.mxu0 0.0
    %1129 = vmatpush1.msra.mxu0 0.0
    %1130 = vmatprep.subr.mxu0 0.0
    %1131 = vmatpush1.msra.mxu0 0.0
    %1132 = vmatprep.subr.mxu0 0.0
    %1133 = vmatpush1.msra.mxu0 0.0
    %1134 = vmatprep.subr.mxu0 0.0
    %1135 = vmatpush1.msra.mxu0 0.0
    %1136 = vmatprep.subr.mxu0 0.0
    %1137 = vmatpush1.msra.mxu0 0.0
    %1138 = vmatprep.subr.mxu0 0.0
    %1139 = vmatpush1.msra.mxu0 0.0
    %1140 = vmatprep.subr.mxu0 0.0
    %1141 = vmatpush1.msra.mxu0 %v1013
    %1142 = vmatprep.subr.mxu0 0.0
    %1143 = vmatpush1.msra.mxu0 %v1011
    %1144 = vmatprep.subr.mxu0 0.0
    %1145 = vmatpush2.msra.mxu0 0.0
    %1146 = vmatprep.subr.mxu0 0.0
    %1147 = vmatpush2.msra.mxu0 0.0
    %1148 = vmatprep.subr.mxu0 0.0
    %1149 = vmatpush2.msra.mxu0 0.0
    %1150 = vmatprep.subr.mxu0 0.0
    %1151 = vmatpush2.msra.mxu0 0.0
    %1152 = vmatprep.subr.mxu0 0.0
    %1153 = vmatpush2.msra.mxu0 0.0
    %1154 = vmatprep.subr.mxu0 0.0
    %1155 = vmatpush2.msra.mxu0 0.0
    %1156 = vmatprep.subr.mxu0 0.0
    %1157 = vmatpush2.msra.mxu0 0.0
    %1158 = vmatprep.subr.mxu0 0.0
    %1159 = vmatpush2.msra.mxu0 0.0
    %1160 = vmatprep.subr.mxu0 0.0
    %1161 = vmatpush2.msra.mxu0 0.0
    %1162 = vmatprep.subr.mxu0 0.0
    %1163 = vmatpush2.msra.mxu0 0.0
    %1164 = vmatprep.subr.mxu0 0.0
    %1165 = vmatpush2.msra.mxu0 0.0
    %1166 = vmatprep.subr.mxu0 0.0
    %1167 = vmatpush2.msra.mxu0 0.0
    %1168 = vmatprep.subr.mxu0 0.0
    %1169 = vmatpush2.msra.mxu0 0.0
    %1170 = vmatprep.subr.mxu0 0.0
    %1171 = vmatpush2.msra.mxu0 0.0
    %1172 = vmatprep.subr.mxu0 0.0
    %1173 = vmatpush2.msra.mxu0 0.0
    %1174 = vmatprep.subr.mxu0 0.0
    %1175 = vmatpush2.msra.mxu0 0.0
    %1176 = vmatprep.mubr.f32.mxu0 0.0
    %1177 = vmatmul.mubr.f32.gmra.mxu0 %v1017
    %v1178 = vpop.f32.mrf.mxu0
    %v1179 = vadd.f32 0.0, %v1178
    %v1180 = vpop.f32.mrf.mxu0
    %1181 = vmatprep.mubr.f32.mxu0 0.0
    %1182 = vmatmul.mubr.f32.gmra.mxu0 %v1020
    %v1183 = vpop.f32.mrf.mxu0
    %v1184 = vadd.f32 0.0, %v1183
    %v1185 = vpop.f32.mrf.mxu0
    %1186 = vmatprep.mubr.f32.mxu0 0.0
    %1187 = vmatmul.mubr.f32.gmra.mxu0 %v1023
    %v1188 = vpop.f32.mrf.mxu0
    %v1189 = vadd.f32 0.0, %v1188
    %v1190 = vpop.f32.mrf.mxu0
    %1191 = vmatprep.mubr.f32.mxu0 0.0
    %1192 = vmatmul.mubr.f32.gmra.mxu0 %v1026
    %v1193 = vpop.f32.mrf.mxu0
    %v1194 = vadd.f32 0.0, %v1193
    %v1195 = vpop.f32.mrf.mxu0
    %1196 = vmatprep.mubr.f32.mxu0 0.0
    %1197 = vmatmul.mubr.f32.gmra.mxu0 %v1029
    %v1198 = vpop.f32.mrf.mxu0
    %v1199 = vadd.f32 0.0, %v1198
    %v1200 = vpop.f32.mrf.mxu0
    %1201 = vmatprep.mubr.f32.mxu0 0.0
    %1202 = vmatmul.mubr.f32.gmra.mxu0 %v1032
    %v1203 = vpop.f32.mrf.mxu0
    %v1204 = vadd.f32 0.0, %v1203
    %v1205 = vpop.f32.mrf.mxu0
    %1206 = vmatprep.mubr.f32.mxu0 0.0
    %1207 = vmatmul.mubr.f32.gmra.mxu0 %v1035
    %v1208 = vpop.f32.mrf.mxu0
    %v1209 = vadd.f32 0.0, %v1208
    %v1210 = vpop.f32.mrf.mxu0
    %1211 = vmatprep.mubr.f32.mxu0 0.0
    %1212 = vmatmul.mubr.f32.gmra.mxu0 %v1038
    %v1213 = vpop.f32.mrf.mxu0
    %v1214 = vadd.f32 0.0, %v1213
    %v1215 = vpop.f32.mrf.mxu0
    %1216 = vmatprep.mubr.f32.mxu0 0.0
    %1217 = vmatmul.mubr.f32.gmra.mxu0 %v1041
    %v1218 = vpop.f32.mrf.mxu0
    %v1219 = vadd.f32 0.0, %v1218
    %v1220 = vpop.f32.mrf.mxu0
    %1221 = vmatprep.mubr.f32.mxu0 0.0
    %1222 = vmatmul.mubr.f32.gmra.mxu0 %v1044
    %v1223 = vpop.f32.mrf.mxu0
    %v1224 = vadd.f32 0.0, %v1223
    %v1225 = vpop.f32.mrf.mxu0
    %1226 = vmatprep.mubr.f32.mxu0 0.0
    %1227 = vmatmul.mubr.f32.gmra.mxu0 %v1047
    %v1228 = vpop.f32.mrf.mxu0
    %v1229 = vadd.f32 0.0, %v1228
    %v1230 = vpop.f32.mrf.mxu0
    %1231 = vmatprep.mubr.f32.mxu0 0.0
    %1232 = vmatmul.mubr.f32.gmra.mxu0 %v1050
    %v1233 = vpop.f32.mrf.mxu0
    %v1234 = vadd.f32 0.0, %v1233
    %v1235 = vpop.f32.mrf.mxu0
    %1236 = vmatprep.mubr.f32.mxu0 0.0
    %1237 = vmatmul.mubr.f32.gmra.mxu0 %v1053
    %v1238 = vpop.f32.mrf.mxu0
    %v1239 = vadd.f32 0.0, %v1238
    %v1240 = vpop.f32.mrf.mxu0
    %1241 = vmatprep.mubr.f32.mxu0 0.0
    %1242 = vmatmul.mubr.f32.gmra.mxu0 %v1056
    %v1243 = vpop.f32.mrf.mxu0
    %v1244 = vadd.f32 0.0, %v1243
    %v1245 = vpop.f32.mrf.mxu0
    %1246 = vmatprep.mubr.f32.mxu0 0.0
    %1247 = vmatmul.mubr.f32.gmra.mxu0 %v1059
    %v1248 = vpop.f32.mrf.mxu0
    %v1249 = vadd.f32 0.0, %v1248
    %v1250 = vpop.f32.mrf.mxu0
    %1251 = vmatprep.mubr.f32.mxu0 0.0
    %1252 = vmatmul.mubr.f32.gmra.mxu0 %v1062
    %v1253 = vpop.f32.mrf.mxu0
    %v1254 = vadd.f32 0.0, %v1253
    %v1255 = vpop.f32.mrf.mxu0
    %1256 = vmatprep.mubr.f32.mxu0 0.0
    %1257 = vmatmul.mubr.f32.gmra.mxu0 %v1065
    %v1258 = vpop.f32.mrf.mxu0
    %v1259 = vadd.f32 0.0, %v1258
    %v1260 = vpop.f32.mrf.mxu0
    %1261 = vmatprep.mubr.f32.mxu0 0.0
    %1262 = vmatmul.mubr.f32.gmra.mxu0 %v1068
    %v1263 = vpop.f32.mrf.mxu0
    %v1264 = vadd.f32 0.0, %v1263
    %v1265 = vpop.f32.mrf.mxu0
    %1266 = vmatprep.mubr.f32.mxu0 0.0
    %1267 = vmatmul.mubr.f32.gmra.mxu0 %v1071
    %v1268 = vpop.f32.mrf.mxu0
    %v1269 = vadd.f32 0.0, %v1268
    %v1270 = vpop.f32.mrf.mxu0
    %1271 = vmatprep.mubr.f32.mxu0 0.0
    %1272 = vmatmul.mubr.f32.gmra.mxu0 %v1074
    %v1273 = vpop.f32.mrf.mxu0
    %v1274 = vadd.f32 0.0, %v1273
    %v1275 = vpop.f32.mrf.mxu0
    %1276 = vmatprep.mubr.f32.mxu0 0.0
    %1277 = vmatmul.mubr.f32.gmra.mxu0 %v1077
    %v1278 = vpop.f32.mrf.mxu0
    %v1279 = vadd.f32 0.0, %v1278
    %v1280 = vpop.f32.mrf.mxu0
    %1281 = vmatprep.mubr.f32.mxu0 0.0
    %1282 = vmatmul.mubr.f32.gmra.mxu0 %v1080
    %v1283 = vpop.f32.mrf.mxu0
    %v1284 = vadd.f32 0.0, %v1283
    %v1285 = vpop.f32.mrf.mxu0
    %1286 = vmatprep.mubr.f32.mxu0 0.0
    %1287 = vmatmul.mubr.f32.gmra.mxu0 %v1083
    %v1288 = vpop.f32.mrf.mxu0
    %v1289 = vadd.f32 0.0, %v1288
    %v1290 = vpop.f32.mrf.mxu0
    %1291 = vmatprep.mubr.f32.mxu0 0.0
    %1292 = vmatmul.mubr.f32.gmra.mxu0 %v1086
    %v1293 = vpop.f32.mrf.mxu0
    %v1294 = vadd.f32 0.0, %v1293
    %v1295 = vpop.f32.mrf.mxu0
    %1296 = vmatprep.mubr.f32.mxu0 0.0
    %1297 = vmatmul.mubr.f32.gmra.mxu0 %v1089
    %v1298 = vpop.f32.mrf.mxu0
    %v1299 = vadd.f32 0.0, %v1298
    %v1300 = vpop.f32.mrf.mxu0
    %1301 = vmatprep.mubr.f32.mxu0 0.0
    %1302 = vmatmul.mubr.f32.gmra.mxu0 %v1092
    %v1303 = vpop.f32.mrf.mxu0
    %v1304 = vadd.f32 0.0, %v1303
    %v1305 = vpop.f32.mrf.mxu0
    %1306 = vmatprep.mubr.f32.mxu0 0.0
    %1307 = vmatmul.mubr.f32.gmra.mxu0 %v1095
    %v1308 = vpop.f32.mrf.mxu0
    %v1309 = vadd.f32 0.0, %v1308
    %v1310 = vpop.f32.mrf.mxu0
    %1311 = vmatprep.mubr.f32.mxu0 0.0
    %1312 = vmatmul.mubr.f32.gmra.mxu0 %v1098
    %v1313 = vpop.f32.mrf.mxu0
    %v1314 = vadd.f32 0.0, %v1313
    %v1315 = vpop.f32.mrf.mxu0
    %1316 = vmatprep.mubr.f32.mxu0 0.0
    %1317 = vmatmul.mubr.f32.gmra.mxu0 %v1101
    %v1318 = vpop.f32.mrf.mxu0
    %v1319 = vadd.f32 0.0, %v1318
    %v1320 = vpop.f32.mrf.mxu0
    %1321 = vmatprep.mubr.f32.mxu0 0.0
    %1322 = vmatmul.mubr.f32.gmra.mxu0 %v1104
    %v1323 = vpop.f32.mrf.mxu0
    %v1324 = vadd.f32 0.0, %v1323
    %v1325 = vpop.f32.mrf.mxu0
    %1326 = vmatprep.mubr.f32.mxu0 0.0
    %1327 = vmatmul.mubr.f32.gmra.mxu0 %v1107
    %v1328 = vpop.f32.mrf.mxu0
    %v1329 = vadd.f32 0.0, %v1328
    %v1330 = vpop.f32.mrf.mxu0
    %1331 = vmatprep.mubr.f32.mxu0 0.0
    %1332 = vmatmul.mubr.f32.gmra.mxu0 %v1110
    %v1333 = vpop.f32.mrf.mxu0
    %v1334 = vadd.f32 0.0, %v1333
    %v1335 = vpop.f32.mrf.mxu0
    %1336 = vdwg.mxu0
    %v1337 = vmul.f32 %v1179, %v1179
    %v1338 = vmul.f32 %v1184, %v1184
    %v1339 = vmul.f32 %v1189, %v1189
    %v1340 = vmul.f32 %v1194, %v1194
    %v1341 = vmul.f32 %v1199, %v1199
    %v1342 = vmul.f32 %v1204, %v1204
    %v1343 = vmul.f32 %v1209, %v1209
    %v1344 = vmul.f32 %v1214, %v1214
    %v1345 = vmul.f32 %v1219, %v1219
    %v1346 = vmul.f32 %v1224, %v1224
    %v1347 = vmul.f32 %v1229, %v1229
    %v1348 = vmul.f32 %v1234, %v1234
    %v1349 = vmul.f32 %v1239, %v1239
    %v1350 = vmul.f32 %v1244, %v1244
    %v1351 = vmul.f32 %v1249, %v1249
    %v1352 = vmul.f32 %v1254, %v1254
    %v1353 = vmul.f32 %v1259, %v1259
    %v1354 = vmul.f32 %v1264, %v1264
    %v1355 = vmul.f32 %v1269, %v1269
    %v1356 = vmul.f32 %v1274, %v1274
    %v1357 = vmul.f32 %v1279, %v1279
    %v1358 = vmul.f32 %v1284, %v1284
    %v1359 = vmul.f32 %v1289, %v1289
    %v1360 = vmul.f32 %v1294, %v1294
    %v1361 = vmul.f32 %v1299, %v1299
    %v1362 = vmul.f32 %v1304, %v1304
    %v1363 = vmul.f32 %v1309, %v1309
    %v1364 = vmul.f32 %v1314, %v1314
    %v1365 = vmul.f32 %v1319, %v1319
    %v1366 = vmul.f32 %v1324, %v1324
    %v1367 = vmul.f32 %v1329, %v1329
    %v1368 = vmul.f32 %v1334, %v1334
    %vm1369 = vcmask 23552
    %v1370 = vsel %vm1369, %v1337, 0.0
    %1371 = vadd.xlane.f32.xlu0 %v1370
    %v1372 = vpop.xlane.xlu0 %1371
    %v1373 = vsel %vm1369, %v1338, 0.0
    %1374 = vadd.xlane.f32.xlu0 %v1373
    %v1375 = vpop.xlane.xlu0 %1374
    %v1376 = vsel %vm1369, %v1339, 0.0
    %1377 = vadd.xlane.f32.xlu0 %v1376
    %v1378 = vpop.xlane.xlu0 %1377
    %v1379 = vsel %vm1369, %v1340, 0.0
    %1380 = vadd.xlane.f32.xlu0 %v1379
    %v1381 = vpop.xlane.xlu0 %1380
    %v1382 = vsel %vm1369, %v1341, 0.0
    %1383 = vadd.xlane.f32.xlu0 %v1382
    %v1384 = vpop.xlane.xlu0 %1383
    %v1385 = vsel %vm1369, %v1342, 0.0
    %1386 = vadd.xlane.f32.xlu0 %v1385
    %v1387 = vpop.xlane.xlu0 %1386
    %v1388 = vsel %vm1369, %v1343, 0.0
    %1389 = vadd.xlane.f32.xlu0 %v1388
    %v1390 = vpop.xlane.xlu0 %1389
    %v1391 = vsel %vm1369, %v1344, 0.0
    %1392 = vadd.xlane.f32.xlu0 %v1391
    %v1393 = vpop.xlane.xlu0 %1392
    %v1394 = vsel %vm1369, %v1345, 0.0
    %1395 = vadd.xlane.f32.xlu0 %v1394
    %v1396 = vpop.xlane.xlu0 %1395
    %v1397 = vsel %vm1369, %v1346, 0.0
    %1398 = vadd.xlane.f32.xlu0 %v1397
    %v1399 = vpop.xlane.xlu0 %1398
    %v1400 = vsel %vm1369, %v1347, 0.0
    %1401 = vadd.xlane.f32.xlu0 %v1400
    %v1402 = vpop.xlane.xlu0 %1401
    %v1403 = vsel %vm1369, %v1348, 0.0
    %1404 = vadd.xlane.f32.xlu0 %v1403
    %v1405 = vpop.xlane.xlu0 %1404
    %v1406 = vsel %vm1369, %v1349, 0.0
    %1407 = vadd.xlane.f32.xlu0 %v1406
    %v1408 = vpop.xlane.xlu0 %1407
    %v1409 = vsel %vm1369, %v1350, 0.0
    %1410 = vadd.xlane.f32.xlu0 %v1409
    %v1411 = vpop.xlane.xlu0 %1410
    %v1412 = vsel %vm1369, %v1351, 0.0
    %1413 = vadd.xlane.f32.xlu0 %v1412
    %v1414 = vpop.xlane.xlu0 %1413
    %v1415 = vsel %vm1369, %v1352, 0.0
    %1416 = vadd.xlane.f32.xlu0 %v1415
    %v1417 = vpop.xlane.xlu0 %1416
    %v1418 = vsel %vm1369, %v1353, 0.0
    %1419 = vadd.xlane.f32.xlu0 %v1418
    %v1420 = vpop.xlane.xlu0 %1419
    %v1421 = vsel %vm1369, %v1354, 0.0
    %1422 = vadd.xlane.f32.xlu0 %v1421
    %v1423 = vpop.xlane.xlu0 %1422
    %v1424 = vsel %vm1369, %v1355, 0.0
    %1425 = vadd.xlane.f32.xlu0 %v1424
    %v1426 = vpop.xlane.xlu0 %1425
    %v1427 = vsel %vm1369, %v1356, 0.0
    %1428 = vadd.xlane.f32.xlu0 %v1427
    %v1429 = vpop.xlane.xlu0 %1428
    %v1430 = vsel %vm1369, %v1357, 0.0
    %1431 = vadd.xlane.f32.xlu0 %v1430
    %v1432 = vpop.xlane.xlu0 %1431
    %v1433 = vsel %vm1369, %v1358, 0.0
    %1434 = vadd.xlane.f32.xlu0 %v1433
    %v1435 = vpop.xlane.xlu0 %1434
    %v1436 = vsel %vm1369, %v1359, 0.0
    %1437 = vadd.xlane.f32.xlu0 %v1436
    %v1438 = vpop.xlane.xlu0 %1437
    %v1439 = vsel %vm1369, %v1360, 0.0
    %1440 = vadd.xlane.f32.xlu0 %v1439
    %v1441 = vpop.xlane.xlu0 %1440
    %v1442 = vsel %vm1369, %v1361, 0.0
    %1443 = vadd.xlane.f32.xlu0 %v1442
    %v1444 = vpop.xlane.xlu0 %1443
    %v1445 = vsel %vm1369, %v1362, 0.0
    %1446 = vadd.xlane.f32.xlu0 %v1445
    %v1447 = vpop.xlane.xlu0 %1446
    %v1448 = vsel %vm1369, %v1363, 0.0
    %1449 = vadd.xlane.f32.xlu0 %v1448
    %v1450 = vpop.xlane.xlu0 %1449
    %v1451 = vsel %vm1369, %v1364, 0.0
    %1452 = vadd.xlane.f32.xlu0 %v1451
    %v1453 = vpop.xlane.xlu0 %1452
    %v1454 = vsel %vm1369, %v1365, 0.0
    %1455 = vadd.xlane.f32.xlu0 %v1454
    %v1456 = vpop.xlane.xlu0 %1455
    %v1457 = vsel %vm1369, %v1366, 0.0
    %1458 = vadd.xlane.f32.xlu0 %v1457
    %v1459 = vpop.xlane.xlu0 %1458
    %v1460 = vsel %vm1369, %v1367, 0.0
    %1461 = vadd.xlane.f32.xlu0 %v1460
    %v1462 = vpop.xlane.xlu0 %1461
    %v1463 = vsel %vm1369, %v1368, 0.0
    %1464 = vadd.xlane.f32.xlu0 %v1463
    %v1465 = vpop.xlane.xlu0 %1464
    %v1466 = vpack.c.bf16 %v626, %v623
    %v1467 = vpack.c.bf16 %v634, %v631
    %v1468 = vpack.c.bf16 %v642, %v639
    %v1469 = vpack.c.bf16 %v650, %v647
    %v1470 = vpack.c.bf16 %v658, %v655
    %v1471 = vpack.c.bf16 %v666, %v663
    %v1472 = vpack.c.bf16 %v674, %v671
    %v1473 = vpack.c.bf16 %v682, %v679
    %v1474 = vpack.c.bf16 %v690, %v687
    %v1475 = vpack.c.bf16 %v698, %v695
    %v1476 = vpack.c.bf16 %v706, %v703
    %v1477 = vpack.c.bf16 %v714, %v711
    %v1478 = vpack.c.bf16 %v722, %v719
    %v1479 = vpack.c.bf16 %v730, %v727
    %v1480 = vpack.c.bf16 %v738, %v735
    %v1481 = vpack.c.bf16 %v746, %v743
    %v1482 = vld [vmem:[%s3] sm:$0xf]
    %v1483 = vld [vmem:[%s3 + $0x4] sm:$0xf]
    %v1484 = vld [vmem:[%s3 + $0x8] sm:$0xf]
    %v1485 = vld [vmem:[%s3 + $0xc] sm:$0xf]
    %v1486 = vpack.c.bf16 %v835, %v832
    %v1487 = vpack.c.bf16 %v843, %v840
    %v1488 = vpack.c.bf16 %v851, %v848
    %v1489 = vpack.c.bf16 %v859, %v856
    %v1490 = vpack.c.bf16 %v867, %v864
    %v1491 = vpack.c.bf16 %v875, %v872
    %v1492 = vpack.c.bf16 %v883, %v880
    %v1493 = vpack.c.bf16 %v891, %v888
    %v1494 = vpack.c.bf16 %v899, %v896
    %v1495 = vpack.c.bf16 %v907, %v904
    %v1496 = vpack.c.bf16 %v915, %v912
    %v1497 = vpack.c.bf16 %v923, %v920
    %v1498 = vpack.c.bf16 %v931, %v928
    %v1499 = vpack.c.bf16 %v939, %v936
    %v1500 = vpack.c.bf16 %v947, %v944
    %v1501 = vpack.c.bf16 %v955, %v952
    %v1502 = vld [vmem:[%s4] sm:$0xf]
    %v1503 = vld [vmem:[%s4 + $0x4] sm:$0xf]
    %v1504 = vld [vmem:[%s4 + $0x8] sm:$0xf]
    %v1505 = vld [vmem:[%s4 + $0xc] sm:$0xf]
    %v1510 = vunpack.c.l.b16 %v1502
    %v1511 = vunpack.c.l.b16 %v1503
    %v1512 = vunpack.c.l.b16 %v1504
    %v1513 = vunpack.c.l.b16 %v1505
    %v1514 = vpack.c.b16 %v1511, %v1510
    %v1515 = vpack.c.b16 %v1513, %v1512
    %vm1518 = vcmask 261120
    %v1520 = vsel %vm1518, %v1486, 0
    %v1523 = vsel %vm1518, %v1487, 0
    %v1526 = vsel %vm1518, %v1488, 0
    %v1529 = vsel %vm1518, %v1489, 0
    %v1532 = vsel %vm1518, %v1490, 0
    %v1535 = vsel %vm1518, %v1491, 0
    %v1538 = vsel %vm1518, %v1492, 0
    %v1541 = vsel %vm1518, %v1493, 0
    %v1544 = vsel %vm1518, %v1494, 0
    %v1547 = vsel %vm1518, %v1495, 0
    %v1550 = vsel %vm1518, %v1496, 0
    %v1553 = vsel %vm1518, %v1497, 0
    %v1556 = vsel %vm1518, %v1498, 0
    %v1559 = vsel %vm1518, %v1499, 0
    %v1562 = vsel %vm1518, %v1500, 0
    %v1565 = vsel %vm1518, %v1501, 0
    %1567 = vmatprep.subr.bf16.mxu0 0
    %1568 = vmatpush1.bf16.msra.mxu0 0
    %1569 = vmatprep.subr.bf16.mxu0 0
    %1570 = vmatpush1.bf16.msra.mxu0 0
    %1571 = vmatprep.subr.bf16.mxu0 0
    %1572 = vmatpush1.bf16.msra.mxu0 0
    %1573 = vmatprep.subr.bf16.mxu0 0
    %1574 = vmatpush1.bf16.msra.mxu0 0
    %1575 = vmatprep.subr.bf16.mxu0 0
    %1576 = vmatpush1.bf16.msra.mxu0 0
    %1577 = vmatprep.subr.bf16.mxu0 0
    %1578 = vmatpush1.bf16.msra.mxu0 0
    %1579 = vmatprep.subr.bf16.mxu0 0
    %1580 = vmatpush1.bf16.msra.mxu0 %v1515
    %1581 = vmatprep.subr.bf16.mxu0 0
    %1582 = vmatpush1.bf16.msra.mxu0 %v1514
    %1583 = vmatprep.subr.bf16.mxu0 0
    %1584 = vmatpush2.bf16.msra.mxu0 0
    %1585 = vmatprep.subr.bf16.mxu0 0
    %1586 = vmatpush2.bf16.msra.mxu0 0
    %1587 = vmatprep.subr.bf16.mxu0 0
    %1588 = vmatpush2.bf16.msra.mxu0 0
    %1589 = vmatprep.subr.bf16.mxu0 0
    %1590 = vmatpush2.bf16.msra.mxu0 0
    %1591 = vmatprep.subr.bf16.mxu0 0
    %1592 = vmatpush2.bf16.msra.mxu0 0
    %1593 = vmatprep.subr.bf16.mxu0 0
    %1594 = vmatpush2.bf16.msra.mxu0 0
    %1595 = vmatprep.subr.bf16.mxu0 0
    %1596 = vmatpush2.bf16.msra.mxu0 0
    %1597 = vmatprep.subr.bf16.mxu0 0
    %1598 = vmatpush2.bf16.msra.mxu0 0
    %1599 = vmatprep.mubr.bf16.mxu0 0
    %1600 = vmatmul.mubr.bf16.gmra.mxu0 %v1520
    %v1601 = vpop.f32.mrf.mxu0
    %v1602 = vadd.f32 0.0, %v1601
    %v1603 = vpop.f32.mrf.mxu0
    %v1604 = vpop.f32.mrf.mxu0
    %v1605 = vadd.f32 0.0, %v1604
    %v1606 = vpop.f32.mrf.mxu0
    %1607 = vmatprep.mubr.bf16.mxu0 0
    %1608 = vmatmul.mubr.bf16.gmra.mxu0 %v1523
    %v1609 = vpop.f32.mrf.mxu0
    %v1610 = vadd.f32 0.0, %v1609
    %v1611 = vpop.f32.mrf.mxu0
    %v1612 = vpop.f32.mrf.mxu0
    %v1613 = vadd.f32 0.0, %v1612
    %v1614 = vpop.f32.mrf.mxu0
    %1615 = vmatprep.mubr.bf16.mxu0 0
    %1616 = vmatmul.mubr.bf16.gmra.mxu0 %v1526
    %v1617 = vpop.f32.mrf.mxu0
    %v1618 = vadd.f32 0.0, %v1617
    %v1619 = vpop.f32.mrf.mxu0
    %v1620 = vpop.f32.mrf.mxu0
    %v1621 = vadd.f32 0.0, %v1620
    %v1622 = vpop.f32.mrf.mxu0
    %1623 = vmatprep.mubr.bf16.mxu0 0
    %1624 = vmatmul.mubr.bf16.gmra.mxu0 %v1529
    %v1625 = vpop.f32.mrf.mxu0
    %v1626 = vadd.f32 0.0, %v1625
    %v1627 = vpop.f32.mrf.mxu0
    %v1628 = vpop.f32.mrf.mxu0
    %v1629 = vadd.f32 0.0, %v1628
    %v1630 = vpop.f32.mrf.mxu0
    %1631 = vmatprep.mubr.bf16.mxu0 0
    %1632 = vmatmul.mubr.bf16.gmra.mxu0 %v1532
    %v1633 = vpop.f32.mrf.mxu0
    %v1634 = vadd.f32 0.0, %v1633
    %v1635 = vpop.f32.mrf.mxu0
    %v1636 = vpop.f32.mrf.mxu0
    %v1637 = vadd.f32 0.0, %v1636
    %v1638 = vpop.f32.mrf.mxu0
    %1639 = vmatprep.mubr.bf16.mxu0 0
    %1640 = vmatmul.mubr.bf16.gmra.mxu0 %v1535
    %v1641 = vpop.f32.mrf.mxu0
    %v1642 = vadd.f32 0.0, %v1641
    %v1643 = vpop.f32.mrf.mxu0
    %v1644 = vpop.f32.mrf.mxu0
    %v1645 = vadd.f32 0.0, %v1644
    %v1646 = vpop.f32.mrf.mxu0
    %1647 = vmatprep.mubr.bf16.mxu0 0
    %1648 = vmatmul.mubr.bf16.gmra.mxu0 %v1538
    %v1649 = vpop.f32.mrf.mxu0
    %v1650 = vadd.f32 0.0, %v1649
    %v1651 = vpop.f32.mrf.mxu0
    %v1652 = vpop.f32.mrf.mxu0
    %v1653 = vadd.f32 0.0, %v1652
    %v1654 = vpop.f32.mrf.mxu0
    %1655 = vmatprep.mubr.bf16.mxu0 0
    %1656 = vmatmul.mubr.bf16.gmra.mxu0 %v1541
    %v1657 = vpop.f32.mrf.mxu0
    %v1658 = vadd.f32 0.0, %v1657
    %v1659 = vpop.f32.mrf.mxu0
    %v1660 = vpop.f32.mrf.mxu0
    %v1661 = vadd.f32 0.0, %v1660
    %v1662 = vpop.f32.mrf.mxu0
    %1663 = vmatprep.mubr.bf16.mxu0 0
    %1664 = vmatmul.mubr.bf16.gmra.mxu0 %v1544
    %v1665 = vpop.f32.mrf.mxu0
    %v1666 = vadd.f32 0.0, %v1665
    %v1667 = vpop.f32.mrf.mxu0
    %v1668 = vpop.f32.mrf.mxu0
    %v1669 = vadd.f32 0.0, %v1668
    %v1670 = vpop.f32.mrf.mxu0
    %1671 = vmatprep.mubr.bf16.mxu0 0
    %1672 = vmatmul.mubr.bf16.gmra.mxu0 %v1547
    %v1673 = vpop.f32.mrf.mxu0
    %v1674 = vadd.f32 0.0, %v1673
    %v1675 = vpop.f32.mrf.mxu0
    %v1676 = vpop.f32.mrf.mxu0
    %v1677 = vadd.f32 0.0, %v1676
    %v1678 = vpop.f32.mrf.mxu0
    %1679 = vmatprep.mubr.bf16.mxu0 0
    %1680 = vmatmul.mubr.bf16.gmra.mxu0 %v1550
    %v1681 = vpop.f32.mrf.mxu0
    %v1682 = vadd.f32 0.0, %v1681
    %v1683 = vpop.f32.mrf.mxu0
    %v1684 = vpop.f32.mrf.mxu0
    %v1685 = vadd.f32 0.0, %v1684
    %v1686 = vpop.f32.mrf.mxu0
    %1687 = vmatprep.mubr.bf16.mxu0 0
    %1688 = vmatmul.mubr.bf16.gmra.mxu0 %v1553
    %v1689 = vpop.f32.mrf.mxu0
    %v1690 = vadd.f32 0.0, %v1689
    %v1691 = vpop.f32.mrf.mxu0
    %v1692 = vpop.f32.mrf.mxu0
    %v1693 = vadd.f32 0.0, %v1692
    %v1694 = vpop.f32.mrf.mxu0
    %1695 = vmatprep.mubr.bf16.mxu0 0
    %1696 = vmatmul.mubr.bf16.gmra.mxu0 %v1556
    %v1697 = vpop.f32.mrf.mxu0
    %v1698 = vadd.f32 0.0, %v1697
    %v1699 = vpop.f32.mrf.mxu0
    %v1700 = vpop.f32.mrf.mxu0
    %v1701 = vadd.f32 0.0, %v1700
    %v1702 = vpop.f32.mrf.mxu0
    %1703 = vmatprep.mubr.bf16.mxu0 0
    %1704 = vmatmul.mubr.bf16.gmra.mxu0 %v1559
    %v1705 = vpop.f32.mrf.mxu0
    %v1706 = vadd.f32 0.0, %v1705
    %v1707 = vpop.f32.mrf.mxu0
    %v1708 = vpop.f32.mrf.mxu0
    %v1709 = vadd.f32 0.0, %v1708
    %v1710 = vpop.f32.mrf.mxu0
    %1711 = vmatprep.mubr.bf16.mxu0 0
    %1712 = vmatmul.mubr.bf16.gmra.mxu0 %v1562
    %v1713 = vpop.f32.mrf.mxu0
    %v1714 = vadd.f32 0.0, %v1713
    %v1715 = vpop.f32.mrf.mxu0
    %v1716 = vpop.f32.mrf.mxu0
    %v1717 = vadd.f32 0.0, %v1716
    %v1718 = vpop.f32.mrf.mxu0
    %1719 = vmatprep.mubr.bf16.mxu0 0
    %1720 = vmatmul.mubr.bf16.gmra.mxu0 %v1565
    %v1721 = vpop.f32.mrf.mxu0
    %v1722 = vadd.f32 0.0, %v1721
    %v1723 = vpop.f32.mrf.mxu0
    %v1724 = vpop.f32.mrf.mxu0
    %v1725 = vadd.f32 0.0, %v1724
    %v1726 = vpop.f32.mrf.mxu0
    %1727 = vdwg.mxu0
    %v1732 = vunpack.c.l.b16 %v1482
    %v1733 = vunpack.c.l.b16 %v1483
    %v1734 = vunpack.c.l.b16 %v1484
    %v1735 = vunpack.c.l.b16 %v1485
    %v1736 = vpack.c.b16 %v1733, %v1732
    %v1737 = vpack.c.b16 %v1735, %v1734
    %v1741 = vsel %vm1518, %v1466, 0
    %v1744 = vsel %vm1518, %v1467, 0
    %v1747 = vsel %vm1518, %v1468, 0
    %v1750 = vsel %vm1518, %v1469, 0
    %v1753 = vsel %vm1518, %v1470, 0
    %v1756 = vsel %vm1518, %v1471, 0
    %v1759 = vsel %vm1518, %v1472, 0
    %v1762 = vsel %vm1518, %v1473, 0
    %v1765 = vsel %vm1518, %v1474, 0
    %v1768 = vsel %vm1518, %v1475, 0
    %v1771 = vsel %vm1518, %v1476, 0
    %v1774 = vsel %vm1518, %v1477, 0
    %v1777 = vsel %vm1518, %v1478, 0
    %v1780 = vsel %vm1518, %v1479, 0
    %v1783 = vsel %vm1518, %v1480, 0
    %v1786 = vsel %vm1518, %v1481, 0
    %1788 = vmatprep.subr.bf16.mxu0 0
    %1789 = vmatpush1.bf16.msra.mxu0 0
    %1790 = vmatprep.subr.bf16.mxu0 0
    %1791 = vmatpush1.bf16.msra.mxu0 0
    %1792 = vmatprep.subr.bf16.mxu0 0
    %1793 = vmatpush1.bf16.msra.mxu0 0
    %1794 = vmatprep.subr.bf16.mxu0 0
    %1795 = vmatpush1.bf16.msra.mxu0 0
    %1796 = vmatprep.subr.bf16.mxu0 0
    %1797 = vmatpush1.bf16.msra.mxu0 0
    %1798 = vmatprep.subr.bf16.mxu0 0
    %1799 = vmatpush1.bf16.msra.mxu0 0
    %1800 = vmatprep.subr.bf16.mxu0 0
    %1801 = vmatpush1.bf16.msra.mxu0 %v1737
    %1802 = vmatprep.subr.bf16.mxu0 0
    %1803 = vmatpush1.bf16.msra.mxu0 %v1736
    %1804 = vmatprep.subr.bf16.mxu0 0
    %1805 = vmatpush2.bf16.msra.mxu0 0
    %1806 = vmatprep.subr.bf16.mxu0 0
    %1807 = vmatpush2.bf16.msra.mxu0 0
    %1808 = vmatprep.subr.bf16.mxu0 0
    %1809 = vmatpush2.bf16.msra.mxu0 0
    %1810 = vmatprep.subr.bf16.mxu0 0
    %1811 = vmatpush2.bf16.msra.mxu0 0
    %1812 = vmatprep.subr.bf16.mxu0 0
    %1813 = vmatpush2.bf16.msra.mxu0 0
    %1814 = vmatprep.subr.bf16.mxu0 0
    %1815 = vmatpush2.bf16.msra.mxu0 0
    %1816 = vmatprep.subr.bf16.mxu0 0
    %1817 = vmatpush2.bf16.msra.mxu0 0
    %1818 = vmatprep.subr.bf16.mxu0 0
    %1819 = vmatpush2.bf16.msra.mxu0 0
    %1820 = vmatprep.mubr.bf16.mxu0 0
    %1821 = vmatmul.mubr.bf16.gmra.mxu0 %v1741
    %v1822 = vpop.f32.mrf.mxu0
    %v1823 = vadd.f32 %v1602, %v1822
    %v1824 = vpop.f32.mrf.mxu0
    %v1825 = vpop.f32.mrf.mxu0
    %v1826 = vadd.f32 %v1605, %v1825
    %v1827 = vpop.f32.mrf.mxu0
    %1828 = vmatprep.mubr.bf16.mxu0 0
    %1829 = vmatmul.mubr.bf16.gmra.mxu0 %v1744
    %v1830 = vpop.f32.mrf.mxu0
    %v1831 = vadd.f32 %v1610, %v1830
    %v1832 = vpop.f32.mrf.mxu0
    %v1833 = vpop.f32.mrf.mxu0
    %v1834 = vadd.f32 %v1613, %v1833
    %v1835 = vpop.f32.mrf.mxu0
    %1836 = vmatprep.mubr.bf16.mxu0 0
    %1837 = vmatmul.mubr.bf16.gmra.mxu0 %v1747
    %v1838 = vpop.f32.mrf.mxu0
    %v1839 = vadd.f32 %v1618, %v1838
    %v1840 = vpop.f32.mrf.mxu0
    %v1841 = vpop.f32.mrf.mxu0
    %v1842 = vadd.f32 %v1621, %v1841
    %v1843 = vpop.f32.mrf.mxu0
    %1844 = vmatprep.mubr.bf16.mxu0 0
    %1845 = vmatmul.mubr.bf16.gmra.mxu0 %v1750
    %v1846 = vpop.f32.mrf.mxu0
    %v1847 = vadd.f32 %v1626, %v1846
    %v1848 = vpop.f32.mrf.mxu0
    %v1849 = vpop.f32.mrf.mxu0
    %v1850 = vadd.f32 %v1629, %v1849
    %v1851 = vpop.f32.mrf.mxu0
    %1852 = vmatprep.mubr.bf16.mxu0 0
    %1853 = vmatmul.mubr.bf16.gmra.mxu0 %v1753
    %v1854 = vpop.f32.mrf.mxu0
    %v1855 = vadd.f32 %v1634, %v1854
    %v1856 = vpop.f32.mrf.mxu0
    %v1857 = vpop.f32.mrf.mxu0
    %v1858 = vadd.f32 %v1637, %v1857
    %v1859 = vpop.f32.mrf.mxu0
    %1860 = vmatprep.mubr.bf16.mxu0 0
    %1861 = vmatmul.mubr.bf16.gmra.mxu0 %v1756
    %v1862 = vpop.f32.mrf.mxu0
    %v1863 = vadd.f32 %v1642, %v1862
    %v1864 = vpop.f32.mrf.mxu0
    %v1865 = vpop.f32.mrf.mxu0
    %v1866 = vadd.f32 %v1645, %v1865
    %v1867 = vpop.f32.mrf.mxu0
    %1868 = vmatprep.mubr.bf16.mxu0 0
    %1869 = vmatmul.mubr.bf16.gmra.mxu0 %v1759
    %v1870 = vpop.f32.mrf.mxu0
    %v1871 = vadd.f32 %v1650, %v1870
    %v1872 = vpop.f32.mrf.mxu0
    %v1873 = vpop.f32.mrf.mxu0
    %v1874 = vadd.f32 %v1653, %v1873
    %v1875 = vpop.f32.mrf.mxu0
    %1876 = vmatprep.mubr.bf16.mxu0 0
    %1877 = vmatmul.mubr.bf16.gmra.mxu0 %v1762
    %v1878 = vpop.f32.mrf.mxu0
    %v1879 = vadd.f32 %v1658, %v1878
    %v1880 = vpop.f32.mrf.mxu0
    %v1881 = vpop.f32.mrf.mxu0
    %v1882 = vadd.f32 %v1661, %v1881
    %v1883 = vpop.f32.mrf.mxu0
    %1884 = vmatprep.mubr.bf16.mxu0 0
    %1885 = vmatmul.mubr.bf16.gmra.mxu0 %v1765
    %v1886 = vpop.f32.mrf.mxu0
    %v1887 = vadd.f32 %v1666, %v1886
    %v1888 = vpop.f32.mrf.mxu0
    %v1889 = vpop.f32.mrf.mxu0
    %v1890 = vadd.f32 %v1669, %v1889
    %v1891 = vpop.f32.mrf.mxu0
    %1892 = vmatprep.mubr.bf16.mxu0 0
    %1893 = vmatmul.mubr.bf16.gmra.mxu0 %v1768
    %v1894 = vpop.f32.mrf.mxu0
    %v1895 = vadd.f32 %v1674, %v1894
    %v1896 = vpop.f32.mrf.mxu0
    %v1897 = vpop.f32.mrf.mxu0
    %v1898 = vadd.f32 %v1677, %v1897
    %v1899 = vpop.f32.mrf.mxu0
    %1900 = vmatprep.mubr.bf16.mxu0 0
    %1901 = vmatmul.mubr.bf16.gmra.mxu0 %v1771
    %v1902 = vpop.f32.mrf.mxu0
    %v1903 = vadd.f32 %v1682, %v1902
    %v1904 = vpop.f32.mrf.mxu0
    %v1905 = vpop.f32.mrf.mxu0
    %v1906 = vadd.f32 %v1685, %v1905
    %v1907 = vpop.f32.mrf.mxu0
    %1908 = vmatprep.mubr.bf16.mxu0 0
    %1909 = vmatmul.mubr.bf16.gmra.mxu0 %v1774
    %v1910 = vpop.f32.mrf.mxu0
    %v1911 = vadd.f32 %v1690, %v1910
    %v1912 = vpop.f32.mrf.mxu0
    %v1913 = vpop.f32.mrf.mxu0
    %v1914 = vadd.f32 %v1693, %v1913
    %v1915 = vpop.f32.mrf.mxu0
    %1916 = vmatprep.mubr.bf16.mxu0 0
    %1917 = vmatmul.mubr.bf16.gmra.mxu0 %v1777
    %v1918 = vpop.f32.mrf.mxu0
    %v1919 = vadd.f32 %v1698, %v1918
    %v1920 = vpop.f32.mrf.mxu0
    %v1921 = vpop.f32.mrf.mxu0
    %v1922 = vadd.f32 %v1701, %v1921
    %v1923 = vpop.f32.mrf.mxu0
    %1924 = vmatprep.mubr.bf16.mxu0 0
    %1925 = vmatmul.mubr.bf16.gmra.mxu0 %v1780
    %v1926 = vpop.f32.mrf.mxu0
    %v1927 = vadd.f32 %v1706, %v1926
    %v1928 = vpop.f32.mrf.mxu0
    %v1929 = vpop.f32.mrf.mxu0
    %v1930 = vadd.f32 %v1709, %v1929
    %v1931 = vpop.f32.mrf.mxu0
    %1932 = vmatprep.mubr.bf16.mxu0 0
    %1933 = vmatmul.mubr.bf16.gmra.mxu0 %v1783
    %v1934 = vpop.f32.mrf.mxu0
    %v1935 = vadd.f32 %v1714, %v1934
    %v1936 = vpop.f32.mrf.mxu0
    %v1937 = vpop.f32.mrf.mxu0
    %v1938 = vadd.f32 %v1717, %v1937
    %v1939 = vpop.f32.mrf.mxu0
    %1940 = vmatprep.mubr.bf16.mxu0 0
    %1941 = vmatmul.mubr.bf16.gmra.mxu0 %v1786
    %v1942 = vpop.f32.mrf.mxu0
    %v1943 = vadd.f32 %v1722, %v1942
    %v1944 = vpop.f32.mrf.mxu0
    %v1945 = vpop.f32.mrf.mxu0
    %v1946 = vadd.f32 %v1725, %v1945
    %v1947 = vpop.f32.mrf.mxu0
    %1948 = vdwg.mxu0
    %v1949 = vld [vmem:[%s5] sm:$0x1]
    %v1951 = vlaneseq
    %v1952 = vshrl.u32 %v1951, 7
    %v1953 = vsub.s32 0, %v1952
    %v1954 = vrot.slane %v1949, %v1953
    %v1956 = vmul.f32 %v1372, %v1954
    %v1957 = vmul.f32 %v1375, %v1954
    %v1958 = vmul.f32 %v1378, %v1954
    %v1959 = vmul.f32 %v1381, %v1954
    %v1960 = vmul.f32 %v1384, %v1954
    %v1961 = vmul.f32 %v1387, %v1954
    %v1962 = vmul.f32 %v1390, %v1954
    %v1963 = vmul.f32 %v1393, %v1954
    %v1964 = vmul.f32 %v1396, %v1954
    %v1965 = vmul.f32 %v1399, %v1954
    %v1966 = vmul.f32 %v1402, %v1954
    %v1967 = vmul.f32 %v1405, %v1954
    %v1968 = vmul.f32 %v1408, %v1954
    %v1969 = vmul.f32 %v1411, %v1954
    %v1970 = vmul.f32 %v1414, %v1954
    %v1971 = vmul.f32 %v1417, %v1954
    %v1972 = vmul.f32 %v1420, %v1954
    %v1973 = vmul.f32 %v1423, %v1954
    %v1974 = vmul.f32 %v1426, %v1954
    %v1975 = vmul.f32 %v1429, %v1954
    %v1976 = vmul.f32 %v1432, %v1954
    %v1977 = vmul.f32 %v1435, %v1954
    %v1978 = vmul.f32 %v1438, %v1954
    %v1979 = vmul.f32 %v1441, %v1954
    %v1980 = vmul.f32 %v1444, %v1954
    %v1981 = vmul.f32 %v1447, %v1954
    %v1982 = vmul.f32 %v1450, %v1954
    %v1983 = vmul.f32 %v1453, %v1954
    %v1984 = vmul.f32 %v1456, %v1954
    %v1985 = vmul.f32 %v1459, %v1954
    %v1986 = vmul.f32 %v1462, %v1954
    %v1987 = vmul.f32 %v1465, %v1954
    %v1988 = vadd.f32 %v1823, %v1956
    %v1989 = vadd.f32 %v1826, %v1957
    %v1990 = vadd.f32 %v1831, %v1958
    %v1991 = vadd.f32 %v1834, %v1959
    %v1992 = vadd.f32 %v1839, %v1960
    %v1993 = vadd.f32 %v1842, %v1961
    %v1994 = vadd.f32 %v1847, %v1962
    %v1995 = vadd.f32 %v1850, %v1963
    %v1996 = vadd.f32 %v1855, %v1964
    %v1997 = vadd.f32 %v1858, %v1965
    %v1998 = vadd.f32 %v1863, %v1966
    %v1999 = vadd.f32 %v1866, %v1967
    %v2000 = vadd.f32 %v1871, %v1968
    %v2001 = vadd.f32 %v1874, %v1969
    %v2002 = vadd.f32 %v1879, %v1970
    %v2003 = vadd.f32 %v1882, %v1971
    %v2004 = vadd.f32 %v1887, %v1972
    %v2005 = vadd.f32 %v1890, %v1973
    %v2006 = vadd.f32 %v1895, %v1974
    %v2007 = vadd.f32 %v1898, %v1975
    %v2008 = vadd.f32 %v1903, %v1976
    %v2009 = vadd.f32 %v1906, %v1977
    %v2010 = vadd.f32 %v1911, %v1978
    %v2011 = vadd.f32 %v1914, %v1979
    %v2012 = vadd.f32 %v1919, %v1980
    %v2013 = vadd.f32 %v1922, %v1981
    %v2014 = vadd.f32 %v1927, %v1982
    %v2015 = vadd.f32 %v1930, %v1983
    %v2016 = vadd.f32 %v1935, %v1984
    %v2017 = vadd.f32 %v1938, %v1985
    %v2018 = vadd.f32 %v1943, %v1986
    %v2019 = vadd.f32 %v1946, %v1987
    %v2020 = vld [vmem:[%s6] sm:$0x1]
    %v2022 = vlaneseq
    %v2023 = vshrl.u32 %v2022, 7
    %v2024 = vsub.s32 0, %v2023
    %v2025 = vrot.slane %v2020, %v2024
    %v2027 = vadd.f32 %v1988, %v2025
    %v2028 = vadd.f32 %v1989, %v2025
    %v2029 = vadd.f32 %v1990, %v2025
    %v2030 = vadd.f32 %v1991, %v2025
    %v2031 = vadd.f32 %v1992, %v2025
    %v2032 = vadd.f32 %v1993, %v2025
    %v2033 = vadd.f32 %v1994, %v2025
    %v2034 = vadd.f32 %v1995, %v2025
    %v2035 = vadd.f32 %v1996, %v2025
    %v2036 = vadd.f32 %v1997, %v2025
    %v2037 = vadd.f32 %v1998, %v2025
    %v2038 = vadd.f32 %v1999, %v2025
    %v2039 = vadd.f32 %v2000, %v2025
    %v2040 = vadd.f32 %v2001, %v2025
    %v2041 = vadd.f32 %v2002, %v2025
    %v2042 = vadd.f32 %v2003, %v2025
    %v2043 = vadd.f32 %v2004, %v2025
    %v2044 = vadd.f32 %v2005, %v2025
    %v2045 = vadd.f32 %v2006, %v2025
    %v2046 = vadd.f32 %v2007, %v2025
    %v2047 = vadd.f32 %v2008, %v2025
    %v2048 = vadd.f32 %v2009, %v2025
    %v2049 = vadd.f32 %v2010, %v2025
    %v2050 = vadd.f32 %v2011, %v2025
    %v2051 = vadd.f32 %v2012, %v2025
    %v2052 = vadd.f32 %v2013, %v2025
    %v2053 = vadd.f32 %v2014, %v2025
    %v2054 = vadd.f32 %v2015, %v2025
    %v2055 = vadd.f32 %v2016, %v2025
    %v2056 = vadd.f32 %v2017, %v2025
    %v2057 = vadd.f32 %v2018, %v2025
    %v2058 = vadd.f32 %v2019, %v2025
    %v2059 = vtanh.pop %v2027
    %v2060 = vtanh.pop %v2028
    %v2061 = vtanh.pop %v2029
    %v2062 = vtanh.pop %v2030
    %v2063 = vtanh.pop %v2031
    %v2064 = vtanh.pop %v2032
    %v2065 = vtanh.pop %v2033
    %v2066 = vtanh.pop %v2034
    %v2067 = vtanh.pop %v2035
    %v2068 = vtanh.pop %v2036
    %v2069 = vtanh.pop %v2037
    %v2070 = vtanh.pop %v2038
    %v2071 = vtanh.pop %v2039
    %v2072 = vtanh.pop %v2040
    %v2073 = vtanh.pop %v2041
    %v2074 = vtanh.pop %v2042
    %v2075 = vtanh.pop %v2043
    %v2076 = vtanh.pop %v2044
    %v2077 = vtanh.pop %v2045
    %v2078 = vtanh.pop %v2046
    %v2079 = vtanh.pop %v2047
    %v2080 = vtanh.pop %v2048
    %v2081 = vtanh.pop %v2049
    %v2082 = vtanh.pop %v2050
    %v2083 = vtanh.pop %v2051
    %v2084 = vtanh.pop %v2052
    %v2085 = vtanh.pop %v2053
    %v2086 = vtanh.pop %v2054
    %v2087 = vtanh.pop %v2055
    %v2088 = vtanh.pop %v2056
    %v2089 = vtanh.pop %v2057
    %v2090 = vtanh.pop %v2058
    %v2091 = vsub.f32 %v2027, %v2059
    %v2092 = vsub.f32 %v2028, %v2060
    %v2093 = vsub.f32 %v2029, %v2061
    %v2094 = vsub.f32 %v2030, %v2062
    %v2095 = vsub.f32 %v2031, %v2063
    %v2096 = vsub.f32 %v2032, %v2064
    %v2097 = vsub.f32 %v2033, %v2065
    %v2098 = vsub.f32 %v2034, %v2066
    %v2099 = vsub.f32 %v2035, %v2067
    %v2100 = vsub.f32 %v2036, %v2068
    %v2101 = vsub.f32 %v2037, %v2069
    %v2102 = vsub.f32 %v2038, %v2070
    %v2103 = vsub.f32 %v2039, %v2071
    %v2104 = vsub.f32 %v2040, %v2072
    %v2105 = vsub.f32 %v2041, %v2073
    %v2106 = vsub.f32 %v2042, %v2074
    %v2107 = vsub.f32 %v2043, %v2075
    %v2108 = vsub.f32 %v2044, %v2076
    %v2109 = vsub.f32 %v2045, %v2077
    %v2110 = vsub.f32 %v2046, %v2078
    %v2111 = vsub.f32 %v2047, %v2079
    %v2112 = vsub.f32 %v2048, %v2080
    %v2113 = vsub.f32 %v2049, %v2081
    %v2114 = vsub.f32 %v2050, %v2082
    %v2115 = vsub.f32 %v2051, %v2083
    %v2116 = vsub.f32 %v2052, %v2084
    %v2117 = vsub.f32 %v2053, %v2085
    %v2118 = vsub.f32 %v2054, %v2086
    %v2119 = vsub.f32 %v2055, %v2087
    %v2120 = vsub.f32 %v2056, %v2088
    %v2121 = vsub.f32 %v2057, %v2089
    %v2122 = vsub.f32 %v2058, %v2090
    %v2123 = vpack.c.bf16 %v2092, %v2091
    %v2124 = vpack.c.bf16 %v2094, %v2093
    %v2125 = vpack.c.bf16 %v2096, %v2095
    %v2126 = vpack.c.bf16 %v2098, %v2097
    %v2127 = vpack.c.bf16 %v2100, %v2099
    %v2128 = vpack.c.bf16 %v2102, %v2101
    %v2129 = vpack.c.bf16 %v2104, %v2103
    %v2130 = vpack.c.bf16 %v2106, %v2105
    %v2131 = vpack.c.bf16 %v2108, %v2107
    %v2132 = vpack.c.bf16 %v2110, %v2109
    %v2133 = vpack.c.bf16 %v2112, %v2111
    %v2134 = vpack.c.bf16 %v2114, %v2113
    %v2135 = vpack.c.bf16 %v2116, %v2115
    %v2136 = vpack.c.bf16 %v2118, %v2117
    %v2137 = vpack.c.bf16 %v2120, %v2119
    %v2138 = vpack.c.bf16 %v2122, %v2121
    %v2139 = vld [vmem:[%s8] sm:$0xf]
    %v2140 = vld [vmem:[%s8 + $0x4] sm:$0xf]
    %v2141 = vld [vmem:[%s8 + $0x8] sm:$0xf]
    %v2142 = vld [vmem:[%s8 + $0xc] sm:$0xf]
    %v2143 = vld [vmem:[%s9] sm:$0x1]
    %v2145 = vlaneseq
    %v2146 = vshrl.u32 %v2145, 7
    %v2147 = vsub.s32 0, %v2146
    %v2148 = vrot.slane %v2143, %v2147
    %v2154 = vunpack.c.l.b16 %v2139
    %v2155 = vunpack.c.l.b16 %v2140
    %v2156 = vunpack.c.l.b16 %v2141
    %v2157 = vunpack.c.l.b16 %v2142
    %v2158 = vpack.c.b16 %v2155, %v2154
    %v2159 = vpack.c.b16 %v2157, %v2156
    %v2163 = vsel %vm1518, %v2123, 0
    %v2166 = vsel %vm1518, %v2124, 0
    %v2169 = vsel %vm1518, %v2125, 0
    %v2172 = vsel %vm1518, %v2126, 0
    %v2175 = vsel %vm1518, %v2127, 0
    %v2178 = vsel %vm1518, %v2128, 0
    %v2181 = vsel %vm1518, %v2129, 0
    %v2184 = vsel %vm1518, %v2130, 0
    %v2187 = vsel %vm1518, %v2131, 0
    %v2190 = vsel %vm1518, %v2132, 0
    %v2193 = vsel %vm1518, %v2133, 0
    %v2196 = vsel %vm1518, %v2134, 0
    %v2199 = vsel %vm1518, %v2135, 0
    %v2202 = vsel %vm1518, %v2136, 0
    %v2205 = vsel %vm1518, %v2137, 0
    %v2208 = vsel %vm1518, %v2138, 0
    %2210 = vmatprep.subr.bf16.mxu0 0
    %2211 = vmatpush1.bf16.msra.mxu0 0
    %2212 = vmatprep.subr.bf16.mxu0 0
    %2213 = vmatpush1.bf16.msra.mxu0 0
    %2214 = vmatprep.subr.bf16.mxu0 0
    %2215 = vmatpush1.bf16.msra.mxu0 0
    %2216 = vmatprep.subr.bf16.mxu0 0
    %2217 = vmatpush1.bf16.msra.mxu0 0
    %2218 = vmatprep.subr.bf16.mxu0 0
    %2219 = vmatpush1.bf16.msra.mxu0 0
    %2220 = vmatprep.subr.bf16.mxu0 0
    %2221 = vmatpush1.bf16.msra.mxu0 0
    %2222 = vmatprep.subr.bf16.mxu0 0
    %2223 = vmatpush1.bf16.msra.mxu0 %v2159
    %2224 = vmatprep.subr.bf16.mxu0 0
    %2225 = vmatpush1.bf16.msra.mxu0 %v2158
    %2226 = vmatprep.subr.bf16.mxu0 0
    %2227 = vmatpush2.bf16.msra.mxu0 0
    %2228 = vmatprep.subr.bf16.mxu0 0
    %2229 = vmatpush2.bf16.msra.mxu0 0
    %2230 = vmatprep.subr.bf16.mxu0 0
    %2231 = vmatpush2.bf16.msra.mxu0 0
    %2232 = vmatprep.subr.bf16.mxu0 0
    %2233 = vmatpush2.bf16.msra.mxu0 0
    %2234 = vmatprep.subr.bf16.mxu0 0
    %2235 = vmatpush2.bf16.msra.mxu0 0
    %2236 = vmatprep.subr.bf16.mxu0 0
    %2237 = vmatpush2.bf16.msra.mxu0 0
    %2238 = vmatprep.subr.bf16.mxu0 0
    %2239 = vmatpush2.bf16.msra.mxu0 0
    %2240 = vmatprep.subr.bf16.mxu0 0
    %2241 = vmatpush2.bf16.msra.mxu0 0
    %2242 = vmatprep.mubr.bf16.mxu0 0
    %2243 = vmatmul.mubr.bf16.gmra.mxu0 %v2163
    %v2244 = vpop.f32.mrf.mxu0
    %v2245 = vadd.f32 %v2148, %v2244
    %v2246 = vpop.f32.mrf.mxu0
    %v2247 = vpop.f32.mrf.mxu0
    %v2248 = vadd.f32 %v2148, %v2247
    %v2249 = vpop.f32.mrf.mxu0
    %2250 = vmatprep.mubr.bf16.mxu0 0
    %2251 = vmatmul.mubr.bf16.gmra.mxu0 %v2166
    %v2252 = vpop.f32.mrf.mxu0
    %v2253 = vadd.f32 %v2148, %v2252
    %v2254 = vpop.f32.mrf.mxu0
    %v2255 = vpop.f32.mrf.mxu0
    %v2256 = vadd.f32 %v2148, %v2255
    %v2257 = vpop.f32.mrf.mxu0
    %2258 = vmatprep.mubr.bf16.mxu0 0
    %2259 = vmatmul.mubr.bf16.gmra.mxu0 %v2169
    %v2260 = vpop.f32.mrf.mxu0
    %v2261 = vadd.f32 %v2148, %v2260
    %v2262 = vpop.f32.mrf.mxu0
    %v2263 = vpop.f32.mrf.mxu0
    %v2264 = vadd.f32 %v2148, %v2263
    %v2265 = vpop.f32.mrf.mxu0
    %2266 = vmatprep.mubr.bf16.mxu0 0
    %2267 = vmatmul.mubr.bf16.gmra.mxu0 %v2172
    %v2268 = vpop.f32.mrf.mxu0
    %v2269 = vadd.f32 %v2148, %v2268
    %v2270 = vpop.f32.mrf.mxu0
    %v2271 = vpop.f32.mrf.mxu0
    %v2272 = vadd.f32 %v2148, %v2271
    %v2273 = vpop.f32.mrf.mxu0
    %2274 = vmatprep.mubr.bf16.mxu0 0
    %2275 = vmatmul.mubr.bf16.gmra.mxu0 %v2175
    %v2276 = vpop.f32.mrf.mxu0
    %v2277 = vadd.f32 %v2148, %v2276
    %v2278 = vpop.f32.mrf.mxu0
    %v2279 = vpop.f32.mrf.mxu0
    %v2280 = vadd.f32 %v2148, %v2279
    %v2281 = vpop.f32.mrf.mxu0
    %2282 = vmatprep.mubr.bf16.mxu0 0
    %2283 = vmatmul.mubr.bf16.gmra.mxu0 %v2178
    %v2284 = vpop.f32.mrf.mxu0
    %v2285 = vadd.f32 %v2148, %v2284
    %v2286 = vpop.f32.mrf.mxu0
    %v2287 = vpop.f32.mrf.mxu0
    %v2288 = vadd.f32 %v2148, %v2287
    %v2289 = vpop.f32.mrf.mxu0
    %2290 = vmatprep.mubr.bf16.mxu0 0
    %2291 = vmatmul.mubr.bf16.gmra.mxu0 %v2181
    %v2292 = vpop.f32.mrf.mxu0
    %v2293 = vadd.f32 %v2148, %v2292
    %v2294 = vpop.f32.mrf.mxu0
    %v2295 = vpop.f32.mrf.mxu0
    %v2296 = vadd.f32 %v2148, %v2295
    %v2297 = vpop.f32.mrf.mxu0
    %2298 = vmatprep.mubr.bf16.mxu0 0
    %2299 = vmatmul.mubr.bf16.gmra.mxu0 %v2184
    %v2300 = vpop.f32.mrf.mxu0
    %v2301 = vadd.f32 %v2148, %v2300
    %v2302 = vpop.f32.mrf.mxu0
    %v2303 = vpop.f32.mrf.mxu0
    %v2304 = vadd.f32 %v2148, %v2303
    %v2305 = vpop.f32.mrf.mxu0
    %2306 = vmatprep.mubr.bf16.mxu0 0
    %2307 = vmatmul.mubr.bf16.gmra.mxu0 %v2187
    %v2308 = vpop.f32.mrf.mxu0
    %v2309 = vadd.f32 %v2148, %v2308
    %v2310 = vpop.f32.mrf.mxu0
    %v2311 = vpop.f32.mrf.mxu0
    %v2312 = vadd.f32 %v2148, %v2311
    %v2313 = vpop.f32.mrf.mxu0
    %2314 = vmatprep.mubr.bf16.mxu0 0
    %2315 = vmatmul.mubr.bf16.gmra.mxu0 %v2190
    %v2316 = vpop.f32.mrf.mxu0
    %v2317 = vadd.f32 %v2148, %v2316
    %v2318 = vpop.f32.mrf.mxu0
    %v2319 = vpop.f32.mrf.mxu0
    %v2320 = vadd.f32 %v2148, %v2319
    %v2321 = vpop.f32.mrf.mxu0
    %2322 = vmatprep.mubr.bf16.mxu0 0
    %2323 = vmatmul.mubr.bf16.gmra.mxu0 %v2193
    %v2324 = vpop.f32.mrf.mxu0
    %v2325 = vadd.f32 %v2148, %v2324
    %v2326 = vpop.f32.mrf.mxu0
    %v2327 = vpop.f32.mrf.mxu0
    %v2328 = vadd.f32 %v2148, %v2327
    %v2329 = vpop.f32.mrf.mxu0
    %2330 = vmatprep.mubr.bf16.mxu0 0
    %2331 = vmatmul.mubr.bf16.gmra.mxu0 %v2196
    %v2332 = vpop.f32.mrf.mxu0
    %v2333 = vadd.f32 %v2148, %v2332
    %v2334 = vpop.f32.mrf.mxu0
    %v2335 = vpop.f32.mrf.mxu0
    %v2336 = vadd.f32 %v2148, %v2335
    %v2337 = vpop.f32.mrf.mxu0
    %2338 = vmatprep.mubr.bf16.mxu0 0
    %2339 = vmatmul.mubr.bf16.gmra.mxu0 %v2199
    %v2340 = vpop.f32.mrf.mxu0
    %v2341 = vadd.f32 %v2148, %v2340
    %v2342 = vpop.f32.mrf.mxu0
    %v2343 = vpop.f32.mrf.mxu0
    %v2344 = vadd.f32 %v2148, %v2343
    %v2345 = vpop.f32.mrf.mxu0
    %2346 = vmatprep.mubr.bf16.mxu0 0
    %2347 = vmatmul.mubr.bf16.gmra.mxu0 %v2202
    %v2348 = vpop.f32.mrf.mxu0
    %v2349 = vadd.f32 %v2148, %v2348
    %v2350 = vpop.f32.mrf.mxu0
    %v2351 = vpop.f32.mrf.mxu0
    %v2352 = vadd.f32 %v2148, %v2351
    %v2353 = vpop.f32.mrf.mxu0
    %2354 = vmatprep.mubr.bf16.mxu0 0
    %2355 = vmatmul.mubr.bf16.gmra.mxu0 %v2205
    %v2356 = vpop.f32.mrf.mxu0
    %v2357 = vadd.f32 %v2148, %v2356
    %v2358 = vpop.f32.mrf.mxu0
    %v2359 = vpop.f32.mrf.mxu0
    %v2360 = vadd.f32 %v2148, %v2359
    %v2361 = vpop.f32.mrf.mxu0
    %2362 = vmatprep.mubr.bf16.mxu0 0
    %2363 = vmatmul.mubr.bf16.gmra.mxu0 %v2208
    %v2364 = vpop.f32.mrf.mxu0
    %v2365 = vadd.f32 %v2148, %v2364
    %v2366 = vpop.f32.mrf.mxu0
    %v2367 = vpop.f32.mrf.mxu0
    %v2368 = vadd.f32 %v2148, %v2367
    %v2369 = vpop.f32.mrf.mxu0
    %2370 = vdwg.mxu0
    %v2371 = vtanh.pop %v2245
    %v2372 = vtanh.pop %v2248
    %v2373 = vtanh.pop %v2253
    %v2374 = vtanh.pop %v2256
    %v2375 = vtanh.pop %v2261
    %v2376 = vtanh.pop %v2264
    %v2377 = vtanh.pop %v2269
    %v2378 = vtanh.pop %v2272
    %v2379 = vtanh.pop %v2277
    %v2380 = vtanh.pop %v2280
    %v2381 = vtanh.pop %v2285
    %v2382 = vtanh.pop %v2288
    %v2383 = vtanh.pop %v2293
    %v2384 = vtanh.pop %v2296
    %v2385 = vtanh.pop %v2301
    %v2386 = vtanh.pop %v2304
    %v2387 = vtanh.pop %v2309
    %v2388 = vtanh.pop %v2312
    %v2389 = vtanh.pop %v2317
    %v2390 = vtanh.pop %v2320
    %v2391 = vtanh.pop %v2325
    %v2392 = vtanh.pop %v2328
    %v2393 = vtanh.pop %v2333
    %v2394 = vtanh.pop %v2336
    %v2395 = vtanh.pop %v2341
    %v2396 = vtanh.pop %v2344
    %v2397 = vtanh.pop %v2349
    %v2398 = vtanh.pop %v2352
    %v2399 = vtanh.pop %v2357
    %v2400 = vtanh.pop %v2360
    %v2401 = vtanh.pop %v2365
    %v2402 = vtanh.pop %v2368
    %v2403 = vsub.f32 %v2245, %v2371
    %v2404 = vsub.f32 %v2248, %v2372
    %v2405 = vsub.f32 %v2253, %v2373
    %v2406 = vsub.f32 %v2256, %v2374
    %v2407 = vsub.f32 %v2261, %v2375
    %v2408 = vsub.f32 %v2264, %v2376
    %v2409 = vsub.f32 %v2269, %v2377
    %v2410 = vsub.f32 %v2272, %v2378
    %v2411 = vsub.f32 %v2277, %v2379
    %v2412 = vsub.f32 %v2280, %v2380
    %v2413 = vsub.f32 %v2285, %v2381
    %v2414 = vsub.f32 %v2288, %v2382
    %v2415 = vsub.f32 %v2293, %v2383
    %v2416 = vsub.f32 %v2296, %v2384
    %v2417 = vsub.f32 %v2301, %v2385
    %v2418 = vsub.f32 %v2304, %v2386
    %v2419 = vsub.f32 %v2309, %v2387
    %v2420 = vsub.f32 %v2312, %v2388
    %v2421 = vsub.f32 %v2317, %v2389
    %v2422 = vsub.f32 %v2320, %v2390
    %v2423 = vsub.f32 %v2325, %v2391
    %v2424 = vsub.f32 %v2328, %v2392
    %v2425 = vsub.f32 %v2333, %v2393
    %v2426 = vsub.f32 %v2336, %v2394
    %v2427 = vsub.f32 %v2341, %v2395
    %v2428 = vsub.f32 %v2344, %v2396
    %v2429 = vsub.f32 %v2349, %v2397
    %v2430 = vsub.f32 %v2352, %v2398
    %v2431 = vsub.f32 %v2357, %v2399
    %v2432 = vsub.f32 %v2360, %v2400
    %v2433 = vsub.f32 %v2365, %v2401
    %v2434 = vsub.f32 %v2368, %v2402
    %v2435 = vld [vmem:[%s7] sm:$0x1]
    %v2437 = vlaneseq
    %v2438 = vshrl.u32 %v2437, 7
    %v2439 = vsub.s32 0, %v2438
    %v2440 = vrot.slane %v2435, %v2439
    %2441 = vrot.lane.b32.xlu0 %v2440, 32
    %v2442 = vpop.permute.xlu0 %2441
    %v2444 = vadd.f32 %v1823, %v2442
    %v2445 = vadd.f32 %v1826, %v2442
    %v2446 = vadd.f32 %v1831, %v2442
    %v2447 = vadd.f32 %v1834, %v2442
    %v2448 = vadd.f32 %v1839, %v2442
    %v2449 = vadd.f32 %v1842, %v2442
    %v2450 = vadd.f32 %v1847, %v2442
    %v2451 = vadd.f32 %v1850, %v2442
    %v2452 = vadd.f32 %v1855, %v2442
    %v2453 = vadd.f32 %v1858, %v2442
    %v2454 = vadd.f32 %v1863, %v2442
    %v2455 = vadd.f32 %v1866, %v2442
    %v2456 = vadd.f32 %v1871, %v2442
    %v2457 = vadd.f32 %v1874, %v2442
    %v2458 = vadd.f32 %v1879, %v2442
    %v2459 = vadd.f32 %v1882, %v2442
    %v2460 = vadd.f32 %v1887, %v2442
    %v2461 = vadd.f32 %v1890, %v2442
    %v2462 = vadd.f32 %v1895, %v2442
    %v2463 = vadd.f32 %v1898, %v2442
    %v2464 = vadd.f32 %v1903, %v2442
    %v2465 = vadd.f32 %v1906, %v2442
    %v2466 = vadd.f32 %v1911, %v2442
    %v2467 = vadd.f32 %v1914, %v2442
    %v2468 = vadd.f32 %v1919, %v2442
    %v2469 = vadd.f32 %v1922, %v2442
    %v2470 = vadd.f32 %v1927, %v2442
    %v2471 = vadd.f32 %v1930, %v2442
    %v2472 = vadd.f32 %v1935, %v2442
    %v2473 = vadd.f32 %v1938, %v2442
    %v2474 = vadd.f32 %v1943, %v2442
    %v2475 = vadd.f32 %v1946, %v2442
    %v2476 = vtanh.pop %v2444
    %v2477 = vtanh.pop %v2445
    %v2478 = vtanh.pop %v2446
    %v2479 = vtanh.pop %v2447
    %v2480 = vtanh.pop %v2448
    %v2481 = vtanh.pop %v2449
    %v2482 = vtanh.pop %v2450
    %v2483 = vtanh.pop %v2451
    %v2484 = vtanh.pop %v2452
    %v2485 = vtanh.pop %v2453
    %v2486 = vtanh.pop %v2454
    %v2487 = vtanh.pop %v2455
    %v2488 = vtanh.pop %v2456
    %v2489 = vtanh.pop %v2457
    %v2490 = vtanh.pop %v2458
    %v2491 = vtanh.pop %v2459
    %v2492 = vtanh.pop %v2460
    %v2493 = vtanh.pop %v2461
    %v2494 = vtanh.pop %v2462
    %v2495 = vtanh.pop %v2463
    %v2496 = vtanh.pop %v2464
    %v2497 = vtanh.pop %v2465
    %v2498 = vtanh.pop %v2466
    %v2499 = vtanh.pop %v2467
    %v2500 = vtanh.pop %v2468
    %v2501 = vtanh.pop %v2469
    %v2502 = vtanh.pop %v2470
    %v2503 = vtanh.pop %v2471
    %v2504 = vtanh.pop %v2472
    %v2505 = vtanh.pop %v2473
    %v2506 = vtanh.pop %v2474
    %v2507 = vtanh.pop %v2475
    %v2508 = vsub.f32 %v2444, %v2476
    %v2509 = vsub.f32 %v2445, %v2477
    %v2510 = vsub.f32 %v2446, %v2478
    %v2511 = vsub.f32 %v2447, %v2479
    %v2512 = vsub.f32 %v2448, %v2480
    %v2513 = vsub.f32 %v2449, %v2481
    %v2514 = vsub.f32 %v2450, %v2482
    %v2515 = vsub.f32 %v2451, %v2483
    %v2516 = vsub.f32 %v2452, %v2484
    %v2517 = vsub.f32 %v2453, %v2485
    %v2518 = vsub.f32 %v2454, %v2486
    %v2519 = vsub.f32 %v2455, %v2487
    %v2520 = vsub.f32 %v2456, %v2488
    %v2521 = vsub.f32 %v2457, %v2489
    %v2522 = vsub.f32 %v2458, %v2490
    %v2523 = vsub.f32 %v2459, %v2491
    %v2524 = vsub.f32 %v2460, %v2492
    %v2525 = vsub.f32 %v2461, %v2493
    %v2526 = vsub.f32 %v2462, %v2494
    %v2527 = vsub.f32 %v2463, %v2495
    %v2528 = vsub.f32 %v2464, %v2496
    %v2529 = vsub.f32 %v2465, %v2497
    %v2530 = vsub.f32 %v2466, %v2498
    %v2531 = vsub.f32 %v2467, %v2499
    %v2532 = vsub.f32 %v2468, %v2500
    %v2533 = vsub.f32 %v2469, %v2501
    %v2534 = vsub.f32 %v2470, %v2502
    %v2535 = vsub.f32 %v2471, %v2503
    %v2536 = vsub.f32 %v2472, %v2504
    %v2537 = vsub.f32 %v2473, %v2505
    %v2538 = vsub.f32 %v2474, %v2506
    %v2539 = vsub.f32 %v2475, %v2507
    %v2540 = vld [vmem:[%s10] sm:$0x1]
    %v2542 = vlaneseq
    %v2543 = vshrl.u32 %v2542, 7
    %v2544 = vsub.s32 0, %v2543
    %v2545 = vrot.slane %v2540, %v2544
    %2546 = vrot.lane.b32.xlu0 %v2545, 32
    %v2547 = vpop.permute.xlu0 %2546
    %v2549 = vmul.f32 %v2508, %v2547
    %v2550 = vmul.f32 %v2509, %v2547
    %v2551 = vmul.f32 %v2510, %v2547
    %v2552 = vmul.f32 %v2511, %v2547
    %v2553 = vmul.f32 %v2512, %v2547
    %v2554 = vmul.f32 %v2513, %v2547
    %v2555 = vmul.f32 %v2514, %v2547
    %v2556 = vmul.f32 %v2515, %v2547
    %v2557 = vmul.f32 %v2516, %v2547
    %v2558 = vmul.f32 %v2517, %v2547
    %v2559 = vmul.f32 %v2518, %v2547
    %v2560 = vmul.f32 %v2519, %v2547
    %v2561 = vmul.f32 %v2520, %v2547
    %v2562 = vmul.f32 %v2521, %v2547
    %v2563 = vmul.f32 %v2522, %v2547
    %v2564 = vmul.f32 %v2523, %v2547
    %v2565 = vmul.f32 %v2524, %v2547
    %v2566 = vmul.f32 %v2525, %v2547
    %v2567 = vmul.f32 %v2526, %v2547
    %v2568 = vmul.f32 %v2527, %v2547
    %v2569 = vmul.f32 %v2528, %v2547
    %v2570 = vmul.f32 %v2529, %v2547
    %v2571 = vmul.f32 %v2530, %v2547
    %v2572 = vmul.f32 %v2531, %v2547
    %v2573 = vmul.f32 %v2532, %v2547
    %v2574 = vmul.f32 %v2533, %v2547
    %v2575 = vmul.f32 %v2534, %v2547
    %v2576 = vmul.f32 %v2535, %v2547
    %v2577 = vmul.f32 %v2536, %v2547
    %v2578 = vmul.f32 %v2537, %v2547
    %v2579 = vmul.f32 %v2538, %v2547
    %v2580 = vmul.f32 %v2539, %v2547
    %2613 = vrot.lane.b32.xlu0 %v2549, 96
    %v2614 = vpop.permute.xlu0 %2613
    %2615 = vrot.lane.b32.xlu0 %v2550, 96
    %v2616 = vpop.permute.xlu0 %2615
    %2617 = vrot.lane.b32.xlu0 %v2551, 96
    %v2618 = vpop.permute.xlu0 %2617
    %2619 = vrot.lane.b32.xlu0 %v2552, 96
    %v2620 = vpop.permute.xlu0 %2619
    %2621 = vrot.lane.b32.xlu0 %v2553, 96
    %v2622 = vpop.permute.xlu0 %2621
    %2623 = vrot.lane.b32.xlu0 %v2554, 96
    %v2624 = vpop.permute.xlu0 %2623
    %2625 = vrot.lane.b32.xlu0 %v2555, 96
    %v2626 = vpop.permute.xlu0 %2625
    %2627 = vrot.lane.b32.xlu0 %v2556, 96
    %v2628 = vpop.permute.xlu0 %2627
    %2629 = vrot.lane.b32.xlu0 %v2557, 96
    %v2630 = vpop.permute.xlu0 %2629
    %2631 = vrot.lane.b32.xlu0 %v2558, 96
    %v2632 = vpop.permute.xlu0 %2631
    %2633 = vrot.lane.b32.xlu0 %v2559, 96
    %v2634 = vpop.permute.xlu0 %2633
    %2635 = vrot.lane.b32.xlu0 %v2560, 96
    %v2636 = vpop.permute.xlu0 %2635
    %2637 = vrot.lane.b32.xlu0 %v2561, 96
    %v2638 = vpop.permute.xlu0 %2637
    %2639 = vrot.lane.b32.xlu0 %v2562, 96
    %v2640 = vpop.permute.xlu0 %2639
    %2641 = vrot.lane.b32.xlu0 %v2563, 96
    %v2642 = vpop.permute.xlu0 %2641
    %2643 = vrot.lane.b32.xlu0 %v2564, 96
    %v2644 = vpop.permute.xlu0 %2643
    %2645 = vrot.lane.b32.xlu0 %v2565, 96
    %v2646 = vpop.permute.xlu0 %2645
    %2647 = vrot.lane.b32.xlu0 %v2566, 96
    %v2648 = vpop.permute.xlu0 %2647
    %2649 = vrot.lane.b32.xlu0 %v2567, 96
    %v2650 = vpop.permute.xlu0 %2649
    %2651 = vrot.lane.b32.xlu0 %v2568, 96
    %v2652 = vpop.permute.xlu0 %2651
    %2653 = vrot.lane.b32.xlu0 %v2569, 96
    %v2654 = vpop.permute.xlu0 %2653
    %2655 = vrot.lane.b32.xlu0 %v2570, 96
    %v2656 = vpop.permute.xlu0 %2655
    %2657 = vrot.lane.b32.xlu0 %v2571, 96
    %v2658 = vpop.permute.xlu0 %2657
    %2659 = vrot.lane.b32.xlu0 %v2572, 96
    %v2660 = vpop.permute.xlu0 %2659
    %2661 = vrot.lane.b32.xlu0 %v2573, 96
    %v2662 = vpop.permute.xlu0 %2661
    %2663 = vrot.lane.b32.xlu0 %v2574, 96
    %v2664 = vpop.permute.xlu0 %2663
    %2665 = vrot.lane.b32.xlu0 %v2575, 96
    %v2666 = vpop.permute.xlu0 %2665
    %2667 = vrot.lane.b32.xlu0 %v2576, 96
    %v2668 = vpop.permute.xlu0 %2667
    %2669 = vrot.lane.b32.xlu0 %v2577, 96
    %v2670 = vpop.permute.xlu0 %2669
    %2671 = vrot.lane.b32.xlu0 %v2578, 96
    %v2672 = vpop.permute.xlu0 %2671
    %2673 = vrot.lane.b32.xlu0 %v2579, 96
    %v2674 = vpop.permute.xlu0 %2673
    %2675 = vrot.lane.b32.xlu0 %v2580, 96
    %v2676 = vpop.permute.xlu0 %2675
    %v2709 = vsel %vm1518, %v2614, 0.0
    %2710 = vadd.xlane.f32.xlu0 %v2709
    %v2711 = vpop.xlane.xlu0 %2710
    %v2712 = vsel %vm1518, %v2616, 0.0
    %2713 = vadd.xlane.f32.xlu0 %v2712
    %v2714 = vpop.xlane.xlu0 %2713
    %v2715 = vsel %vm1518, %v2618, 0.0
    %2716 = vadd.xlane.f32.xlu0 %v2715
    %v2717 = vpop.xlane.xlu0 %2716
    %v2718 = vsel %vm1518, %v2620, 0.0
    %2719 = vadd.xlane.f32.xlu0 %v2718
    %v2720 = vpop.xlane.xlu0 %2719
    %v2721 = vsel %vm1518, %v2622, 0.0
    %2722 = vadd.xlane.f32.xlu0 %v2721
    %v2723 = vpop.xlane.xlu0 %2722
    %v2724 = vsel %vm1518, %v2624, 0.0
    %2725 = vadd.xlane.f32.xlu0 %v2724
    %v2726 = vpop.xlane.xlu0 %2725
    %v2727 = vsel %vm1518, %v2626, 0.0
    %2728 = vadd.xlane.f32.xlu0 %v2727
    %v2729 = vpop.xlane.xlu0 %2728
    %v2730 = vsel %vm1518, %v2628, 0.0
    %2731 = vadd.xlane.f32.xlu0 %v2730
    %v2732 = vpop.xlane.xlu0 %2731
    %v2733 = vsel %vm1518, %v2630, 0.0
    %2734 = vadd.xlane.f32.xlu0 %v2733
    %v2735 = vpop.xlane.xlu0 %2734
    %v2736 = vsel %vm1518, %v2632, 0.0
    %2737 = vadd.xlane.f32.xlu0 %v2736
    %v2738 = vpop.xlane.xlu0 %2737
    %v2739 = vsel %vm1518, %v2634, 0.0
    %2740 = vadd.xlane.f32.xlu0 %v2739
    %v2741 = vpop.xlane.xlu0 %2740
    %v2742 = vsel %vm1518, %v2636, 0.0
    %2743 = vadd.xlane.f32.xlu0 %v2742
    %v2744 = vpop.xlane.xlu0 %2743
    %v2745 = vsel %vm1518, %v2638, 0.0
    %2746 = vadd.xlane.f32.xlu0 %v2745
    %v2747 = vpop.xlane.xlu0 %2746
    %v2748 = vsel %vm1518, %v2640, 0.0
    %2749 = vadd.xlane.f32.xlu0 %v2748
    %v2750 = vpop.xlane.xlu0 %2749
    %v2751 = vsel %vm1518, %v2642, 0.0
    %2752 = vadd.xlane.f32.xlu0 %v2751
    %v2753 = vpop.xlane.xlu0 %2752
    %v2754 = vsel %vm1518, %v2644, 0.0
    %2755 = vadd.xlane.f32.xlu0 %v2754
    %v2756 = vpop.xlane.xlu0 %2755
    %v2757 = vsel %vm1518, %v2646, 0.0
    %2758 = vadd.xlane.f32.xlu0 %v2757
    %v2759 = vpop.xlane.xlu0 %2758
    %v2760 = vsel %vm1518, %v2648, 0.0
    %2761 = vadd.xlane.f32.xlu0 %v2760
    %v2762 = vpop.xlane.xlu0 %2761
    %v2763 = vsel %vm1518, %v2650, 0.0
    %2764 = vadd.xlane.f32.xlu0 %v2763
    %v2765 = vpop.xlane.xlu0 %2764
    %v2766 = vsel %vm1518, %v2652, 0.0
    %2767 = vadd.xlane.f32.xlu0 %v2766
    %v2768 = vpop.xlane.xlu0 %2767
    %v2769 = vsel %vm1518, %v2654, 0.0
    %2770 = vadd.xlane.f32.xlu0 %v2769
    %v2771 = vpop.xlane.xlu0 %2770
    %v2772 = vsel %vm1518, %v2656, 0.0
    %2773 = vadd.xlane.f32.xlu0 %v2772
    %v2774 = vpop.xlane.xlu0 %2773
    %v2775 = vsel %vm1518, %v2658, 0.0
    %2776 = vadd.xlane.f32.xlu0 %v2775
    %v2777 = vpop.xlane.xlu0 %2776
    %v2778 = vsel %vm1518, %v2660, 0.0
    %2779 = vadd.xlane.f32.xlu0 %v2778
    %v2780 = vpop.xlane.xlu0 %2779
    %v2781 = vsel %vm1518, %v2662, 0.0
    %2782 = vadd.xlane.f32.xlu0 %v2781
    %v2783 = vpop.xlane.xlu0 %2782
    %v2784 = vsel %vm1518, %v2664, 0.0
    %2785 = vadd.xlane.f32.xlu0 %v2784
    %v2786 = vpop.xlane.xlu0 %2785
    %v2787 = vsel %vm1518, %v2666, 0.0
    %2788 = vadd.xlane.f32.xlu0 %v2787
    %v2789 = vpop.xlane.xlu0 %2788
    %v2790 = vsel %vm1518, %v2668, 0.0
    %2791 = vadd.xlane.f32.xlu0 %v2790
    %v2792 = vpop.xlane.xlu0 %2791
    %v2793 = vsel %vm1518, %v2670, 0.0
    %2794 = vadd.xlane.f32.xlu0 %v2793
    %v2795 = vpop.xlane.xlu0 %2794
    %v2796 = vsel %vm1518, %v2672, 0.0
    %2797 = vadd.xlane.f32.xlu0 %v2796
    %v2798 = vpop.xlane.xlu0 %2797
    %v2799 = vsel %vm1518, %v2674, 0.0
    %2800 = vadd.xlane.f32.xlu0 %v2799
    %v2801 = vpop.xlane.xlu0 %2800
    %v2802 = vsel %vm1518, %v2676, 0.0
    %2803 = vadd.xlane.f32.xlu0 %v2802
    %v2804 = vpop.xlane.xlu0 %2803
    %v2805 = vld [vmem:[#allocation4] sm:$0x1]
    %v2807 = vlaneseq
    %v2808 = vshrl.u32 %v2807, 7
    %v2809 = vsub.s32 0, %v2808
    %v2810 = vrot.slane %v2805, %v2809
    %v2812 = vadd.f32 %v2711, %v2810
    %v2813 = vadd.f32 %v2714, %v2810
    %v2814 = vadd.f32 %v2717, %v2810
    %v2815 = vadd.f32 %v2720, %v2810
    %v2816 = vadd.f32 %v2723, %v2810
    %v2817 = vadd.f32 %v2726, %v2810
    %v2818 = vadd.f32 %v2729, %v2810
    %v2819 = vadd.f32 %v2732, %v2810
    %v2820 = vadd.f32 %v2735, %v2810
    %v2821 = vadd.f32 %v2738, %v2810
    %v2822 = vadd.f32 %v2741, %v2810
    %v2823 = vadd.f32 %v2744, %v2810
    %v2824 = vadd.f32 %v2747, %v2810
    %v2825 = vadd.f32 %v2750, %v2810
    %v2826 = vadd.f32 %v2753, %v2810
    %v2827 = vadd.f32 %v2756, %v2810
    %v2828 = vadd.f32 %v2759, %v2810
    %v2829 = vadd.f32 %v2762, %v2810
    %v2830 = vadd.f32 %v2765, %v2810
    %v2831 = vadd.f32 %v2768, %v2810
    %v2832 = vadd.f32 %v2771, %v2810
    %v2833 = vadd.f32 %v2774, %v2810
    %v2834 = vadd.f32 %v2777, %v2810
    %v2835 = vadd.f32 %v2780, %v2810
    %v2836 = vadd.f32 %v2783, %v2810
    %v2837 = vadd.f32 %v2786, %v2810
    %v2838 = vadd.f32 %v2789, %v2810
    %v2839 = vadd.f32 %v2792, %v2810
    %v2840 = vadd.f32 %v2795, %v2810
    %v2841 = vadd.f32 %v2798, %v2810
    %v2842 = vadd.f32 %v2801, %v2810
    %v2843 = vadd.f32 %v2804, %v2810
    %v2844 = vxor.u32 %v2812, 2147483648
    %v2845 = vxor.u32 %v2813, 2147483648
    %v2846 = vxor.u32 %v2814, 2147483648
    %v2847 = vxor.u32 %v2815, 2147483648
    %v2848 = vxor.u32 %v2816, 2147483648
    %v2849 = vxor.u32 %v2817, 2147483648
    %v2850 = vxor.u32 %v2818, 2147483648
    %v2851 = vxor.u32 %v2819, 2147483648
    %v2852 = vxor.u32 %v2820, 2147483648
    %v2853 = vxor.u32 %v2821, 2147483648
    %v2854 = vxor.u32 %v2822, 2147483648
    %v2855 = vxor.u32 %v2823, 2147483648
    %v2856 = vxor.u32 %v2824, 2147483648
    %v2857 = vxor.u32 %v2825, 2147483648
    %v2858 = vxor.u32 %v2826, 2147483648
    %v2859 = vxor.u32 %v2827, 2147483648
    %v2860 = vxor.u32 %v2828, 2147483648
    %v2861 = vxor.u32 %v2829, 2147483648
    %v2862 = vxor.u32 %v2830, 2147483648
    %v2863 = vxor.u32 %v2831, 2147483648
    %v2864 = vxor.u32 %v2832, 2147483648
    %v2865 = vxor.u32 %v2833, 2147483648
    %v2866 = vxor.u32 %v2834, 2147483648
    %v2867 = vxor.u32 %v2835, 2147483648
    %v2868 = vxor.u32 %v2836, 2147483648
    %v2869 = vxor.u32 %v2837, 2147483648
    %v2870 = vxor.u32 %v2838, 2147483648
    %v2871 = vxor.u32 %v2839, 2147483648
    %v2872 = vxor.u32 %v2840, 2147483648
    %v2873 = vxor.u32 %v2841, 2147483648
    %v2874 = vxor.u32 %v2842, 2147483648
    %v2875 = vxor.u32 %v2843, 2147483648
    %v2876 = vmul.f32 %v2844, 1.442695
    %v2877 = vpow.pop %v2876
    %v2878 = vmul.f32 %v2845, 1.442695
    %v2879 = vpow.pop %v2878
    %v2880 = vmul.f32 %v2846, 1.442695
    %v2881 = vpow.pop %v2880
    %v2882 = vmul.f32 %v2847, 1.442695
    %v2883 = vpow.pop %v2882
    %v2884 = vmul.f32 %v2848, 1.442695
    %v2885 = vpow.pop %v2884
    %v2886 = vmul.f32 %v2849, 1.442695
    %v2887 = vpow.pop %v2886
    %v2888 = vmul.f32 %v2850, 1.442695
    %v2889 = vpow.pop %v2888
    %v2890 = vmul.f32 %v2851, 1.442695
    %v2891 = vpow.pop %v2890
    %v2892 = vmul.f32 %v2852, 1.442695
    %v2893 = vpow.pop %v2892
    %v2894 = vmul.f32 %v2853, 1.442695
    %v2895 = vpow.pop %v2894
    %v2896 = vmul.f32 %v2854, 1.442695
    %v2897 = vpow.pop %v2896
    %v2898 = vmul.f32 %v2855, 1.442695
    %v2899 = vpow.pop %v2898
    %v2900 = vmul.f32 %v2856, 1.442695
    %v2901 = vpow.pop %v2900
    %v2902 = vmul.f32 %v2857, 1.442695
    %v2903 = vpow.pop %v2902
    %v2904 = vmul.f32 %v2858, 1.442695
    %v2905 = vpow.pop %v2904
    %v2906 = vmul.f32 %v2859, 1.442695
    %v2907 = vpow.pop %v2906
    %v2908 = vmul.f32 %v2860, 1.442695
    %v2909 = vpow.pop %v2908
    %v2910 = vmul.f32 %v2861, 1.442695
    %v2911 = vpow.pop %v2910
    %v2912 = vmul.f32 %v2862, 1.442695
    %v2913 = vpow.pop %v2912
    %v2914 = vmul.f32 %v2863, 1.442695
    %v2915 = vpow.pop %v2914
    %v2916 = vmul.f32 %v2864, 1.442695
    %v2917 = vpow.pop %v2916
    %v2918 = vmul.f32 %v2865, 1.442695
    %v2919 = vpow.pop %v2918
    %v2920 = vmul.f32 %v2866, 1.442695
    %v2921 = vpow.pop %v2920
    %v2922 = vmul.f32 %v2867, 1.442695
    %v2923 = vpow.pop %v2922
    %v2924 = vmul.f32 %v2868, 1.442695
    %v2925 = vpow.pop %v2924
    %v2926 = vmul.f32 %v2869, 1.442695
    %v2927 = vpow.pop %v2926
    %v2928 = vmul.f32 %v2870, 1.442695
    %v2929 = vpow.pop %v2928
    %v2930 = vmul.f32 %v2871, 1.442695
    %v2931 = vpow.pop %v2930
    %v2932 = vmul.f32 %v2872, 1.442695
    %v2933 = vpow.pop %v2932
    %v2934 = vmul.f32 %v2873, 1.442695
    %v2935 = vpow.pop %v2934
    %v2936 = vmul.f32 %v2874, 1.442695
    %v2937 = vpow.pop %v2936
    %v2938 = vmul.f32 %v2875, 1.442695
    %v2939 = vpow.pop %v2938
    %v2940 = vadd.f32 %v2877, 1.0
    %v2941 = vadd.f32 %v2879, 1.0
    %v2942 = vadd.f32 %v2881, 1.0
    %v2943 = vadd.f32 %v2883, 1.0
    %v2944 = vadd.f32 %v2885, 1.0
    %v2945 = vadd.f32 %v2887, 1.0
    %v2946 = vadd.f32 %v2889, 1.0
    %v2947 = vadd.f32 %v2891, 1.0
    %v2948 = vadd.f32 %v2893, 1.0
    %v2949 = vadd.f32 %v2895, 1.0
    %v2950 = vadd.f32 %v2897, 1.0
    %v2951 = vadd.f32 %v2899, 1.0
    %v2952 = vadd.f32 %v2901, 1.0
    %v2953 = vadd.f32 %v2903, 1.0
    %v2954 = vadd.f32 %v2905, 1.0
    %v2955 = vadd.f32 %v2907, 1.0
    %v2956 = vadd.f32 %v2909, 1.0
    %v2957 = vadd.f32 %v2911, 1.0
    %v2958 = vadd.f32 %v2913, 1.0
    %v2959 = vadd.f32 %v2915, 1.0
    %v2960 = vadd.f32 %v2917, 1.0
    %v2961 = vadd.f32 %v2919, 1.0
    %v2962 = vadd.f32 %v2921, 1.0
    %v2963 = vadd.f32 %v2923, 1.0
    %v2964 = vadd.f32 %v2925, 1.0
    %v2965 = vadd.f32 %v2927, 1.0
    %v2966 = vadd.f32 %v2929, 1.0
    %v2967 = vadd.f32 %v2931, 1.0
    %v2968 = vadd.f32 %v2933, 1.0
    %v2969 = vadd.f32 %v2935, 1.0
    %v2970 = vadd.f32 %v2937, 1.0
    %v2971 = vadd.f32 %v2939, 1.0
    %v2972 = vrcp.pop %v2940
    %v2973 = vmul.f32 1.0, %v2972
    %v2974 = vrcp.pop %v2941
    %v2975 = vmul.f32 1.0, %v2974
    %v2976 = vrcp.pop %v2942
    %v2977 = vmul.f32 1.0, %v2976
    %v2978 = vrcp.pop %v2943
    %v2979 = vmul.f32 1.0, %v2978
    %v2980 = vrcp.pop %v2944
    %v2981 = vmul.f32 1.0, %v2980
    %v2982 = vrcp.pop %v2945
    %v2983 = vmul.f32 1.0, %v2982
    %v2984 = vrcp.pop %v2946
    %v2985 = vmul.f32 1.0, %v2984
    %v2986 = vrcp.pop %v2947
    %v2987 = vmul.f32 1.0, %v2986
    %v2988 = vrcp.pop %v2948
    %v2989 = vmul.f32 1.0, %v2988
    %v2990 = vrcp.pop %v2949
    %v2991 = vmul.f32 1.0, %v2990
    %v2992 = vrcp.pop %v2950
    %v2993 = vmul.f32 1.0, %v2992
    %v2994 = vrcp.pop %v2951
    %v2995 = vmul.f32 1.0, %v2994
    %v2996 = vrcp.pop %v2952
    %v2997 = vmul.f32 1.0, %v2996
    %v2998 = vrcp.pop %v2953
    %v2999 = vmul.f32 1.0, %v2998
    %v3000 = vrcp.pop %v2954
    %v3001 = vmul.f32 1.0, %v3000
    %v3002 = vrcp.pop %v2955
    %v3003 = vmul.f32 1.0, %v3002
    %v3004 = vrcp.pop %v2956
    %v3005 = vmul.f32 1.0, %v3004
    %v3006 = vrcp.pop %v2957
    %v3007 = vmul.f32 1.0, %v3006
    %v3008 = vrcp.pop %v2958
    %v3009 = vmul.f32 1.0, %v3008
    %v3010 = vrcp.pop %v2959
    %v3011 = vmul.f32 1.0, %v3010
    %v3012 = vrcp.pop %v2960
    %v3013 = vmul.f32 1.0, %v3012
    %v3014 = vrcp.pop %v2961
    %v3015 = vmul.f32 1.0, %v3014
    %v3016 = vrcp.pop %v2962
    %v3017 = vmul.f32 1.0, %v3016
    %v3018 = vrcp.pop %v2963
    %v3019 = vmul.f32 1.0, %v3018
    %v3020 = vrcp.pop %v2964
    %v3021 = vmul.f32 1.0, %v3020
    %v3022 = vrcp.pop %v2965
    %v3023 = vmul.f32 1.0, %v3022
    %v3024 = vrcp.pop %v2966
    %v3025 = vmul.f32 1.0, %v3024
    %v3026 = vrcp.pop %v2967
    %v3027 = vmul.f32 1.0, %v3026
    %v3028 = vrcp.pop %v2968
    %v3029 = vmul.f32 1.0, %v3028
    %v3030 = vrcp.pop %v2969
    %v3031 = vmul.f32 1.0, %v3030
    %v3032 = vrcp.pop %v2970
    %v3033 = vmul.f32 1.0, %v3032
    %v3034 = vrcp.pop %v2971
    %v3035 = vmul.f32 1.0, %v3034
    %3037 = vset.pattern.permute.xlu0 0
    %3038 = vperm.xlu0 %3037, %v2973
    %v3039 = vpop.permute.xlu0 %3038
    %3042 = vset.pattern.permute.xlu0 0
    %3043 = vperm.xlu0 %3042, %v2975
    %v3044 = vpop.permute.xlu0 %3043
    %3047 = vset.pattern.permute.xlu0 0
    %3048 = vperm.xlu0 %3047, %v2977
    %v3049 = vpop.permute.xlu0 %3048
    %3052 = vset.pattern.permute.xlu0 0
    %3053 = vperm.xlu0 %3052, %v2979
    %v3054 = vpop.permute.xlu0 %3053
    %3057 = vset.pattern.permute.xlu0 0
    %3058 = vperm.xlu0 %3057, %v2981
    %v3059 = vpop.permute.xlu0 %3058
    %3062 = vset.pattern.permute.xlu0 0
    %3063 = vperm.xlu0 %3062, %v2983
    %v3064 = vpop.permute.xlu0 %3063
    %3067 = vset.pattern.permute.xlu0 0
    %3068 = vperm.xlu0 %3067, %v2985
    %v3069 = vpop.permute.xlu0 %3068
    %3072 = vset.pattern.permute.xlu0 0
    %3073 = vperm.xlu0 %3072, %v2987
    %v3074 = vpop.permute.xlu0 %3073
    %3077 = vset.pattern.permute.xlu0 0
    %3078 = vperm.xlu0 %3077, %v2989
    %v3079 = vpop.permute.xlu0 %3078
    %3082 = vset.pattern.permute.xlu0 0
    %3083 = vperm.xlu0 %3082, %v2991
    %v3084 = vpop.permute.xlu0 %3083
    %3087 = vset.pattern.permute.xlu0 0
    %3088 = vperm.xlu0 %3087, %v2993
    %v3089 = vpop.permute.xlu0 %3088
    %3092 = vset.pattern.permute.xlu0 0
    %3093 = vperm.xlu0 %3092, %v2995
    %v3094 = vpop.permute.xlu0 %3093
    %3097 = vset.pattern.permute.xlu0 0
    %3098 = vperm.xlu0 %3097, %v2997
    %v3099 = vpop.permute.xlu0 %3098
    %3102 = vset.pattern.permute.xlu0 0
    %3103 = vperm.xlu0 %3102, %v2999
    %v3104 = vpop.permute.xlu0 %3103
    %3107 = vset.pattern.permute.xlu0 0
    %3108 = vperm.xlu0 %3107, %v3001
    %v3109 = vpop.permute.xlu0 %3108
    %3112 = vset.pattern.permute.xlu0 0
    %3113 = vperm.xlu0 %3112, %v3003
    %v3114 = vpop.permute.xlu0 %3113
    %3117 = vset.pattern.permute.xlu0 0
    %3118 = vperm.xlu0 %3117, %v3005
    %v3119 = vpop.permute.xlu0 %3118
    %3122 = vset.pattern.permute.xlu0 0
    %3123 = vperm.xlu0 %3122, %v3007
    %v3124 = vpop.permute.xlu0 %3123
    %3127 = vset.pattern.permute.xlu0 0
    %3128 = vperm.xlu0 %3127, %v3009
    %v3129 = vpop.permute.xlu0 %3128
    %3132 = vset.pattern.permute.xlu0 0
    %3133 = vperm.xlu0 %3132, %v3011
    %v3134 = vpop.permute.xlu0 %3133
    %3137 = vset.pattern.permute.xlu0 0
    %3138 = vperm.xlu0 %3137, %v3013
    %v3139 = vpop.permute.xlu0 %3138
    %3142 = vset.pattern.permute.xlu0 0
    %3143 = vperm.xlu0 %3142, %v3015
    %v3144 = vpop.permute.xlu0 %3143
    %3147 = vset.pattern.permute.xlu0 0
    %3148 = vperm.xlu0 %3147, %v3017
    %v3149 = vpop.permute.xlu0 %3148
    %3152 = vset.pattern.permute.xlu0 0
    %3153 = vperm.xlu0 %3152, %v3019
    %v3154 = vpop.permute.xlu0 %3153
    %3157 = vset.pattern.permute.xlu0 0
    %3158 = vperm.xlu0 %3157, %v3021
    %v3159 = vpop.permute.xlu0 %3158
    %3162 = vset.pattern.permute.xlu0 0
    %3163 = vperm.xlu0 %3162, %v3023
    %v3164 = vpop.permute.xlu0 %3163
    %3167 = vset.pattern.permute.xlu0 0
    %3168 = vperm.xlu0 %3167, %v3025
    %v3169 = vpop.permute.xlu0 %3168
    %3172 = vset.pattern.permute.xlu0 0
    %3173 = vperm.xlu0 %3172, %v3027
    %v3174 = vpop.permute.xlu0 %3173
    %3177 = vset.pattern.permute.xlu0 0
    %3178 = vperm.xlu0 %3177, %v3029
    %v3179 = vpop.permute.xlu0 %3178
    %3182 = vset.pattern.permute.xlu0 0
    %3183 = vperm.xlu0 %3182, %v3031
    %v3184 = vpop.permute.xlu0 %3183
    %3187 = vset.pattern.permute.xlu0 0
    %3188 = vperm.xlu0 %3187, %v3033
    %v3189 = vpop.permute.xlu0 %3188
    %3192 = vset.pattern.permute.xlu0 0
    %3193 = vperm.xlu0 %3192, %v3035
    %v3194 = vpop.permute.xlu0 %3193
    %v3196 = vmul.f32 %v2403, %v3039
    %v3197 = vmul.f32 %v2404, %v3044
    %v3198 = vmul.f32 %v2405, %v3049
    %v3199 = vmul.f32 %v2406, %v3054
    %v3200 = vmul.f32 %v2407, %v3059
    %v3201 = vmul.f32 %v2408, %v3064
    %v3202 = vmul.f32 %v2409, %v3069
    %v3203 = vmul.f32 %v2410, %v3074
    %v3204 = vmul.f32 %v2411, %v3079
    %v3205 = vmul.f32 %v2412, %v3084
    %v3206 = vmul.f32 %v2413, %v3089
    %v3207 = vmul.f32 %v2414, %v3094
    %v3208 = vmul.f32 %v2415, %v3099
    %v3209 = vmul.f32 %v2416, %v3104
    %v3210 = vmul.f32 %v2417, %v3109
    %v3211 = vmul.f32 %v2418, %v3114
    %v3212 = vmul.f32 %v2419, %v3119
    %v3213 = vmul.f32 %v2420, %v3124
    %v3214 = vmul.f32 %v2421, %v3129
    %v3215 = vmul.f32 %v2422, %v3134
    %v3216 = vmul.f32 %v2423, %v3139
    %v3217 = vmul.f32 %v2424, %v3144
    %v3218 = vmul.f32 %v2425, %v3149
    %v3219 = vmul.f32 %v2426, %v3154
    %v3220 = vmul.f32 %v2427, %v3159
    %v3221 = vmul.f32 %v2428, %v3164
    %v3222 = vmul.f32 %v2429, %v3169
    %v3223 = vmul.f32 %v2430, %v3174
    %v3224 = vmul.f32 %v2431, %v3179
    %v3225 = vmul.f32 %v2432, %v3184
    %v3226 = vmul.f32 %v2433, %v3189
    %v3227 = vmul.f32 %v2434, %v3194
    %v3228 = vpack.c.bf16 %v3197, %v3196
    %v3229 = vpack.c.bf16 %v3199, %v3198
    %v3230 = vpack.c.bf16 %v3201, %v3200
    %v3231 = vpack.c.bf16 %v3203, %v3202
    %v3232 = vpack.c.bf16 %v3205, %v3204
    %v3233 = vpack.c.bf16 %v3207, %v3206
    %v3234 = vpack.c.bf16 %v3209, %v3208
    %v3235 = vpack.c.bf16 %v3211, %v3210
    %v3236 = vpack.c.bf16 %v3213, %v3212
    %v3237 = vpack.c.bf16 %v3215, %v3214
    %v3238 = vpack.c.bf16 %v3217, %v3216
    %v3239 = vpack.c.bf16 %v3219, %v3218
    %v3240 = vpack.c.bf16 %v3221, %v3220
    %v3241 = vpack.c.bf16 %v3223, %v3222
    %v3242 = vpack.c.bf16 %v3225, %v3224
    %v3243 = vpack.c.bf16 %v3227, %v3226
    %v3244 = vld [vmem:[%s12] sm:$0xf]
    %v3245 = vld [vmem:[%s12 + $0x4] sm:$0xf]
    %v3246 = vld [vmem:[%s12 + $0x8] sm:$0xf]
    %v3247 = vld [vmem:[%s12 + $0xc] sm:$0xf]
    %v3248 = vld [vmem:[%s13] sm:$0x1]
    %v3250 = vlaneseq
    %v3251 = vshrl.u32 %v3250, 7
    %v3252 = vsub.s32 0, %v3251
    %v3253 = vrot.slane %v3248, %v3252
    %v3259 = vunpack.c.l.b16 %v3244
    %v3260 = vunpack.c.l.b16 %v3245
    %v3261 = vunpack.c.l.b16 %v3246
    %v3262 = vunpack.c.l.b16 %v3247
    %v3263 = vpack.c.b16 %v3260, %v3259
    %v3264 = vpack.c.b16 %v3262, %v3261
    %v3268 = vsel %vm1518, %v3228, 0
    %v3271 = vsel %vm1518, %v3229, 0
    %v3274 = vsel %vm1518, %v3230, 0
    %v3277 = vsel %vm1518, %v3231, 0
    %v3280 = vsel %vm1518, %v3232, 0
    %v3283 = vsel %vm1518, %v3233, 0
    %v3286 = vsel %vm1518, %v3234, 0
    %v3289 = vsel %vm1518, %v3235, 0
    %v3292 = vsel %vm1518, %v3236, 0
    %v3295 = vsel %vm1518, %v3237, 0
    %v3298 = vsel %vm1518, %v3238, 0
    %v3301 = vsel %vm1518, %v3239, 0
    %v3304 = vsel %vm1518, %v3240, 0
    %v3307 = vsel %vm1518, %v3241, 0
    %v3310 = vsel %vm1518, %v3242, 0
    %v3313 = vsel %vm1518, %v3243, 0
    %3315 = vmatprep.subr.bf16.mxu0 0
    %3316 = vmatpush1.bf16.msra.mxu0 0
    %3317 = vmatprep.subr.bf16.mxu0 0
    %3318 = vmatpush1.bf16.msra.mxu0 0
    %3319 = vmatprep.subr.bf16.mxu0 0
    %3320 = vmatpush1.bf16.msra.mxu0 0
    %3321 = vmatprep.subr.bf16.mxu0 0
    %3322 = vmatpush1.bf16.msra.mxu0 0
    %3323 = vmatprep.subr.bf16.mxu0 0
    %3324 = vmatpush1.bf16.msra.mxu0 0
    %3325 = vmatprep.subr.bf16.mxu0 0
    %3326 = vmatpush1.bf16.msra.mxu0 0
    %3327 = vmatprep.subr.bf16.mxu0 0
    %3328 = vmatpush1.bf16.msra.mxu0 %v3264
    %3329 = vmatprep.subr.bf16.mxu0 0
    %3330 = vmatpush1.bf16.msra.mxu0 %v3263
    %3331 = vmatprep.subr.bf16.mxu0 0
    %3332 = vmatpush2.bf16.msra.mxu0 0
    %3333 = vmatprep.subr.bf16.mxu0 0
    %3334 = vmatpush2.bf16.msra.mxu0 0
    %3335 = vmatprep.subr.bf16.mxu0 0
    %3336 = vmatpush2.bf16.msra.mxu0 0
    %3337 = vmatprep.subr.bf16.mxu0 0
    %3338 = vmatpush2.bf16.msra.mxu0 0
    %3339 = vmatprep.subr.bf16.mxu0 0
    %3340 = vmatpush2.bf16.msra.mxu0 0
    %3341 = vmatprep.subr.bf16.mxu0 0
    %3342 = vmatpush2.bf16.msra.mxu0 0
    %3343 = vmatprep.subr.bf16.mxu0 0
    %3344 = vmatpush2.bf16.msra.mxu0 0
    %3345 = vmatprep.subr.bf16.mxu0 0
    %3346 = vmatpush2.bf16.msra.mxu0 0
    %3347 = vmatprep.mubr.bf16.mxu0 0
    %3348 = vmatmul.mubr.bf16.gmra.mxu0 %v3268
    %v3349 = vpop.f32.mrf.mxu0
    %v3350 = vadd.f32 %v3253, %v3349
    %v3351 = vpop.f32.mrf.mxu0
    %v3352 = vpop.f32.mrf.mxu0
    %v3353 = vadd.f32 %v3253, %v3352
    %v3354 = vpop.f32.mrf.mxu0
    %3355 = vmatprep.mubr.bf16.mxu0 0
    %3356 = vmatmul.mubr.bf16.gmra.mxu0 %v3271
    %v3357 = vpop.f32.mrf.mxu0
    %v3358 = vadd.f32 %v3253, %v3357
    %v3359 = vpop.f32.mrf.mxu0
    %v3360 = vpop.f32.mrf.mxu0
    %v3361 = vadd.f32 %v3253, %v3360
    %v3362 = vpop.f32.mrf.mxu0
    %3363 = vmatprep.mubr.bf16.mxu0 0
    %3364 = vmatmul.mubr.bf16.gmra.mxu0 %v3274
    %v3365 = vpop.f32.mrf.mxu0
    %v3366 = vadd.f32 %v3253, %v3365
    %v3367 = vpop.f32.mrf.mxu0
    %v3368 = vpop.f32.mrf.mxu0
    %v3369 = vadd.f32 %v3253, %v3368
    %v3370 = vpop.f32.mrf.mxu0
    %3371 = vmatprep.mubr.bf16.mxu0 0
    %3372 = vmatmul.mubr.bf16.gmra.mxu0 %v3277
    %v3373 = vpop.f32.mrf.mxu0
    %v3374 = vadd.f32 %v3253, %v3373
    %v3375 = vpop.f32.mrf.mxu0
    %v3376 = vpop.f32.mrf.mxu0
    %v3377 = vadd.f32 %v3253, %v3376
    %v3378 = vpop.f32.mrf.mxu0
    %3379 = vmatprep.mubr.bf16.mxu0 0
    %3380 = vmatmul.mubr.bf16.gmra.mxu0 %v3280
    %v3381 = vpop.f32.mrf.mxu0
    %v3382 = vadd.f32 %v3253, %v3381
    %v3383 = vpop.f32.mrf.mxu0
    %v3384 = vpop.f32.mrf.mxu0
    %v3385 = vadd.f32 %v3253, %v3384
    %v3386 = vpop.f32.mrf.mxu0
    %3387 = vmatprep.mubr.bf16.mxu0 0
    %3388 = vmatmul.mubr.bf16.gmra.mxu0 %v3283
    %v3389 = vpop.f32.mrf.mxu0
    %v3390 = vadd.f32 %v3253, %v3389
    %v3391 = vpop.f32.mrf.mxu0
    %v3392 = vpop.f32.mrf.mxu0
    %v3393 = vadd.f32 %v3253, %v3392
    %v3394 = vpop.f32.mrf.mxu0
    %3395 = vmatprep.mubr.bf16.mxu0 0
    %3396 = vmatmul.mubr.bf16.gmra.mxu0 %v3286
    %v3397 = vpop.f32.mrf.mxu0
    %v3398 = vadd.f32 %v3253, %v3397
    %v3399 = vpop.f32.mrf.mxu0
    %v3400 = vpop.f32.mrf.mxu0
    %v3401 = vadd.f32 %v3253, %v3400
    %v3402 = vpop.f32.mrf.mxu0
    %3403 = vmatprep.mubr.bf16.mxu0 0
    %3404 = vmatmul.mubr.bf16.gmra.mxu0 %v3289
    %v3405 = vpop.f32.mrf.mxu0
    %v3406 = vadd.f32 %v3253, %v3405
    %v3407 = vpop.f32.mrf.mxu0
    %v3408 = vpop.f32.mrf.mxu0
    %v3409 = vadd.f32 %v3253, %v3408
    %v3410 = vpop.f32.mrf.mxu0
    %3411 = vmatprep.mubr.bf16.mxu0 0
    %3412 = vmatmul.mubr.bf16.gmra.mxu0 %v3292
    %v3413 = vpop.f32.mrf.mxu0
    %v3414 = vadd.f32 %v3253, %v3413
    %v3415 = vpop.f32.mrf.mxu0
    %v3416 = vpop.f32.mrf.mxu0
    %v3417 = vadd.f32 %v3253, %v3416
    %v3418 = vpop.f32.mrf.mxu0
    %3419 = vmatprep.mubr.bf16.mxu0 0
    %3420 = vmatmul.mubr.bf16.gmra.mxu0 %v3295
    %v3421 = vpop.f32.mrf.mxu0
    %v3422 = vadd.f32 %v3253, %v3421
    %v3423 = vpop.f32.mrf.mxu0
    %v3424 = vpop.f32.mrf.mxu0
    %v3425 = vadd.f32 %v3253, %v3424
    %v3426 = vpop.f32.mrf.mxu0
    %3427 = vmatprep.mubr.bf16.mxu0 0
    %3428 = vmatmul.mubr.bf16.gmra.mxu0 %v3298
    %v3429 = vpop.f32.mrf.mxu0
    %v3430 = vadd.f32 %v3253, %v3429
    %v3431 = vpop.f32.mrf.mxu0
    %v3432 = vpop.f32.mrf.mxu0
    %v3433 = vadd.f32 %v3253, %v3432
    %v3434 = vpop.f32.mrf.mxu0
    %3435 = vmatprep.mubr.bf16.mxu0 0
    %3436 = vmatmul.mubr.bf16.gmra.mxu0 %v3301
    %v3437 = vpop.f32.mrf.mxu0
    %v3438 = vadd.f32 %v3253, %v3437
    %v3439 = vpop.f32.mrf.mxu0
    %v3440 = vpop.f32.mrf.mxu0
    %v3441 = vadd.f32 %v3253, %v3440
    %v3442 = vpop.f32.mrf.mxu0
    %3443 = vmatprep.mubr.bf16.mxu0 0
    %3444 = vmatmul.mubr.bf16.gmra.mxu0 %v3304
    %v3445 = vpop.f32.mrf.mxu0
    %v3446 = vadd.f32 %v3253, %v3445
    %v3447 = vpop.f32.mrf.mxu0
    %v3448 = vpop.f32.mrf.mxu0
    %v3449 = vadd.f32 %v3253, %v3448
    %v3450 = vpop.f32.mrf.mxu0
    %3451 = vmatprep.mubr.bf16.mxu0 0
    %3452 = vmatmul.mubr.bf16.gmra.mxu0 %v3307
    %v3453 = vpop.f32.mrf.mxu0
    %v3454 = vadd.f32 %v3253, %v3453
    %v3455 = vpop.f32.mrf.mxu0
    %v3456 = vpop.f32.mrf.mxu0
    %v3457 = vadd.f32 %v3253, %v3456
    %v3458 = vpop.f32.mrf.mxu0
    %3459 = vmatprep.mubr.bf16.mxu0 0
    %3460 = vmatmul.mubr.bf16.gmra.mxu0 %v3310
    %v3461 = vpop.f32.mrf.mxu0
    %v3462 = vadd.f32 %v3253, %v3461
    %v3463 = vpop.f32.mrf.mxu0
    %v3464 = vpop.f32.mrf.mxu0
    %v3465 = vadd.f32 %v3253, %v3464
    %v3466 = vpop.f32.mrf.mxu0
    %3467 = vmatprep.mubr.bf16.mxu0 0
    %3468 = vmatmul.mubr.bf16.gmra.mxu0 %v3313
    %v3469 = vpop.f32.mrf.mxu0
    %v3470 = vadd.f32 %v3253, %v3469
    %v3471 = vpop.f32.mrf.mxu0
    %v3472 = vpop.f32.mrf.mxu0
    %v3473 = vadd.f32 %v3253, %v3472
    %v3474 = vpop.f32.mrf.mxu0
    %3475 = vdwg.mxu0
    %v3476 = vtanh.pop %v3350
    %v3477 = vtanh.pop %v3353
    %v3478 = vtanh.pop %v3358
    %v3479 = vtanh.pop %v3361
    %v3480 = vtanh.pop %v3366
    %v3481 = vtanh.pop %v3369
    %v3482 = vtanh.pop %v3374
    %v3483 = vtanh.pop %v3377
    %v3484 = vtanh.pop %v3382
    %v3485 = vtanh.pop %v3385
    %v3486 = vtanh.pop %v3390
    %v3487 = vtanh.pop %v3393
    %v3488 = vtanh.pop %v3398
    %v3489 = vtanh.pop %v3401
    %v3490 = vtanh.pop %v3406
    %v3491 = vtanh.pop %v3409
    %v3492 = vtanh.pop %v3414
    %v3493 = vtanh.pop %v3417
    %v3494 = vtanh.pop %v3422
    %v3495 = vtanh.pop %v3425
    %v3496 = vtanh.pop %v3430
    %v3497 = vtanh.pop %v3433
    %v3498 = vtanh.pop %v3438
    %v3499 = vtanh.pop %v3441
    %v3500 = vtanh.pop %v3446
    %v3501 = vtanh.pop %v3449
    %v3502 = vtanh.pop %v3454
    %v3503 = vtanh.pop %v3457
    %v3504 = vtanh.pop %v3462
    %v3505 = vtanh.pop %v3465
    %v3506 = vtanh.pop %v3470
    %v3507 = vtanh.pop %v3473
    %v3508 = vsub.f32 %v3350, %v3476
    %v3509 = vsub.f32 %v3353, %v3477
    %v3510 = vsub.f32 %v3358, %v3478
    %v3511 = vsub.f32 %v3361, %v3479
    %v3512 = vsub.f32 %v3366, %v3480
    %v3513 = vsub.f32 %v3369, %v3481
    %v3514 = vsub.f32 %v3374, %v3482
    %v3515 = vsub.f32 %v3377, %v3483
    %v3516 = vsub.f32 %v3382, %v3484
    %v3517 = vsub.f32 %v3385, %v3485
    %v3518 = vsub.f32 %v3390, %v3486
    %v3519 = vsub.f32 %v3393, %v3487
    %v3520 = vsub.f32 %v3398, %v3488
    %v3521 = vsub.f32 %v3401, %v3489
    %v3522 = vsub.f32 %v3406, %v3490
    %v3523 = vsub.f32 %v3409, %v3491
    %v3524 = vsub.f32 %v3414, %v3492
    %v3525 = vsub.f32 %v3417, %v3493
    %v3526 = vsub.f32 %v3422, %v3494
    %v3527 = vsub.f32 %v3425, %v3495
    %v3528 = vsub.f32 %v3430, %v3496
    %v3529 = vsub.f32 %v3433, %v3497
    %v3530 = vsub.f32 %v3438, %v3498
    %v3531 = vsub.f32 %v3441, %v3499
    %v3532 = vsub.f32 %v3446, %v3500
    %v3533 = vsub.f32 %v3449, %v3501
    %v3534 = vsub.f32 %v3454, %v3502
    %v3535 = vsub.f32 %v3457, %v3503
    %v3536 = vsub.f32 %v3462, %v3504
    %v3537 = vsub.f32 %v3465, %v3505
    %v3538 = vsub.f32 %v3470, %v3506
    %v3539 = vsub.f32 %v3473, %v3507
    %v3540 = vld [vmem:[%s14] sm:$0x1]
    %v3542 = vlaneseq
    %v3543 = vshrl.u32 %v3542, 7
    %v3544 = vsub.s32 0, %v3543
    %v3545 = vrot.slane %v3540, %v3544
    %v3547 = vmul.f32 %v3508, %v3545
    %v3548 = vmul.f32 %v3509, %v3545
    %v3549 = vmul.f32 %v3510, %v3545
    %v3550 = vmul.f32 %v3511, %v3545
    %v3551 = vmul.f32 %v3512, %v3545
    %v3552 = vmul.f32 %v3513, %v3545
    %v3553 = vmul.f32 %v3514, %v3545
    %v3554 = vmul.f32 %v3515, %v3545
    %v3555 = vmul.f32 %v3516, %v3545
    %v3556 = vmul.f32 %v3517, %v3545
    %v3557 = vmul.f32 %v3518, %v3545
    %v3558 = vmul.f32 %v3519, %v3545
    %v3559 = vmul.f32 %v3520, %v3545
    %v3560 = vmul.f32 %v3521, %v3545
    %v3561 = vmul.f32 %v3522, %v3545
    %v3562 = vmul.f32 %v3523, %v3545
    %v3563 = vmul.f32 %v3524, %v3545
    %v3564 = vmul.f32 %v3525, %v3545
    %v3565 = vmul.f32 %v3526, %v3545
    %v3566 = vmul.f32 %v3527, %v3545
    %v3567 = vmul.f32 %v3528, %v3545
    %v3568 = vmul.f32 %v3529, %v3545
    %v3569 = vmul.f32 %v3530, %v3545
    %v3570 = vmul.f32 %v3531, %v3545
    %v3571 = vmul.f32 %v3532, %v3545
    %v3572 = vmul.f32 %v3533, %v3545
    %v3573 = vmul.f32 %v3534, %v3545
    %v3574 = vmul.f32 %v3535, %v3545
    %v3575 = vmul.f32 %v3536, %v3545
    %v3576 = vmul.f32 %v3537, %v3545
    %v3577 = vmul.f32 %v3538, %v3545
    %v3578 = vmul.f32 %v3539, %v3545
    %v3579 = vsel %vm1518, %v3547, 0.0
    %3580 = vadd.xlane.f32.xlu0 %v3579
    %v3581 = vpop.xlane.xlu0 %3580
    %v3582 = vsel %vm1518, %v3548, 0.0
    %3583 = vadd.xlane.f32.xlu0 %v3582
    %v3584 = vpop.xlane.xlu0 %3583
    %v3585 = vsel %vm1518, %v3549, 0.0
    %3586 = vadd.xlane.f32.xlu0 %v3585
    %v3587 = vpop.xlane.xlu0 %3586
    %v3588 = vsel %vm1518, %v3550, 0.0
    %3589 = vadd.xlane.f32.xlu0 %v3588
    %v3590 = vpop.xlane.xlu0 %3589
    %v3591 = vsel %vm1518, %v3551, 0.0
    %3592 = vadd.xlane.f32.xlu0 %v3591
    %v3593 = vpop.xlane.xlu0 %3592
    %v3594 = vsel %vm1518, %v3552, 0.0
    %3595 = vadd.xlane.f32.xlu0 %v3594
    %v3596 = vpop.xlane.xlu0 %3595
    %v3597 = vsel %vm1518, %v3553, 0.0
    %3598 = vadd.xlane.f32.xlu0 %v3597
    %v3599 = vpop.xlane.xlu0 %3598
    %v3600 = vsel %vm1518, %v3554, 0.0
    %3601 = vadd.xlane.f32.xlu0 %v3600
    %v3602 = vpop.xlane.xlu0 %3601
    %v3603 = vsel %vm1518, %v3555, 0.0
    %3604 = vadd.xlane.f32.xlu0 %v3603
    %v3605 = vpop.xlane.xlu0 %3604
    %v3606 = vsel %vm1518, %v3556, 0.0
    %3607 = vadd.xlane.f32.xlu0 %v3606
    %v3608 = vpop.xlane.xlu0 %3607
    %v3609 = vsel %vm1518, %v3557, 0.0
    %3610 = vadd.xlane.f32.xlu0 %v3609
    %v3611 = vpop.xlane.xlu0 %3610
    %v3612 = vsel %vm1518, %v3558, 0.0
    %3613 = vadd.xlane.f32.xlu0 %v3612
    %v3614 = vpop.xlane.xlu0 %3613
    %v3615 = vsel %vm1518, %v3559, 0.0
    %3616 = vadd.xlane.f32.xlu0 %v3615
    %v3617 = vpop.xlane.xlu0 %3616
    %v3618 = vsel %vm1518, %v3560, 0.0
    %3619 = vadd.xlane.f32.xlu0 %v3618
    %v3620 = vpop.xlane.xlu0 %3619
    %v3621 = vsel %vm1518, %v3561, 0.0
    %3622 = vadd.xlane.f32.xlu0 %v3621
    %v3623 = vpop.xlane.xlu0 %3622
    %v3624 = vsel %vm1518, %v3562, 0.0
    %3625 = vadd.xlane.f32.xlu0 %v3624
    %v3626 = vpop.xlane.xlu0 %3625
    %v3627 = vsel %vm1518, %v3563, 0.0
    %3628 = vadd.xlane.f32.xlu0 %v3627
    %v3629 = vpop.xlane.xlu0 %3628
    %v3630 = vsel %vm1518, %v3564, 0.0
    %3631 = vadd.xlane.f32.xlu0 %v3630
    %v3632 = vpop.xlane.xlu0 %3631
    %v3633 = vsel %vm1518, %v3565, 0.0
    %3634 = vadd.xlane.f32.xlu0 %v3633
    %v3635 = vpop.xlane.xlu0 %3634
    %v3636 = vsel %vm1518, %v3566, 0.0
    %3637 = vadd.xlane.f32.xlu0 %v3636
    %v3638 = vpop.xlane.xlu0 %3637
    %v3639 = vsel %vm1518, %v3567, 0.0
    %3640 = vadd.xlane.f32.xlu0 %v3639
    %v3641 = vpop.xlane.xlu0 %3640
    %v3642 = vsel %vm1518, %v3568, 0.0
    %3643 = vadd.xlane.f32.xlu0 %v3642
    %v3644 = vpop.xlane.xlu0 %3643
    %v3645 = vsel %vm1518, %v3569, 0.0
    %3646 = vadd.xlane.f32.xlu0 %v3645
    %v3647 = vpop.xlane.xlu0 %3646
    %v3648 = vsel %vm1518, %v3570, 0.0
    %3649 = vadd.xlane.f32.xlu0 %v3648
    %v3650 = vpop.xlane.xlu0 %3649
    %v3651 = vsel %vm1518, %v3571, 0.0
    %3652 = vadd.xlane.f32.xlu0 %v3651
    %v3653 = vpop.xlane.xlu0 %3652
    %v3654 = vsel %vm1518, %v3572, 0.0
    %3655 = vadd.xlane.f32.xlu0 %v3654
    %v3656 = vpop.xlane.xlu0 %3655
    %v3657 = vsel %vm1518, %v3573, 0.0
    %3658 = vadd.xlane.f32.xlu0 %v3657
    %v3659 = vpop.xlane.xlu0 %3658
    %v3660 = vsel %vm1518, %v3574, 0.0
    %3661 = vadd.xlane.f32.xlu0 %v3660
    %v3662 = vpop.xlane.xlu0 %3661
    %v3663 = vsel %vm1518, %v3575, 0.0
    %3664 = vadd.xlane.f32.xlu0 %v3663
    %v3665 = vpop.xlane.xlu0 %3664
    %v3666 = vsel %vm1518, %v3576, 0.0
    %3667 = vadd.xlane.f32.xlu0 %v3666
    %v3668 = vpop.xlane.xlu0 %3667
    %v3669 = vsel %vm1518, %v3577, 0.0
    %3670 = vadd.xlane.f32.xlu0 %v3669
    %v3671 = vpop.xlane.xlu0 %3670
    %v3672 = vsel %vm1518, %v3578, 0.0
    %3673 = vadd.xlane.f32.xlu0 %v3672
    %v3674 = vpop.xlane.xlu0 %3673
    %v3675 = vld [vmem:[#allocation5] sm:$0x1]
    %v3677 = vlaneseq
    %v3678 = vshrl.u32 %v3677, 7
    %v3679 = vsub.s32 0, %v3678
    %v3680 = vrot.slane %v3675, %v3679
    %v3682 = vadd.f32 %v3581, %v3680
    %v3683 = vadd.f32 %v3584, %v3680
    %v3684 = vadd.f32 %v3587, %v3680
    %v3685 = vadd.f32 %v3590, %v3680
    %v3686 = vadd.f32 %v3593, %v3680
    %v3687 = vadd.f32 %v3596, %v3680
    %v3688 = vadd.f32 %v3599, %v3680
    %v3689 = vadd.f32 %v3602, %v3680
    %v3690 = vadd.f32 %v3605, %v3680
    %v3691 = vadd.f32 %v3608, %v3680
    %v3692 = vadd.f32 %v3611, %v3680
    %v3693 = vadd.f32 %v3614, %v3680
    %v3694 = vadd.f32 %v3617, %v3680
    %v3695 = vadd.f32 %v3620, %v3680
    %v3696 = vadd.f32 %v3623, %v3680
    %v3697 = vadd.f32 %v3626, %v3680
    %v3698 = vadd.f32 %v3629, %v3680
    %v3699 = vadd.f32 %v3632, %v3680
    %v3700 = vadd.f32 %v3635, %v3680
    %v3701 = vadd.f32 %v3638, %v3680
    %v3702 = vadd.f32 %v3641, %v3680
    %v3703 = vadd.f32 %v3644, %v3680
    %v3704 = vadd.f32 %v3647, %v3680
    %v3705 = vadd.f32 %v3650, %v3680
    %v3706 = vadd.f32 %v3653, %v3680
    %v3707 = vadd.f32 %v3656, %v3680
    %v3708 = vadd.f32 %v3659, %v3680
    %v3709 = vadd.f32 %v3662, %v3680
    %v3710 = vadd.f32 %v3665, %v3680
    %v3711 = vadd.f32 %v3668, %v3680
    %v3712 = vadd.f32 %v3671, %v3680
    %v3713 = vadd.f32 %v3674, %v3680
    %3715 = vset.pattern.permute.xlu0 0
    %3716 = vperm.xlu0 %3715, %v3682
    %v3717 = vpop.permute.xlu0 %3716
    %3720 = vset.pattern.permute.xlu0 0
    %3721 = vperm.xlu0 %3720, %v3683
    %v3722 = vpop.permute.xlu0 %3721
    %3725 = vset.pattern.permute.xlu0 0
    %3726 = vperm.xlu0 %3725, %v3684
    %v3727 = vpop.permute.xlu0 %3726
    %3730 = vset.pattern.permute.xlu0 0
    %3731 = vperm.xlu0 %3730, %v3685
    %v3732 = vpop.permute.xlu0 %3731
    %3735 = vset.pattern.permute.xlu0 0
    %3736 = vperm.xlu0 %3735, %v3686
    %v3737 = vpop.permute.xlu0 %3736
    %3740 = vset.pattern.permute.xlu0 0
    %3741 = vperm.xlu0 %3740, %v3687
    %v3742 = vpop.permute.xlu0 %3741
    %3745 = vset.pattern.permute.xlu0 0
    %3746 = vperm.xlu0 %3745, %v3688
    %v3747 = vpop.permute.xlu0 %3746
    %3750 = vset.pattern.permute.xlu0 0
    %3751 = vperm.xlu0 %3750, %v3689
    %v3752 = vpop.permute.xlu0 %3751
    %3755 = vset.pattern.permute.xlu0 0
    %3756 = vperm.xlu0 %3755, %v3690
    %v3757 = vpop.permute.xlu0 %3756
    %3760 = vset.pattern.permute.xlu0 0
    %3761 = vperm.xlu0 %3760, %v3691
    %v3762 = vpop.permute.xlu0 %3761
    %3765 = vset.pattern.permute.xlu0 0
    %3766 = vperm.xlu0 %3765, %v3692
    %v3767 = vpop.permute.xlu0 %3766
    %3770 = vset.pattern.permute.xlu0 0
    %3771 = vperm.xlu0 %3770, %v3693
    %v3772 = vpop.permute.xlu0 %3771
    %3775 = vset.pattern.permute.xlu0 0
    %3776 = vperm.xlu0 %3775, %v3694
    %v3777 = vpop.permute.xlu0 %3776
    %3780 = vset.pattern.permute.xlu0 0
    %3781 = vperm.xlu0 %3780, %v3695
    %v3782 = vpop.permute.xlu0 %3781
    %3785 = vset.pattern.permute.xlu0 0
    %3786 = vperm.xlu0 %3785, %v3696
    %v3787 = vpop.permute.xlu0 %3786
    %3790 = vset.pattern.permute.xlu0 0
    %3791 = vperm.xlu0 %3790, %v3697
    %v3792 = vpop.permute.xlu0 %3791
    %3795 = vset.pattern.permute.xlu0 0
    %3796 = vperm.xlu0 %3795, %v3698
    %v3797 = vpop.permute.xlu0 %3796
    %3800 = vset.pattern.permute.xlu0 0
    %3801 = vperm.xlu0 %3800, %v3699
    %v3802 = vpop.permute.xlu0 %3801
    %3805 = vset.pattern.permute.xlu0 0
    %3806 = vperm.xlu0 %3805, %v3700
    %v3807 = vpop.permute.xlu0 %3806
    %3810 = vset.pattern.permute.xlu0 0
    %3811 = vperm.xlu0 %3810, %v3701
    %v3812 = vpop.permute.xlu0 %3811
    %3815 = vset.pattern.permute.xlu0 0
    %3816 = vperm.xlu0 %3815, %v3702
    %v3817 = vpop.permute.xlu0 %3816
    %3820 = vset.pattern.permute.xlu0 0
    %3821 = vperm.xlu0 %3820, %v3703
    %v3822 = vpop.permute.xlu0 %3821
    %3825 = vset.pattern.permute.xlu0 0
    %3826 = vperm.xlu0 %3825, %v3704
    %v3827 = vpop.permute.xlu0 %3826
    %3830 = vset.pattern.permute.xlu0 0
    %3831 = vperm.xlu0 %3830, %v3705
    %v3832 = vpop.permute.xlu0 %3831
    %3835 = vset.pattern.permute.xlu0 0
    %3836 = vperm.xlu0 %3835, %v3706
    %v3837 = vpop.permute.xlu0 %3836
    %3840 = vset.pattern.permute.xlu0 0
    %3841 = vperm.xlu0 %3840, %v3707
    %v3842 = vpop.permute.xlu0 %3841
    %3845 = vset.pattern.permute.xlu0 0
    %3846 = vperm.xlu0 %3845, %v3708
    %v3847 = vpop.permute.xlu0 %3846
    %3850 = vset.pattern.permute.xlu0 0
    %3851 = vperm.xlu0 %3850, %v3709
    %v3852 = vpop.permute.xlu0 %3851
    %3855 = vset.pattern.permute.xlu0 0
    %3856 = vperm.xlu0 %3855, %v3710
    %v3857 = vpop.permute.xlu0 %3856
    %3860 = vset.pattern.permute.xlu0 0
    %3861 = vperm.xlu0 %3860, %v3711
    %v3862 = vpop.permute.xlu0 %3861
    %3865 = vset.pattern.permute.xlu0 0
    %3866 = vperm.xlu0 %3865, %v3712
    %v3867 = vpop.permute.xlu0 %3866
    %3870 = vset.pattern.permute.xlu0 0
    %3871 = vperm.xlu0 %3870, %v3713
    %v3872 = vpop.permute.xlu0 %3871
    %v3874 = vmul.f32 %v1179, %v3717
    %v3875 = vmul.f32 %v1184, %v3722
    %v3876 = vmul.f32 %v1189, %v3727
    %v3877 = vmul.f32 %v1194, %v3732
    %v3878 = vmul.f32 %v1199, %v3737
    %v3879 = vmul.f32 %v1204, %v3742
    %v3880 = vmul.f32 %v1209, %v3747
    %v3881 = vmul.f32 %v1214, %v3752
    %v3882 = vmul.f32 %v1219, %v3757
    %v3883 = vmul.f32 %v1224, %v3762
    %v3884 = vmul.f32 %v1229, %v3767
    %v3885 = vmul.f32 %v1234, %v3772
    %v3886 = vmul.f32 %v1239, %v3777
    %v3887 = vmul.f32 %v1244, %v3782
    %v3888 = vmul.f32 %v1249, %v3787
    %v3889 = vmul.f32 %v1254, %v3792
    %v3890 = vmul.f32 %v1259, %v3797
    %v3891 = vmul.f32 %v1264, %v3802
    %v3892 = vmul.f32 %v1269, %v3807
    %v3893 = vmul.f32 %v1274, %v3812
    %v3894 = vmul.f32 %v1279, %v3817
    %v3895 = vmul.f32 %v1284, %v3822
    %v3896 = vmul.f32 %v1289, %v3827
    %v3897 = vmul.f32 %v1294, %v3832
    %v3898 = vmul.f32 %v1299, %v3837
    %v3899 = vmul.f32 %v1304, %v3842
    %v3900 = vmul.f32 %v1309, %v3847
    %v3901 = vmul.f32 %v1314, %v3852
    %v3902 = vmul.f32 %v1319, %v3857
    %v3903 = vmul.f32 %v1324, %v3862
    %v3904 = vmul.f32 %v1329, %v3867
    %v3905 = vmul.f32 %v1334, %v3872
    %v3922 = vunpack.c.l.b16 %v3228
    %v3923 = vunpack.c.h.b16 %v3228
    %v3924 = vunpack.c.l.b16 %v3229
    %v3925 = vunpack.c.h.b16 %v3229
    %v3926 = vunpack.c.l.b16 %v3230
    %v3927 = vunpack.c.h.b16 %v3230
    %v3928 = vunpack.c.l.b16 %v3231
    %v3929 = vunpack.c.h.b16 %v3231
    %v3930 = vunpack.c.l.b16 %v3232
    %v3931 = vunpack.c.h.b16 %v3232
    %v3932 = vunpack.c.l.b16 %v3233
    %v3933 = vunpack.c.h.b16 %v3233
    %v3934 = vunpack.c.l.b16 %v3234
    %v3935 = vunpack.c.h.b16 %v3234
    %v3936 = vunpack.c.l.b16 %v3235
    %v3937 = vunpack.c.h.b16 %v3235
    %v3938 = vunpack.c.l.b16 %v3236
    %v3939 = vunpack.c.h.b16 %v3236
    %v3940 = vunpack.c.l.b16 %v3237
    %v3941 = vunpack.c.h.b16 %v3237
    %v3942 = vunpack.c.l.b16 %v3238
    %v3943 = vunpack.c.h.b16 %v3238
    %v3944 = vunpack.c.l.b16 %v3239
    %v3945 = vunpack.c.h.b16 %v3239
    %v3946 = vunpack.c.l.b16 %v3240
    %v3947 = vunpack.c.h.b16 %v3240
    %v3948 = vunpack.c.l.b16 %v3241
    %v3949 = vunpack.c.h.b16 %v3241
    %v3950 = vunpack.c.l.b16 %v3242
    %v3951 = vunpack.c.h.b16 %v3242
    %v3952 = vunpack.c.l.b16 %v3243
    %v3953 = vunpack.c.h.b16 %v3243
    %v3954 = vpack.c.b16 %v3922, %v3922
    %v3955 = vpack.c.b16 %v3923, %v3923
    %v3956 = vpack.c.b16 %v3924, %v3924
    %v3957 = vpack.c.b16 %v3925, %v3925
    %v3958 = vpack.c.b16 %v3926, %v3926
    %v3959 = vpack.c.b16 %v3927, %v3927
    %v3960 = vpack.c.b16 %v3928, %v3928
    %v3961 = vpack.c.b16 %v3929, %v3929
    %v3962 = vpack.c.b16 %v3930, %v3930
    %v3963 = vpack.c.b16 %v3931, %v3931
    %v3964 = vpack.c.b16 %v3932, %v3932
    %v3965 = vpack.c.b16 %v3933, %v3933
    %v3966 = vpack.c.b16 %v3934, %v3934
    %v3967 = vpack.c.b16 %v3935, %v3935
    %v3968 = vpack.c.b16 %v3936, %v3936
    %v3969 = vpack.c.b16 %v3937, %v3937
    %v3970 = vpack.c.b16 %v3938, %v3938
    %v3971 = vpack.c.b16 %v3939, %v3939
    %v3972 = vpack.c.b16 %v3940, %v3940
    %v3973 = vpack.c.b16 %v3941, %v3941
    %v3974 = vpack.c.b16 %v3942, %v3942
    %v3975 = vpack.c.b16 %v3943, %v3943
    %v3976 = vpack.c.b16 %v3944, %v3944
    %v3977 = vpack.c.b16 %v3945, %v3945
    %v3978 = vpack.c.b16 %v3946, %v3946
    %v3979 = vpack.c.b16 %v3947, %v3947
    %v3980 = vpack.c.b16 %v3948, %v3948
    %v3981 = vpack.c.b16 %v3949, %v3949
    %v3982 = vpack.c.b16 %v3950, %v3950
    %v3983 = vpack.c.b16 %v3951, %v3951
    %v3984 = vpack.c.b16 %v3952, %v3952
    %v3985 = vpack.c.b16 %v3953, %v3953
    %vm4018 = vcmask 257024
    %4019 = vst.msk [vmem:[#allocation3] sm:$0xf] %vm4018, %v3954
    %4020 = vst.msk [vmem:[#allocation3 + $0x4] sm:$0xf] %vm4018, %v3955
    %4021 = vst.msk [vmem:[#allocation3 + $0x8] sm:$0xf] %vm4018, %v3956
    %4022 = vst.msk [vmem:[#allocation3 + $0xc] sm:$0xf] %vm4018, %v3957
    %4023 = vst.msk [vmem:[#allocation3 + $0x10] sm:$0xf] %vm4018, %v3958
    %4024 = vst.msk [vmem:[#allocation3 + $0x14] sm:$0xf] %vm4018, %v3959
    %4025 = vst.msk [vmem:[#allocation3 + $0x18] sm:$0xf] %vm4018, %v3960
    %4026 = vst.msk [vmem:[#allocation3 + $0x1c] sm:$0xf] %vm4018, %v3961
    %4027 = vst.msk [vmem:[#allocation3 + $0x20] sm:$0xf] %vm4018, %v3962
    %4028 = vst.msk [vmem:[#allocation3 + $0x24] sm:$0xf] %vm4018, %v3963
    %4029 = vst.msk [vmem:[#allocation3 + $0x28] sm:$0xf] %vm4018, %v3964
    %4030 = vst.msk [vmem:[#allocation3 + $0x2c] sm:$0xf] %vm4018, %v3965
    %4031 = vst.msk [vmem:[#allocation3 + $0x30] sm:$0xf] %vm4018, %v3966
    %4032 = vst.msk [vmem:[#allocation3 + $0x34] sm:$0xf] %vm4018, %v3967
    %4033 = vst.msk [vmem:[#allocation3 + $0x38] sm:$0xf] %vm4018, %v3968
    %4034 = vst.msk [vmem:[#allocation3 + $0x3c] sm:$0xf] %vm4018, %v3969
    %4035 = vst.msk [vmem:[#allocation3 + $0x40] sm:$0xf] %vm4018, %v3970
    %4036 = vst.msk [vmem:[#allocation3 + $0x44] sm:$0xf] %vm4018, %v3971
    %4037 = vst.msk [vmem:[#allocation3 + $0x48] sm:$0xf] %vm4018, %v3972
    %4038 = vst.msk [vmem:[#allocation3 + $0x4c] sm:$0xf] %vm4018, %v3973
    %4039 = vst.msk [vmem:[#allocation3 + $0x50] sm:$0xf] %vm4018, %v3974
    %4040 = vst.msk [vmem:[#allocation3 + $0x54] sm:$0xf] %vm4018, %v3975
    %4041 = vst.msk [vmem:[#allocation3 + $0x58] sm:$0xf] %vm4018, %v3976
    %4042 = vst.msk [vmem:[#allocation3 + $0x5c] sm:$0xf] %vm4018, %v3977
    %4043 = vst.msk [vmem:[#allocation3 + $0x60] sm:$0xf] %vm4018, %v3978
    %4044 = vst.msk [vmem:[#allocation3 + $0x64] sm:$0xf] %vm4018, %v3979
    %4045 = vst.msk [vmem:[#allocation3 + $0x68] sm:$0xf] %vm4018, %v3980
    %4046 = vst.msk [vmem:[#allocation3 + $0x6c] sm:$0xf] %vm4018, %v3981
    %4047 = vst.msk [vmem:[#allocation3 + $0x70] sm:$0xf] %vm4018, %v3982
    %4048 = vst.msk [vmem:[#allocation3 + $0x74] sm:$0xf] %vm4018, %v3983
    %4049 = vst.msk [vmem:[#allocation3 + $0x78] sm:$0xf] %vm4018, %v3984
    %4050 = vst.msk [vmem:[#allocation3 + $0x7c] sm:$0xf] %vm4018, %v3985
    %v4051 = vpack.c.bf16 %v3875, %v3874
    %v4052 = vpack.c.bf16 %v3877, %v3876
    %v4053 = vpack.c.bf16 %v3879, %v3878
    %v4054 = vpack.c.bf16 %v3881, %v3880
    %v4055 = vpack.c.bf16 %v3883, %v3882
    %v4056 = vpack.c.bf16 %v3885, %v3884
    %v4057 = vpack.c.bf16 %v3887, %v3886
    %v4058 = vpack.c.bf16 %v3889, %v3888
    %v4059 = vpack.c.bf16 %v3891, %v3890
    %v4060 = vpack.c.bf16 %v3893, %v3892
    %v4061 = vpack.c.bf16 %v3895, %v3894
    %v4062 = vpack.c.bf16 %v3897, %v3896
    %v4063 = vpack.c.bf16 %v3899, %v3898
    %v4064 = vpack.c.bf16 %v3901, %v3900
    %v4065 = vpack.c.bf16 %v3903, %v3902
    %v4066 = vpack.c.bf16 %v3905, %v3904
    %v4083 = vunpack.c.l.b16 %v4051
    %v4084 = vunpack.c.h.b16 %v4051
    %v4085 = vunpack.c.l.b16 %v4052
    %v4086 = vunpack.c.h.b16 %v4052
    %v4087 = vunpack.c.l.b16 %v4053
    %v4088 = vunpack.c.h.b16 %v4053
    %v4089 = vunpack.c.l.b16 %v4054
    %v4090 = vunpack.c.h.b16 %v4054
    %v4091 = vunpack.c.l.b16 %v4055
    %v4092 = vunpack.c.h.b16 %v4055
    %v4093 = vunpack.c.l.b16 %v4056
    %v4094 = vunpack.c.h.b16 %v4056
    %v4095 = vunpack.c.l.b16 %v4057
    %v4096 = vunpack.c.h.b16 %v4057
    %v4097 = vunpack.c.l.b16 %v4058
    %v4098 = vunpack.c.h.b16 %v4058
    %v4099 = vunpack.c.l.b16 %v4059
    %v4100 = vunpack.c.h.b16 %v4059
    %v4101 = vunpack.c.l.b16 %v4060
    %v4102 = vunpack.c.h.b16 %v4060
    %v4103 = vunpack.c.l.b16 %v4061
    %v4104 = vunpack.c.h.b16 %v4061
    %v4105 = vunpack.c.l.b16 %v4062
    %v4106 = vunpack.c.h.b16 %v4062
    %v4107 = vunpack.c.l.b16 %v4063
    %v4108 = vunpack.c.h.b16 %v4063
    %v4109 = vunpack.c.l.b16 %v4064
    %v4110 = vunpack.c.h.b16 %v4064
    %v4111 = vunpack.c.l.b16 %v4065
    %v4112 = vunpack.c.h.b16 %v4065
    %v4113 = vunpack.c.l.b16 %v4066
    %v4114 = vunpack.c.h.b16 %v4066
    %v4115 = vpack.c.b16 %v4083, %v4083
    %v4116 = vpack.c.b16 %v4084, %v4084
    %v4117 = vpack.c.b16 %v4085, %v4085
    %v4118 = vpack.c.b16 %v4086, %v4086
    %v4119 = vpack.c.b16 %v4087, %v4087
    %v4120 = vpack.c.b16 %v4088, %v4088
    %v4121 = vpack.c.b16 %v4089, %v4089
    %v4122 = vpack.c.b16 %v4090, %v4090
    %v4123 = vpack.c.b16 %v4091, %v4091
    %v4124 = vpack.c.b16 %v4092, %v4092
    %v4125 = vpack.c.b16 %v4093, %v4093
    %v4126 = vpack.c.b16 %v4094, %v4094
    %v4127 = vpack.c.b16 %v4095, %v4095
    %v4128 = vpack.c.b16 %v4096, %v4096
    %v4129 = vpack.c.b16 %v4097, %v4097
    %v4130 = vpack.c.b16 %v4098, %v4098
    %v4131 = vpack.c.b16 %v4099, %v4099
    %v4132 = vpack.c.b16 %v4100, %v4100
    %v4133 = vpack.c.b16 %v4101, %v4101
    %v4134 = vpack.c.b16 %v4102, %v4102
    %v4135 = vpack.c.b16 %v4103, %v4103
    %v4136 = vpack.c.b16 %v4104, %v4104
    %v4137 = vpack.c.b16 %v4105, %v4105
    %v4138 = vpack.c.b16 %v4106, %v4106
    %v4139 = vpack.c.b16 %v4107, %v4107
    %v4140 = vpack.c.b16 %v4108, %v4108
    %v4141 = vpack.c.b16 %v4109, %v4109
    %v4142 = vpack.c.b16 %v4110, %v4110
    %v4143 = vpack.c.b16 %v4111, %v4111
    %v4144 = vpack.c.b16 %v4112, %v4112
    %v4145 = vpack.c.b16 %v4113, %v4113
    %v4146 = vpack.c.b16 %v4114, %v4114
    %4147 = vrot.lane.b32.xlu0 %v4115, 32
    %v4148 = vpop.permute.xlu0 %4147
    %4149 = vrot.lane.b32.xlu0 %v4116, 32
    %v4150 = vpop.permute.xlu0 %4149
    %4151 = vrot.lane.b32.xlu0 %v4117, 32
    %v4152 = vpop.permute.xlu0 %4151
    %4153 = vrot.lane.b32.xlu0 %v4118, 32
    %v4154 = vpop.permute.xlu0 %4153
    %4155 = vrot.lane.b32.xlu0 %v4119, 32
    %v4156 = vpop.permute.xlu0 %4155
    %4157 = vrot.lane.b32.xlu0 %v4120, 32
    %v4158 = vpop.permute.xlu0 %4157
    %4159 = vrot.lane.b32.xlu0 %v4121, 32
    %v4160 = vpop.permute.xlu0 %4159
    %4161 = vrot.lane.b32.xlu0 %v4122, 32
    %v4162 = vpop.permute.xlu0 %4161
    %4163 = vrot.lane.b32.xlu0 %v4123, 32
    %v4164 = vpop.permute.xlu0 %4163
    %4165 = vrot.lane.b32.xlu0 %v4124, 32
    %v4166 = vpop.permute.xlu0 %4165
    %4167 = vrot.lane.b32.xlu0 %v4125, 32
    %v4168 = vpop.permute.xlu0 %4167
    %4169 = vrot.lane.b32.xlu0 %v4126, 32
    %v4170 = vpop.permute.xlu0 %4169
    %4171 = vrot.lane.b32.xlu0 %v4127, 32
    %v4172 = vpop.permute.xlu0 %4171
    %4173 = vrot.lane.b32.xlu0 %v4128, 32
    %v4174 = vpop.permute.xlu0 %4173
    %4175 = vrot.lane.b32.xlu0 %v4129, 32
    %v4176 = vpop.permute.xlu0 %4175
    %4177 = vrot.lane.b32.xlu0 %v4130, 32
    %v4178 = vpop.permute.xlu0 %4177
    %4179 = vrot.lane.b32.xlu0 %v4131, 32
    %v4180 = vpop.permute.xlu0 %4179
    %4181 = vrot.lane.b32.xlu0 %v4132, 32
    %v4182 = vpop.permute.xlu0 %4181
    %4183 = vrot.lane.b32.xlu0 %v4133, 32
    %v4184 = vpop.permute.xlu0 %4183
    %4185 = vrot.lane.b32.xlu0 %v4134, 32
    %v4186 = vpop.permute.xlu0 %4185
    %4187 = vrot.lane.b32.xlu0 %v4135, 32
    %v4188 = vpop.permute.xlu0 %4187
    %4189 = vrot.lane.b32.xlu0 %v4136, 32
    %v4190 = vpop.permute.xlu0 %4189
    %4191 = vrot.lane.b32.xlu0 %v4137, 32
    %v4192 = vpop.permute.xlu0 %4191
    %4193 = vrot.lane.b32.xlu0 %v4138, 32
    %v4194 = vpop.permute.xlu0 %4193
    %4195 = vrot.lane.b32.xlu0 %v4139, 32
    %v4196 = vpop.permute.xlu0 %4195
    %4197 = vrot.lane.b32.xlu0 %v4140, 32
    %v4198 = vpop.permute.xlu0 %4197
    %4199 = vrot.lane.b32.xlu0 %v4141, 32
    %v4200 = vpop.permute.xlu0 %4199
    %4201 = vrot.lane.b32.xlu0 %v4142, 32
    %v4202 = vpop.permute.xlu0 %4201
    %4203 = vrot.lane.b32.xlu0 %v4143, 32
    %v4204 = vpop.permute.xlu0 %4203
    %4205 = vrot.lane.b32.xlu0 %v4144, 32
    %v4206 = vpop.permute.xlu0 %4205
    %4207 = vrot.lane.b32.xlu0 %v4145, 32
    %v4208 = vpop.permute.xlu0 %4207
    %4209 = vrot.lane.b32.xlu0 %v4146, 32
    %v4210 = vpop.permute.xlu0 %4209
    %vm4243 = vcmask 281856
    %4244 = vst.msk [vmem:[#allocation3] sm:$0xf] %vm4243, %v4148
    %4245 = vst.msk [vmem:[#allocation3 + $0x4] sm:$0xf] %vm4243, %v4150
    %4246 = vst.msk [vmem:[#allocation3 + $0x8] sm:$0xf] %vm4243, %v4152
    %4247 = vst.msk [vmem:[#allocation3 + $0xc] sm:$0xf] %vm4243, %v4154
    %4248 = vst.msk [vmem:[#allocation3 + $0x10] sm:$0xf] %vm4243, %v4156
    %4249 = vst.msk [vmem:[#allocation3 + $0x14] sm:$0xf] %vm4243, %v4158
    %4250 = vst.msk [vmem:[#allocation3 + $0x18] sm:$0xf] %vm4243, %v4160
    %4251 = vst.msk [vmem:[#allocation3 + $0x1c] sm:$0xf] %vm4243, %v4162
    %4252 = vst.msk [vmem:[#allocation3 + $0x20] sm:$0xf] %vm4243, %v4164
    %4253 = vst.msk [vmem:[#allocation3 + $0x24] sm:$0xf] %vm4243, %v4166
    %4254 = vst.msk [vmem:[#allocation3 + $0x28] sm:$0xf] %vm4243, %v4168
    %4255 = vst.msk [vmem:[#allocation3 + $0x2c] sm:$0xf] %vm4243, %v4170
    %4256 = vst.msk [vmem:[#allocation3 + $0x30] sm:$0xf] %vm4243, %v4172
    %4257 = vst.msk [vmem:[#allocation3 + $0x34] sm:$0xf] %vm4243, %v4174
    %4258 = vst.msk [vmem:[#allocation3 + $0x38] sm:$0xf] %vm4243, %v4176
    %4259 = vst.msk [vmem:[#allocation3 + $0x3c] sm:$0xf] %vm4243, %v4178
    %4260 = vst.msk [vmem:[#allocation3 + $0x40] sm:$0xf] %vm4243, %v4180
    %4261 = vst.msk [vmem:[#allocation3 + $0x44] sm:$0xf] %vm4243, %v4182
    %4262 = vst.msk [vmem:[#allocation3 + $0x48] sm:$0xf] %vm4243, %v4184
    %4263 = vst.msk [vmem:[#allocation3 + $0x4c] sm:$0xf] %vm4243, %v4186
    %4264 = vst.msk [vmem:[#allocation3 + $0x50] sm:$0xf] %vm4243, %v4188
    %4265 = vst.msk [vmem:[#allocation3 + $0x54] sm:$0xf] %vm4243, %v4190
    %4266 = vst.msk [vmem:[#allocation3 + $0x58] sm:$0xf] %vm4243, %v4192
    %4267 = vst.msk [vmem:[#allocation3 + $0x5c] sm:$0xf] %vm4243, %v4194
    %4268 = vst.msk [vmem:[#allocation3 + $0x60] sm:$0xf] %vm4243, %v4196
    %4269 = vst.msk [vmem:[#allocation3 + $0x64] sm:$0xf] %vm4243, %v4198
    %4270 = vst.msk [vmem:[#allocation3 + $0x68] sm:$0xf] %vm4243, %v4200
    %4271 = vst.msk [vmem:[#allocation3 + $0x6c] sm:$0xf] %vm4243, %v4202
    %4272 = vst.msk [vmem:[#allocation3 + $0x70] sm:$0xf] %vm4243, %v4204
    %4273 = vst.msk [vmem:[#allocation3 + $0x74] sm:$0xf] %vm4243, %v4206
    %4274 = vst.msk [vmem:[#allocation3 + $0x78] sm:$0xf] %vm4243, %v4208
    %4275 = vst.msk [vmem:[#allocation3 + $0x7c] sm:$0xf] %vm4243, %v4210
    %v4276 = vld [vmem:[#allocation2] sm:$0xff]
    %v4277 = vld [vmem:[#allocation2 + $0x8] sm:$0xff]
    %v4278 = vld [vmem:[#allocation3] sm:$0xf]
    %v4279 = vld [vmem:[#allocation3 + $0x4] sm:$0xf]
    %v4280 = vld [vmem:[#allocation3 + $0x8] sm:$0xf]
    %v4281 = vld [vmem:[#allocation3 + $0xc] sm:$0xf]
    %v4282 = vld [vmem:[#allocation3 + $0x10] sm:$0xf]
    %v4283 = vld [vmem:[#allocation3 + $0x14] sm:$0xf]
    %v4284 = vld [vmem:[#allocation3 + $0x18] sm:$0xf]
    %v4285 = vld [vmem:[#allocation3 + $0x1c] sm:$0xf]
    %v4286 = vld [vmem:[#allocation3 + $0x20] sm:$0xf]
    %v4287 = vld [vmem:[#allocation3 + $0x24] sm:$0xf]
    %v4288 = vld [vmem:[#allocation3 + $0x28] sm:$0xf]
    %v4289 = vld [vmem:[#allocation3 + $0x2c] sm:$0xf]
    %v4290 = vld [vmem:[#allocation3 + $0x30] sm:$0xf]
    %v4291 = vld [vmem:[#allocation3 + $0x34] sm:$0xf]
    %v4292 = vld [vmem:[#allocation3 + $0x38] sm:$0xf]
    %v4293 = vld [vmem:[#allocation3 + $0x3c] sm:$0xf]
    %v4294 = vld [vmem:[#allocation3 + $0x40] sm:$0xf]
    %v4295 = vld [vmem:[#allocation3 + $0x44] sm:$0xf]
    %v4296 = vld [vmem:[#allocation3 + $0x48] sm:$0xf]
    %v4297 = vld [vmem:[#allocation3 + $0x4c] sm:$0xf]
    %v4298 = vld [vmem:[#allocation3 + $0x50] sm:$0xf]
    %v4299 = vld [vmem:[#allocation3 + $0x54] sm:$0xf]
    %v4300 = vld [vmem:[#allocation3 + $0x58] sm:$0xf]
    %v4301 = vld [vmem:[#allocation3 + $0x5c] sm:$0xf]
    %v4302 = vld [vmem:[#allocation3 + $0x60] sm:$0xf]
    %v4303 = vld [vmem:[#allocation3 + $0x64] sm:$0xf]
    %v4304 = vld [vmem:[#allocation3 + $0x68] sm:$0xf]
    %v4305 = vld [vmem:[#allocation3 + $0x6c] sm:$0xf]
    %v4306 = vld [vmem:[#allocation3 + $0x70] sm:$0xf]
    %v4307 = vld [vmem:[#allocation3 + $0x74] sm:$0xf]
    %v4308 = vld [vmem:[#allocation3 + $0x78] sm:$0xf]
    %v4309 = vld [vmem:[#allocation3 + $0x7c] sm:$0xf]
    %4310 = vxpose.xlu0.c.b16.start [1/8] %v307, 128
    %4311 = vxpose.xlu0.c.b16.cont [2/8] %v308, 128
    %4312 = vxpose.xlu0.c.b16.cont [3/8] %v309, 128
    %4313 = vxpose.xlu0.c.b16.cont [4/8] %v310, 128
    %4314 = vxpose.xlu0.c.b16.cont [5/8] %v311, 128
    %4315 = vxpose.xlu0.c.b16.cont [6/8] %v312, 128
    %4316 = vxpose.xlu0.c.b16.cont [7/8] %v313, 128
    %4317 = vxpose.xlu0.c.b16.end [8/8] %v314, 128
    %v4318 = vpop.trf.xlu0
    %v4319 = vpop.trf.xlu0
    %v4320 = vpop.trf.xlu0
    %v4321 = vpop.trf.xlu0
    %v4322 = vpop.trf.xlu0
    %v4323 = vpop.trf.xlu0
    %v4324 = vpop.trf.xlu0
    %v4325 = vpop.trf.xlu0
    %4326 = vxpose.xlu0.c.b16.start [1/8] %v315, 128
    %4327 = vxpose.xlu0.c.b16.cont [2/8] %v316, 128
    %4328 = vxpose.xlu0.c.b16.cont [3/8] %v317, 128
    %4329 = vxpose.xlu0.c.b16.cont [4/8] %v318, 128
    %4330 = vxpose.xlu0.c.b16.cont [5/8] %v319, 128
    %4331 = vxpose.xlu0.c.b16.cont [6/8] %v320, 128
    %4332 = vxpose.xlu0.c.b16.cont [7/8] %v321, 128
    %4333 = vxpose.xlu0.c.b16.end [8/8] %v322, 128
    %v4334 = vpop.trf.xlu0
    %v4335 = vpop.trf.xlu0
    %v4336 = vpop.trf.xlu0
    %v4337 = vpop.trf.xlu0
    %v4338 = vpop.trf.xlu0
    %v4339 = vpop.trf.xlu0
    %v4340 = vpop.trf.xlu0
    %v4341 = vpop.trf.xlu0
    %v4374 = vunpack.c.l.b16 %v4278
    %v4375 = vunpack.c.l.b16 %v4279
    %v4376 = vunpack.c.l.b16 %v4280
    %v4377 = vunpack.c.l.b16 %v4281
    %v4378 = vunpack.c.l.b16 %v4282
    %v4379 = vunpack.c.l.b16 %v4283
    %v4380 = vunpack.c.l.b16 %v4284
    %v4381 = vunpack.c.l.b16 %v4285
    %v4382 = vunpack.c.l.b16 %v4286
    %v4383 = vunpack.c.l.b16 %v4287
    %v4384 = vunpack.c.l.b16 %v4288
    %v4385 = vunpack.c.l.b16 %v4289
    %v4386 = vunpack.c.l.b16 %v4290
    %v4387 = vunpack.c.l.b16 %v4291
    %v4388 = vunpack.c.l.b16 %v4292
    %v4389 = vunpack.c.l.b16 %v4293
    %v4390 = vunpack.c.l.b16 %v4294
    %v4391 = vunpack.c.l.b16 %v4295
    %v4392 = vunpack.c.l.b16 %v4296
    %v4393 = vunpack.c.l.b16 %v4297
    %v4394 = vunpack.c.l.b16 %v4298
    %v4395 = vunpack.c.l.b16 %v4299
    %v4396 = vunpack.c.l.b16 %v4300
    %v4397 = vunpack.c.l.b16 %v4301
    %v4398 = vunpack.c.l.b16 %v4302
    %v4399 = vunpack.c.l.b16 %v4303
    %v4400 = vunpack.c.l.b16 %v4304
    %v4401 = vunpack.c.l.b16 %v4305
    %v4402 = vunpack.c.l.b16 %v4306
    %v4403 = vunpack.c.l.b16 %v4307
    %v4404 = vunpack.c.l.b16 %v4308
    %v4405 = vunpack.c.l.b16 %v4309
    %v4406 = vpack.c.b16 %v4375, %v4374
    %v4407 = vpack.c.b16 %v4377, %v4376
    %v4408 = vpack.c.b16 %v4379, %v4378
    %v4409 = vpack.c.b16 %v4381, %v4380
    %v4410 = vpack.c.b16 %v4383, %v4382
    %v4411 = vpack.c.b16 %v4385, %v4384
    %v4412 = vpack.c.b16 %v4387, %v4386
    %v4413 = vpack.c.b16 %v4389, %v4388
    %v4414 = vpack.c.b16 %v4391, %v4390
    %v4415 = vpack.c.b16 %v4393, %v4392
    %v4416 = vpack.c.b16 %v4395, %v4394
    %v4417 = vpack.c.b16 %v4397, %v4396
    %v4418 = vpack.c.b16 %v4399, %v4398
    %v4419 = vpack.c.b16 %v4401, %v4400
    %v4420 = vpack.c.b16 %v4403, %v4402
    %v4421 = vpack.c.b16 %v4405, %v4404
    %4438 = vmatprep.subr.bf16.mxu0 0
    %4439 = vmatpush1.bf16.msra.mxu0 %v4413
    %4440 = vmatprep.subr.bf16.mxu0 0
    %4441 = vmatpush1.bf16.msra.mxu0 %v4412
    %4442 = vmatprep.subr.bf16.mxu0 0
    %4443 = vmatpush1.bf16.msra.mxu0 %v4411
    %4444 = vmatprep.subr.bf16.mxu0 0
    %4445 = vmatpush1.bf16.msra.mxu0 %v4410
    %4446 = vmatprep.subr.bf16.mxu0 0
    %4447 = vmatpush1.bf16.msra.mxu0 %v4409
    %4448 = vmatprep.subr.bf16.mxu0 0
    %4449 = vmatpush1.bf16.msra.mxu0 %v4408
    %4450 = vmatprep.subr.bf16.mxu0 0
    %4451 = vmatpush1.bf16.msra.mxu0 %v4407
    %4452 = vmatprep.subr.bf16.mxu0 0
    %4453 = vmatpush1.bf16.msra.mxu0 %v4406
    %4454 = vmatprep.subr.bf16.mxu0 0
    %4455 = vmatpush2.bf16.msra.mxu0 %v4421
    %4456 = vmatprep.subr.bf16.mxu0 0
    %4457 = vmatpush2.bf16.msra.mxu0 %v4420
    %4458 = vmatprep.subr.bf16.mxu0 0
    %4459 = vmatpush2.bf16.msra.mxu0 %v4419
    %4460 = vmatprep.subr.bf16.mxu0 0
    %4461 = vmatpush2.bf16.msra.mxu0 %v4418
    %4462 = vmatprep.subr.bf16.mxu0 0
    %4463 = vmatpush2.bf16.msra.mxu0 %v4417
    %4464 = vmatprep.subr.bf16.mxu0 0
    %4465 = vmatpush2.bf16.msra.mxu0 %v4416
    %4466 = vmatprep.subr.bf16.mxu0 0
    %4467 = vmatpush2.bf16.msra.mxu0 %v4415
    %4468 = vmatprep.subr.bf16.mxu0 0
    %4469 = vmatpush2.bf16.msra.mxu0 %v4414
    %4470 = vmatprep.mubr.bf16.mxu0 %v4334
    %4471 = vmatmul.mubr.bf16.gmra.mxu0 %v4318
    %v4472 = vpop.f32.mrf.mxu0
    %v4473 = vadd.f32 0.0, %v4472
    %v4474 = vpop.f32.mrf.mxu0
    %v4475 = vpop.f32.mrf.mxu0
    %v4476 = vadd.f32 0.0, %v4475
    %v4477 = vpop.f32.mrf.mxu0
    %4478 = vdwg.mxu0
    %v4479 = vadd.f32 %v4276, %v4473
    %v4480 = vadd.f32 %v4277, %v4476
    %vm4481 = vcmask 285696
    %4482 = vst.msk [vmem:[#allocation2] sm:$0xff] %vm4481, %v4479
    %4483 = vst.msk [vmem:[#allocation2 + $0x8] sm:$0xff] %vm4481, %v4480
    // Predicated region
    $region90: #{tpu_custom_call.1} parent=1 // pred_check
      %p4484 = pneg %p74
    $region91: #{tpu_custom_call.1} parent=1 // pred_check_branch
      %4486 = sbr.rel (%p4484) target = $region93
    $region92: #{tpu_custom_call.1} parent=1 // pred_region
      %v4487 = vld [vmem:[#allocation2] sm:$0xff]
      %v4488 = vld [vmem:[#allocation2 + $0x8] sm:$0xff]
      %v4489 = vld [vmem:[%s1] sm:$0xf]
      %v4490 = vld [vmem:[%s1 + $0x4] sm:$0xf]
      %v4491 = vld [vmem:[%s16] sm:$0xf]
      %v4492 = vld [vmem:[%s16 + $0x4] sm:$0xf]
      %v4493 = vld [vmem:[%s16 + $0x8] sm:$0xf]
      %v4494 = vld [vmem:[%s16 + $0xc] sm:$0xf]
      %v4495 = vpack.c.bf16 %v4488, %v4487
      %v4496 = vld [vmem:[%s17] sm:$0xf]
      %v4497 = vld [vmem:[%s17 + $0x4] sm:$0xf]
      %v4498 = vld [vmem:[%s17 + $0x8] sm:$0xf]
      %v4499 = vld [vmem:[%s17 + $0xc] sm:$0xf]
      %v4504 = vunpack.c.l.b16 %v4496
      %v4505 = vunpack.c.l.b16 %v4497
      %v4506 = vunpack.c.l.b16 %v4498
      %v4507 = vunpack.c.l.b16 %v4499
      %v4508 = vpack.c.b16 %v4505, %v4504
      %v4509 = vpack.c.b16 %v4507, %v4506
      %v4513 = vsel %vm1518, %v4495, 0
      %4515 = vmatprep.subr.bf16.mxu0 0
      %4516 = vmatpush1.bf16.msra.mxu0 0
      %4517 = vmatprep.subr.bf16.mxu0 0
      %4518 = vmatpush1.bf16.msra.mxu0 0
      %4519 = vmatprep.subr.bf16.mxu0 0
      %4520 = vmatpush1.bf16.msra.mxu0 0
      %4521 = vmatprep.subr.bf16.mxu0 0
      %4522 = vmatpush1.bf16.msra.mxu0 0
      %4523 = vmatprep.subr.bf16.mxu0 0
      %4524 = vmatpush1.bf16.msra.mxu0 0
      %4525 = vmatprep.subr.bf16.mxu0 0
      %4526 = vmatpush1.bf16.msra.mxu0 0
      %4527 = vmatprep.subr.bf16.mxu0 0
      %4528 = vmatpush1.bf16.msra.mxu0 %v4509
      %4529 = vmatprep.subr.bf16.mxu0 0
      %4530 = vmatpush1.bf16.msra.mxu0 %v4508
      %4531 = vmatprep.subr.bf16.mxu0 0
      %4532 = vmatpush2.bf16.msra.mxu0 0
      %4533 = vmatprep.subr.bf16.mxu0 0
      %4534 = vmatpush2.bf16.msra.mxu0 0
      %4535 = vmatprep.subr.bf16.mxu0 0
      %4536 = vmatpush2.bf16.msra.mxu0 0
      %4537 = vmatprep.subr.bf16.mxu0 0
      %4538 = vmatpush2.bf16.msra.mxu0 0
      %4539 = vmatprep.subr.bf16.mxu0 0
      %4540 = vmatpush2.bf16.msra.mxu0 0
      %4541 = vmatprep.subr.bf16.mxu0 0
      %4542 = vmatpush2.bf16.msra.mxu0 0
      %4543 = vmatprep.subr.bf16.mxu0 0
      %4544 = vmatpush2.bf16.msra.mxu0 0
      %4545 = vmatprep.subr.bf16.mxu0 0
      %4546 = vmatpush2.bf16.msra.mxu0 0
      %4547 = vmatprep.mubr.bf16.mxu0 0
      %4548 = vmatmul.mubr.bf16.gmra.mxu0 %v4513
      %v4549 = vpop.f32.mrf.mxu0
      %v4550 = vadd.f32 0.0, %v4549
      %v4551 = vpop.f32.mrf.mxu0
      %v4552 = vpop.f32.mrf.mxu0
      %v4553 = vadd.f32 0.0, %v4552
      %v4554 = vpop.f32.mrf.mxu0
      %4555 = vdwg.mxu0
      %v4558 = vunpack.c.l.b16 %v4489
      %v4559 = vunpack.c.l.b16 %v4490
      %v4560 = vpack.c.b16 %v4559, %v4558
      %v4565 = vunpack.c.l.b16 %v4491
      %v4566 = vunpack.c.l.b16 %v4492
      %v4567 = vunpack.c.l.b16 %v4493
      %v4568 = vunpack.c.l.b16 %v4494
      %v4569 = vpack.c.b16 %v4566, %v4565
      %v4570 = vpack.c.b16 %v4568, %v4567
      %v4574 = vsel %vm1518, %v4560, 0
      %4576 = vmatprep.subr.bf16.mxu0 0
      %4577 = vmatpush1.bf16.msra.mxu0 0
      %4578 = vmatprep.subr.bf16.mxu0 0
      %4579 = vmatpush1.bf16.msra.mxu0 0
      %4580 = vmatprep.subr.bf16.mxu0 0
      %4581 = vmatpush1.bf16.msra.mxu0 0
      %4582 = vmatprep.subr.bf16.mxu0 0
      %4583 = vmatpush1.bf16.msra.mxu0 0
      %4584 = vmatprep.subr.bf16.mxu0 0
      %4585 = vmatpush1.bf16.msra.mxu0 0
      %4586 = vmatprep.subr.bf16.mxu0 0
      %4587 = vmatpush1.bf16.msra.mxu0 0
      %4588 = vmatprep.subr.bf16.mxu0 0
      %4589 = vmatpush1.bf16.msra.mxu0 %v4570
      %4590 = vmatprep.subr.bf16.mxu0 0
      %4591 = vmatpush1.bf16.msra.mxu0 %v4569
      %4592 = vmatprep.subr.bf16.mxu0 0
      %4593 = vmatpush2.bf16.msra.mxu0 0
      %4594 = vmatprep.subr.bf16.mxu0 0
      %4595 = vmatpush2.bf16.msra.mxu0 0
      %4596 = vmatprep.subr.bf16.mxu0 0
      %4597 = vmatpush2.bf16.msra.mxu0 0
      %4598 = vmatprep.subr.bf16.mxu0 0
      %4599 = vmatpush2.bf16.msra.mxu0 0
      %4600 = vmatprep.subr.bf16.mxu0 0
      %4601 = vmatpush2.bf16.msra.mxu0 0
      %4602 = vmatprep.subr.bf16.mxu0 0
      %4603 = vmatpush2.bf16.msra.mxu0 0
      %4604 = vmatprep.subr.bf16.mxu0 0
      %4605 = vmatpush2.bf16.msra.mxu0 0
      %4606 = vmatprep.subr.bf16.mxu0 0
      %4607 = vmatpush2.bf16.msra.mxu0 0
      %4608 = vmatprep.mubr.bf16.mxu0 0
      %4609 = vmatmul.mubr.bf16.gmra.mxu0 %v4574
      %v4610 = vpop.f32.mrf.mxu0
      %v4611 = vadd.f32 %v4550, %v4610
      %v4612 = vpop.f32.mrf.mxu0
      %v4613 = vpop.f32.mrf.mxu0
      %v4614 = vadd.f32 %v4553, %v4613
      %v4615 = vpop.f32.mrf.mxu0
      %4616 = vdwg.mxu0
      %v4617 = vld [vmem:[%s18] sm:$0x1]
      %v4619 = vlaneseq
      %v4620 = vshrl.u32 %v4619, 7
      %v4621 = vsub.s32 0, %v4620
      %v4622 = vrot.slane %v4617, %v4621
      %v4624 = vadd.f32 %v4611, %v4622
      %v4625 = vadd.f32 %v4614, %v4622
      %v4626 = vtanh.pop %v4624
      %v4627 = vtanh.pop %v4625
      %v4628 = vsub.f32 %v4624, %v4626
      %v4629 = vsub.f32 %v4625, %v4627
      %v4630 = vpack.c.bf16 %v4629, %v4628
      %v4631 = vld [vmem:[%s19] sm:$0xf]
      %v4632 = vld [vmem:[%s19 + $0x4] sm:$0xf]
      %v4633 = vld [vmem:[%s19 + $0x8] sm:$0xf]
      %v4634 = vld [vmem:[%s19 + $0xc] sm:$0xf]
      %v4635 = vld [vmem:[%s20] sm:$0x1]
      %v4637 = vlaneseq
      %v4638 = vshrl.u32 %v4637, 7
      %v4639 = vsub.s32 0, %v4638
      %v4640 = vrot.slane %v4635, %v4639
      %v4646 = vunpack.c.l.b16 %v4631
      %v4647 = vunpack.c.l.b16 %v4632
      %v4648 = vunpack.c.l.b16 %v4633
      %v4649 = vunpack.c.l.b16 %v4634
      %v4650 = vpack.c.b16 %v4647, %v4646
      %v4651 = vpack.c.b16 %v4649, %v4648
      %v4655 = vsel %vm1518, %v4630, 0
      %4657 = vmatprep.subr.bf16.mxu0 0
      %4658 = vmatpush1.bf16.msra.mxu0 0
      %4659 = vmatprep.subr.bf16.mxu0 0
      %4660 = vmatpush1.bf16.msra.mxu0 0
      %4661 = vmatprep.subr.bf16.mxu0 0
      %4662 = vmatpush1.bf16.msra.mxu0 0
      %4663 = vmatprep.subr.bf16.mxu0 0
      %4664 = vmatpush1.bf16.msra.mxu0 0
      %4665 = vmatprep.subr.bf16.mxu0 0
      %4666 = vmatpush1.bf16.msra.mxu0 0
      %4667 = vmatprep.subr.bf16.mxu0 0
      %4668 = vmatpush1.bf16.msra.mxu0 0
      %4669 = vmatprep.subr.bf16.mxu0 0
      %4670 = vmatpush1.bf16.msra.mxu0 %v4651
      %4671 = vmatprep.subr.bf16.mxu0 0
      %4672 = vmatpush1.bf16.msra.mxu0 %v4650
      %4673 = vmatprep.subr.bf16.mxu0 0
      %4674 = vmatpush2.bf16.msra.mxu0 0
      %4675 = vmatprep.subr.bf16.mxu0 0
      %4676 = vmatpush2.bf16.msra.mxu0 0
      %4677 = vmatprep.subr.bf16.mxu0 0
      %4678 = vmatpush2.bf16.msra.mxu0 0
      %4679 = vmatprep.subr.bf16.mxu0 0
      %4680 = vmatpush2.bf16.msra.mxu0 0
      %4681 = vmatprep.subr.bf16.mxu0 0
      %4682 = vmatpush2.bf16.msra.mxu0 0
      %4683 = vmatprep.subr.bf16.mxu0 0
      %4684 = vmatpush2.bf16.msra.mxu0 0
      %4685 = vmatprep.subr.bf16.mxu0 0
      %4686 = vmatpush2.bf16.msra.mxu0 0
      %4687 = vmatprep.subr.bf16.mxu0 0
      %4688 = vmatpush2.bf16.msra.mxu0 0
      %4689 = vmatprep.mubr.bf16.mxu0 0
      %4690 = vmatmul.mubr.bf16.gmra.mxu0 %v4655
      %v4691 = vpop.f32.mrf.mxu0
      %v4692 = vadd.f32 %v4640, %v4691
      %v4693 = vpop.f32.mrf.mxu0
      %v4694 = vpop.f32.mrf.mxu0
      %v4695 = vadd.f32 %v4640, %v4694
      %v4696 = vpop.f32.mrf.mxu0
      %4697 = vdwg.mxu0
      %v4698 = vld [vmem:[%s2] sm:$0xff]
      %v4699 = vld [vmem:[%s2 + $0x8] sm:$0xff]
      %v4700 = vadd.f32 %v4698, %v4692
      %v4701 = vadd.f32 %v4699, %v4695
      %4702 = vst.msk [vmem:[#allocation6] sm:$0xff] %vm1518, %v4700
      %4703 = vst.msk [vmem:[#allocation6 + $0x8] sm:$0xff] %vm1518, %v4701
      %v4704 = vld [vmem:[%s2] sm:$0xff]
      %v4705 = vld [vmem:[%s2 + $0x8] sm:$0xff]
      %v4706 = vadd.f32 %v4704, %v4487
      %v4707 = vadd.f32 %v4705, %v4488
      %vm4708 = vcmask 285952
      %4709 = vst.msk [vmem:[#allocation6] sm:$0xff] %vm4708, %v4706
      %4710 = vst.msk [vmem:[#allocation6 + $0x8] sm:$0xff] %vm4708, %v4707
    $region93: #{tpu_custom_call.1} parent=1 // pred_fallthru
      _
    // Predicated region
    $region94: #{tpu_custom_call.1} parent=1 // pred_check
      _
    $region95: #{tpu_custom_call.1} parent=1 // pred_check_branch
      %4712 = sbr.rel (0) target = $region97
    $region96: #{tpu_custom_call.1} parent=1 // pred_region
      %s4714 = ssub.s32 256, 256
      %4715 = vsyncadd [#allocation7], %s4714
      %s4716 = sshll.u32 [#allocation6], 4
      %s4717 = int_to_ptr.vmem [resolvable:$true] %s4716
      %4722 = dma.vmem_to_hbm [thread:$0]  %s4717, 256, %s21, [#allocation7], 128, 128, 8
    $region97: #{tpu_custom_call.1} parent=1 // pred_fallthru
      _
    // Predicated region
    $region98: #{tpu_custom_call.1} parent=1 // pred_check
      _
    $region99: #{tpu_custom_call.1} parent=1 // pred_check_branch
      %4724 = sbr.rel (0) target = $region101
    $region100: #{tpu_custom_call.1} parent=1 // pred_region
      %4725 = dma.done [#allocation7], 256
    $region101: #{tpu_custom_call.1} parent=1 // pred_fallthru
      _
    %4726 = vsyncpa [#allocation7], 1

</llo_original>
